<compile_context>
chip_gen: v7x
topology: tpu7x:2x2x1
jax: 0.10.0
libtpu: 0.0.40
codegen_flags: <defaults>
</compile_context>

<pallas_src>
import functools

import jax
import jax.numpy as jnp
from jax import lax
from jax.experimental import pallas as pl
from jax.experimental.pallas import tpu as pltpu


# ----------------------------- Pallas kernel --------------------------------
def _lstm_classifier_kernel(
    ids_ref,      # [T*B, 1]   int32 time-major token ids
    lens_ref,     # [B, 1]     int32 sequence lengths
    emb_tab_ref,  # [Vpad, H]  embedding table (row 0 zero == padding_idx, rows >= V zero)
    wih_cat_ref,  # [H, 8H]    [W_ih_fwd^T | W_ih_bwd^T], gate order i,f,g,o
    b_cat_ref,    # [1, 8H]    f32 combined biases (b_ih + b_hh, fwd | bwd)
    whh_f_ref,    # [H, 4H]    forward  W_hh^T
    whh_b_ref,    # [H, 4H]    backward W_hh^T
    w1_ref,       # [H, H]     classifier linear 1 (transposed)
    b1_ref,       # [1, H]     f32
    w2_ref,       # [H, Cpad]  classifier linear 2 (transposed, lane-padded)
    b2_ref,       # [1, Cpad]  f32
    out_ref,      # [B, Cpad]  f32 logits (lane-dense padded)
    pre_sc,       # [T*B, 8H]  f32 scratch: hoisted input projection (fwd | bwd gates)
):
    TB = ids_ref.shape[0]
    B = lens_ref.shape[0]
    T = TB // B
    V_pad, H = emb_tab_ref.shape
    H4 = 4 * H
    mm_dt = wih_cat_ref.dtype

    # ---- fused embedding gather: one-hot MXU matmul against the VMEM-resident table.
    # TODO(synk): for vocabularies too large to keep the table VMEM-resident, fall back
    # to a wrapper-side jnp.take / manual DMA gather instead of the one-hot matmul.
    ids = ids_ref[...]                                                  # [T*B, 1]
    onehot = (ids == lax.broadcasted_iota(jnp.int32, (TB, V_pad), 1)).astype(mm_dt)
    emb = jnp.dot(onehot, emb_tab_ref[...],
                  preferred_element_type=jnp.float32)                   # [T*B, H] f32

    # ---- hoisted input projection: one MXU matmul covers every timestep of BOTH
    # directions (plus bias), streamed directly into a single scratch so it is off
    # the serial critical path of the recurrence.
    pre_sc[...] = (
        jnp.dot(emb.astype(mm_dt), wih_cat_ref[...],
                preferred_element_type=jnp.float32)
        + b_cat_ref[...]
    )                                                                   # [T*B, 8H]

    lens = lens_ref[...]                                                # [B, 1] int32

    def cell(gates, c):
        i_g = jax.nn.sigmoid(gates[:, 0:H])
        f_g = jax.nn.sigmoid(gates[:, H:2 * H])
        g_g = jnp.tanh(gates[:, 2 * H:3 * H])
        o_g = jax.nn.sigmoid(gates[:, 3 * H:4 * H])
        c_new = f_g * c + i_g * g_g
        return o_g * jnp.tanh(c_new), c_new

    zero = jnp.zeros((B, H), jnp.float32)
    h_f, c_f, h_b, c_b = zero, zero, zero, zero

    # Fully unrolled, interleaved bi-directional recurrence (T is a small static
    # constant). Forward walks t = 0..T-1, backward walks t = T-1..0; the two MXU
    # matmuls per step issue back-to-back and hide each other's latency.
    # TODO(synk): hold whh_f / whh_b resident in the MXUs across the unrolled steps
    # (pltpu.matmul_push_rhs / matmul_acc_lhs / matmul_pop) to avoid re-streaming the
    # 128x512 RHS tiles every step; jnp.dot fallback used here for lowering safety.
    for t in range(T):
        tb = T - 1 - t
        gates_f = pre_sc[t * B:(t + 1) * B, 0:H4] + jnp.dot(
            h_f.astype(mm_dt), whh_f_ref[...], preferred_element_type=jnp.float32)
        gates_b = pre_sc[tb * B:(tb + 1) * B, H4:2 * H4] + jnp.dot(
            h_b.astype(mm_dt), whh_b_ref[...], preferred_element_type=jnp.float32)
        h_f_new, c_f_new = cell(gates_f, c_f)
        h_b_new, c_b_new = cell(gates_b, c_b)
        # masked update == pack_padded_sequence: state frozen past the sequence length
        m_f = lens > t                      # [B, 1] bool, lane-broadcast in the select
        m_b = lens > tb
        h_f = jnp.where(m_f, h_f_new, h_f)
        c_f = jnp.where(m_f, c_f_new, c_f)
        h_b = jnp.where(m_b, h_b_new, h_b)
        c_b = jnp.where(m_b, c_b_new, c_b)

    # features = ht.permute(1, 0, 2).mean(1) == 0.5 * (h_fwd_final + h_bwd_final)
    feat = 0.5 * (h_f + h_b)

    # classifier: Linear -> LeakyReLU(0.01) -> Linear (output lane-padded to Cpad)
    hid = jnp.dot(feat.astype(w1_ref.dtype), w1_ref[...],
                  preferred_element_type=jnp.float32) + b1_ref[...]
    hid = jnp.where(hid > 0, hid, 0.01 * hid)
    out_ref[...] = jnp.dot(hid.astype(w2_ref.dtype), w2_ref[...],
                           preferred_element_type=jnp.float32) + b2_ref[...]


# ------------------------ one-time parameter preparation ----------------------
def prepare_params(params, use_bf16=True):
    """Hoist all static weight preprocessing out of the per-call path (done once)."""
    mm_dt = jnp.bfloat16 if use_bf16 else jnp.float32
    V, H = params["embedding"].shape
    C = params["b2"].shape[-1]
    V_pad = 128 * pl.cdiv(V, 128)      # contracting dim of the one-hot gather matmul
    C_pad = 128 * pl.cdiv(C, 128)      # lane-dense output width

    emb_pad = jnp.zeros((V_pad, H), mm_dt).at[:V, :].set(params["embedding"].astype(mm_dt))
    wih_cat = jnp.concatenate([params["wih_f"], params["wih_b"]], axis=1).astype(mm_dt)
    b_cat = jnp.concatenate([params["b_f"], params["b_b"]], axis=1).astype(jnp.float32)
    w2_pad = jnp.zeros((H, C_pad), mm_dt).at[:, :C].set(params["w2"].astype(mm_dt))
    b2_pad = jnp.zeros((1, C_pad), jnp.float32).at[:, :C].set(params["b2"])

    return {
        "emb_tab": emb_pad,
        "wih_cat": wih_cat,
        "b_cat": b_cat,
        "whh_f": params["whh_f"].astype(mm_dt),
        "whh_b": params["whh_b"].astype(mm_dt),
        "w1": params["w1"].astype(mm_dt),
        "b1": params["b1"].astype(jnp.float32),
        "w2": w2_pad,
        "b2": b2_pad,
    }


# ------------------------------ JAX wrapper ----------------------------------
@functools.partial(jax.jit, static_argnames=("num_classes",))
def lstm_classifier_forward(input_ids, lengths, prep, num_classes):
    """input_ids: [B, T] int32, lengths: [B] int32, prep: prepare_params() output."""
    B, T = input_ids.shape
    _, H = prep["emb_tab"].shape
    C_pad = prep["b2"].shape[-1]
    assert B % 8 == 0, "batch must be a multiple of 8 sublanes (pad in the caller)"

    # The only per-call host-side ops: tiny int reshapes (fused under jit).
    ids_tm = input_ids.T.reshape(T * B, 1).astype(jnp.int32)   # time-major id column
    lens = lengths.reshape(B, 1).astype(jnp.int32)

    inputs = (ids_tm, lens, prep["emb_tab"], prep["wih_cat"], prep["b_cat"],
              prep["whh_f"], prep["whh_b"], prep["w1"], prep["b1"], prep["w2"],
              prep["b2"])

    # No grid: fully VMEM-resident single-shot kernel (~1.2 MiB at these shapes).
    # TODO(synk): for long sequences (esp. v7x 64 MiB VMEM) keep the ids/projection in
    # HBM and double-buffer [t_chunk*B, 8H] bf16 slabs with pltpu.make_async_copy.
    # TODO(synk): on v7x, split the BATCH (not the directions) across the 2 TensorCores
    # once per-call compute exceeds the cross-core barrier cost.
    out = pl.pallas_call(
        _lstm_classifier_kernel,
        out_shape=jax.ShapeDtypeStruct((B, C_pad), jnp.float32),
        in_specs=[pl.BlockSpec(memory_space=pltpu.MemorySpace.VMEM) for _ in inputs],
        out_specs=pl.BlockSpec(memory_space=pltpu.MemorySpace.VMEM),
        scratch_shapes=[pltpu.VMEM((T * B, 8 * H), jnp.float32)],
    )(*inputs)
    return out[:, :num_classes]


# ------------------------- pure-JAX reference (check) -------------------------
def reference_forward(input_ids, lengths, params):
    emb_table = params["embedding"]
    H = emb_table.shape[1]
    B, T = input_ids.shape
    emb = jnp.take(emb_table, input_ids, axis=0)     # [B, T, H]
    t_idx = jnp.arange(T)[None, :]
    mask = (t_idx < lengths[:, None]).astype(jnp.float32)[:, :, None]  # [B, T, 1]

    def run_dir(wih, whh, b, reverse):
        h = jnp.zeros((B, H), jnp.float32)
        c = jnp.zeros((B, H), jnp.float32)
        ts = range(T - 1, -1, -1) if reverse else range(T)
        for t in ts:
            x_t = emb[:, t, :]
            m = mask[:, t, :]
            gates = x_t @ wih + h @ whh + b
            i_g = jax.nn.sigmoid(gates[:, 0:H])
            f_g = jax.nn.sigmoid(gates[:, H:2 * H])
            g_g = jnp.tanh(gates[:, 2 * H:3 * H])
            o_g = jax.nn.sigmoid(gates[:, 3 * H:4 * H])
            c_new = f_g * c + i_g * g_g
            h_new = o_g * jnp.tanh(c_new)
            h = m * h_new + (1.0 - m) * h
            c = m * c_new + (1.0 - m) * c
        return h

    h_f = run_dir(params["wih_f"], params["whh_f"], params["b_f"], False)
    h_b = run_dir(params["wih_b"], params["whh_b"], params["b_b"], True)
    feat = 0.5 * (h_f + h_b)
    hid = feat @ params["w1"] + params["b1"]
    hid = jnp.where(hid > 0, hid, 0.01 * hid)
    return hid @ params["w2"] + params["b2"]


# --------------------------------- params -------------------------------------
def init_params(key, vocab_size, hidden_size, num_classes):
    H = hidden_size
    k = 1.0 / jnp.sqrt(jnp.float32(H))
    keys = jax.random.split(key, 16)

    def u(kk, shape):
        return jax.random.uniform(kk, shape, jnp.float32, minval=-k, maxval=k)

    emb = jax.random.normal(keys[0], (vocab_size, H), jnp.float32) * 0.1
    emb = emb.at[0].set(0.0)  # padding_idx=0

    return {
        "embedding": emb,
        # forward direction (weights stored transposed: [in, out], gate order i,f,g,o)
        "wih_f": u(keys[1], (H, 4 * H)),
        "whh_f": u(keys[2], (H, 4 * H)),
        "b_f": u(keys[3], (1, 4 * H)) + u(keys[4], (1, 4 * H)),  # b_ih + b_hh
        # backward direction
        "wih_b": u(keys[5], (H, 4 * H)),
        "whh_b": u(keys[6], (H, 4 * H)),
        "b_b": u(keys[7], (1, 4 * H)) + u(keys[8], (1, 4 * H)),
        # classifier
        "w1": u(keys[9], (H, H)),
        "b1": u(keys[10], (1, H)),
        "w2": u(keys[11], (H, num_classes)),
        "b2": u(keys[12], (1, num_classes)),
    }


if __name__ == "__main__":
    VOCAB, HIDDEN, NUM_CLASSES = 32, 128, 6
    B, T = 8, 8

    key = jax.random.PRNGKey(0)
    k_ids, k_params = jax.random.split(key)

    lengths = jnp.array([8, 5, 3, 8, 2, 6, 7, 4], dtype=jnp.int32)
    input_ids = jax.random.randint(k_ids, (B, T), 1, VOCAB, dtype=jnp.int32)
    # zero out the padded tail (padding_idx = 0)
    valid = jnp.arange(T)[None, :] < lengths[:, None]
    input_ids = jnp.where(valid, input_ids, 0)

    params = init_params(k_params, VOCAB, HIDDEN, NUM_CLASSES)
    ref = reference_forward(input_ids, lengths, params)

    # f32 MXU-operand path: tight check against the pure-JAX reference
    prep_f32 = prepare_params(params, use_bf16=False)
    logits_f32 = jax.block_until_ready(
        lstm_classifier_forward(input_ids, lengths, prep_f32, num_classes=NUM_CLASSES))
    assert logits_f32.shape == (B, NUM_CLASSES)
    err = float(jnp.max(jnp.abs(logits_f32 - ref)))
    assert jnp.allclose(logits_f32, ref, atol=2e-4, rtol=2e-4), f"f32 mismatch: {err}"

    # bf16 MXU-operand default path (f32 accumulation & gate math): loose sanity check
    prep = prepare_params(params)  # use_bf16=True default
    logits = jax.block_until_ready(
        lstm_classifier_forward(input_ids, lengths, prep, num_classes=NUM_CLASSES))
    assert logits.shape == (B, NUM_CLASSES)
    assert bool(jnp.all(jnp.isfinite(logits)))
    assert float(jnp.max(jnp.abs(logits - ref))) < 0.5

    print("KERNEL_OK")
</pallas_src>

<mosaic_0001>
module attributes {stable_mosaic.version = 11 : i64} {
  func.func @_lstm_classifier_kernel(%arg0: memref<64x1xi32, #tpu.memory_space<vmem>>, %arg1: memref<8x1xi32, #tpu.memory_space<vmem>>, %arg2: memref<128x128xf32, #tpu.memory_space<vmem>>, %arg3: memref<128x1024xf32, #tpu.memory_space<vmem>>, %arg4: memref<1x1024xf32, #tpu.memory_space<vmem>>, %arg5: memref<128x512xf32, #tpu.memory_space<vmem>>, %arg6: memref<128x512xf32, #tpu.memory_space<vmem>>, %arg7: memref<128x128xf32, #tpu.memory_space<vmem>>, %arg8: memref<1x128xf32, #tpu.memory_space<vmem>>, %arg9: memref<128x128xf32, #tpu.memory_space<vmem>>, %arg10: memref<1x128xf32, #tpu.memory_space<vmem>>, %arg11: memref<8x128xf32, #tpu.memory_space<vmem>>, %arg12: memref<64x1024xf32, #tpu.memory_space<vmem>>) attributes {dimension_semantics = [], scalar_prefetch = 0 : i64, scratch_operands = 1 : i64, tpu.core_type = #tpu.core_type<tc>} {
    %c0 = arith.constant 0 : index
    %c0_0 = arith.constant 0 : index
    %0 = vector.load %arg0[%c0, %c0_0] : memref<64x1xi32, #tpu.memory_space<vmem>>, vector<64x1xi32>
    %1 = tpu.iota {dimensions = array<i32: 1>} : vector<64x128xi32>
    %2 = vector.broadcast %0 : vector<64x1xi32> to vector<64x128xi32>
    %3 = arith.cmpi eq, %2, %1 : vector<64x128xi32>
    %4 = arith.extui %3 : vector<64x128xi1> to vector<64x128xi32>
    %5 = arith.sitofp %4 : vector<64x128xi32> to vector<64x128xf32>
    %c0_1 = arith.constant 0 : index
    %c0_2 = arith.constant 0 : index
    %6 = vector.load %arg2[%c0_1, %c0_2] : memref<128x128xf32, #tpu.memory_space<vmem>>, vector<128x128xf32>
    %cst = arith.constant dense<0.000000e+00> : vector<64x128xf32>
    %7 = tpu.matmul %5, %6, %cst {dimension_numbers = #tpu.dot_dimension_numbers<[1], [0], [0], [1], [0, 0, 1, 1], [], []>} : vector<64x128xf32>, vector<128x128xf32>, vector<64x128xf32> -> vector<64x128xf32>
    %c0_3 = arith.constant 0 : index
    %c0_4 = arith.constant 0 : index
    %8 = vector.load %arg3[%c0_3, %c0_4] : memref<128x1024xf32, #tpu.memory_space<vmem>>, vector<128x1024xf32>
    %cst_5 = arith.constant dense<0.000000e+00> : vector<64x1024xf32>
    %9 = tpu.matmul %7, %8, %cst_5 {dimension_numbers = #tpu.dot_dimension_numbers<[1], [0], [0], [1], [0, 0, 1, 1], [], []>} : vector<64x128xf32>, vector<128x1024xf32>, vector<64x1024xf32> -> vector<64x1024xf32>
    %c0_6 = arith.constant 0 : index
    %c0_7 = arith.constant 0 : index
    %10 = vector.load %arg4[%c0_6, %c0_7] : memref<1x1024xf32, #tpu.memory_space<vmem>>, vector<1x1024xf32>
    %11 = vector.broadcast %10 : vector<1x1024xf32> to vector<64x1024xf32>
    %12 = arith.addf %9, %11 : vector<64x1024xf32>
    %c0_8 = arith.constant 0 : index
    %c0_9 = arith.constant 0 : index
    %13 = vector.load %arg12[%c0_8, %c0_9] : memref<64x1024xf32, #tpu.memory_space<vmem>>, vector<64x1024xf32>
    tpu.vector_store %arg12[%c0_8, %c0_9], %12 {strides = array<i32>} : memref<64x1024xf32, #tpu.memory_space<vmem>>, vector<64x1024xf32>,
    %c0_10 = arith.constant 0 : index
    %c0_11 = arith.constant 0 : index
    %14 = vector.load %arg1[%c0_10, %c0_11] : memref<8x1xi32, #tpu.memory_space<vmem>>, vector<8x1xi32>
    %cst_12 = arith.constant 0.000000e+00 : f32
    %15 = vector.broadcast %cst_12 : f32 to vector<8x128xf32>
    %c0_13 = arith.constant 0 : index
    %c0_14 = arith.constant 0 : index
    %16 = vector.load %arg12[%c0_13, %c0_14] : memref<64x1024xf32, #tpu.memory_space<vmem>>, vector<8x512xf32>
    %c0_15 = arith.constant 0 : index
    %c0_16 = arith.constant 0 : index
    %17 = vector.load %arg5[%c0_15, %c0_16] : memref<128x512xf32, #tpu.memory_space<vmem>>, vector<128x512xf32>
    %cst_17 = arith.constant dense<0.000000e+00> : vector<8x512xf32>
    %18 = tpu.matmul %15, %17, %cst_17 {dimension_numbers = #tpu.dot_dimension_numbers<[1], [0], [0], [1], [0, 0, 1, 1], [], []>} : vector<8x128xf32>, vector<128x512xf32>, vector<8x512xf32> -> vector<8x512xf32>
    %19 = arith.addf %16, %18 : vector<8x512xf32>
    %c56 = arith.constant 56 : index
    %c512 = arith.constant 512 : index
    %20 = vector.load %arg12[%c56, %c512] : memref<64x1024xf32, #tpu.memory_space<vmem>>, vector<8x512xf32>
    %c0_18 = arith.constant 0 : index
    %c0_19 = arith.constant 0 : index
    %21 = vector.load %arg6[%c0_18, %c0_19] : memref<128x512xf32, #tpu.memory_space<vmem>>, vector<128x512xf32>
    %cst_20 = arith.constant dense<0.000000e+00> : vector<8x512xf32>
    %22 = tpu.matmul %15, %21, %cst_20 {dimension_numbers = #tpu.dot_dimension_numbers<[1], [0], [0], [1], [0, 0, 1, 1], [], []>} : vector<8x128xf32>, vector<128x512xf32>, vector<8x512xf32> -> vector<8x512xf32>
    %23 = arith.addf %20, %22 : vector<8x512xf32>
    %24 = vector.extract_strided_slice %19 {offsets = [0, 0], sizes = [8, 128], strides = [1, 1]} : vector<8x512xf32> to vector<8x128xf32>
    %25 = arith.negf %24 : vector<8x128xf32>
    %26 = math.exp %25 : vector<8x128xf32>
    %cst_21 = arith.constant 1.000000e+00 : f32
    %27 = vector.broadcast %cst_21 : f32 to vector<8x128xf32>
    %28 = arith.addf %27, %26 : vector<8x128xf32>
    %29 = arith.divf %27, %28 : vector<8x128xf32>
    %30 = vector.extract_strided_slice %19 {offsets = [0, 128], sizes = [8, 128], strides = [1, 1]} : vector<8x512xf32> to vector<8x128xf32>
    %31 = arith.negf %30 : vector<8x128xf32>
    %32 = math.exp %31 : vector<8x128xf32>
    %cst_22 = arith.constant 1.000000e+00 : f32
    %33 = vector.broadcast %cst_22 : f32 to vector<8x128xf32>
    %34 = arith.addf %33, %32 : vector<8x128xf32>
    %35 = arith.divf %33, %34 : vector<8x128xf32>
    %36 = vector.extract_strided_slice %19 {offsets = [0, 256], sizes = [8, 128], strides = [1, 1]} : vector<8x512xf32> to vector<8x128xf32>
    %37 = math.tanh %36 : vector<8x128xf32>
    %38 = vector.extract_strided_slice %19 {offsets = [0, 384], sizes = [8, 128], strides = [1, 1]} : vector<8x512xf32> to vector<8x128xf32>
    %39 = arith.negf %38 : vector<8x128xf32>
    %40 = math.exp %39 : vector<8x128xf32>
    %cst_23 = arith.constant 1.000000e+00 : f32
    %41 = vector.broadcast %cst_23 : f32 to vector<8x128xf32>
    %42 = arith.addf %41, %40 : vector<8x128xf32>
    %43 = arith.divf %41, %42 : vector<8x128xf32>
    %44 = arith.mulf %35, %15 : vector<8x128xf32>
    %45 = arith.mulf %29, %37 : vector<8x128xf32>
    %46 = arith.addf %44, %45 : vector<8x128xf32>
    %47 = math.tanh %46 : vector<8x128xf32>
    %48 = arith.mulf %43, %47 : vector<8x128xf32>
    %49 = vector.extract_strided_slice %23 {offsets = [0, 0], sizes = [8, 128], strides = [1, 1]} : vector<8x512xf32> to vector<8x128xf32>
    %50 = arith.negf %49 : vector<8x128xf32>
    %51 = math.exp %50 : vector<8x128xf32>
    %cst_24 = arith.constant 1.000000e+00 : f32
    %52 = vector.broadcast %cst_24 : f32 to vector<8x128xf32>
    %53 = arith.addf %52, %51 : vector<8x128xf32>
    %54 = arith.divf %52, %53 : vector<8x128xf32>
    %55 = vector.extract_strided_slice %23 {offsets = [0, 128], sizes = [8, 128], strides = [1, 1]} : vector<8x512xf32> to vector<8x128xf32>
    %56 = arith.negf %55 : vector<8x128xf32>
    %57 = math.exp %56 : vector<8x128xf32>
    %cst_25 = arith.constant 1.000000e+00 : f32
    %58 = vector.broadcast %cst_25 : f32 to vector<8x128xf32>
    %59 = arith.addf %58, %57 : vector<8x128xf32>
    %60 = arith.divf %58, %59 : vector<8x128xf32>
    %61 = vector.extract_strided_slice %23 {offsets = [0, 256], sizes = [8, 128], strides = [1, 1]} : vector<8x512xf32> to vector<8x128xf32>
    %62 = math.tanh %61 : vector<8x128xf32>
    %63 = vector.extract_strided_slice %23 {offsets = [0, 384], sizes = [8, 128], strides = [1, 1]} : vector<8x512xf32> to vector<8x128xf32>
    %64 = arith.negf %63 : vector<8x128xf32>
    %65 = math.exp %64 : vector<8x128xf32>
    %cst_26 = arith.constant 1.000000e+00 : f32
    %66 = vector.broadcast %cst_26 : f32 to vector<8x128xf32>
    %67 = arith.addf %66, %65 : vector<8x128xf32>
    %68 = arith.divf %66, %67 : vector<8x128xf32>
    %69 = arith.mulf %60, %15 : vector<8x128xf32>
    %70 = arith.mulf %54, %62 : vector<8x128xf32>
    %71 = arith.addf %69, %70 : vector<8x128xf32>
    %72 = math.tanh %71 : vector<8x128xf32>
    %73 = arith.mulf %68, %72 : vector<8x128xf32>
    %c0_i32 = arith.constant 0 : i32
    %74 = vector.broadcast %c0_i32 : i32 to vector<8x1xi32>
    %75 = arith.cmpi sgt, %14, %74 : vector<8x1xi32>
    %c7_i32 = arith.constant 7 : i32
    %76 = vector.broadcast %c7_i32 : i32 to vector<8x1xi32>
    %77 = arith.cmpi sgt, %14, %76 : vector<8x1xi32>
    %78 = vector.shape_cast %75 : vector<8x1xi1> to vector<8x1xi1>
    %79 = vector.broadcast %78 : vector<8x1xi1> to vector<8x128xi1>
    %80 = arith.select %79, %48, %15 : vector<8x128xi1>, vector<8x128xf32>
    %81 = vector.shape_cast %75 : vector<8x1xi1> to vector<8x1xi1>
    %82 = vector.broadcast %81 : vector<8x1xi1> to vector<8x128xi1>
    %83 = arith.select %82, %46, %15 : vector<8x128xi1>, vector<8x128xf32>
    %84 = vector.shape_cast %77 : vector<8x1xi1> to vector<8x1xi1>
    %85 = vector.broadcast %84 : vector<8x1xi1> to vector<8x128xi1>
    %86 = arith.select %85, %73, %15 : vector<8x128xi1>, vector<8x128xf32>
    %87 = vector.shape_cast %77 : vector<8x1xi1> to vector<8x1xi1>
    %88 = vector.broadcast %87 : vector<8x1xi1> to vector<8x128xi1>
    %89 = arith.select %88, %71, %15 : vector<8x128xi1>, vector<8x128xf32>
    %c8 = arith.constant 8 : index
    %c0_27 = arith.constant 0 : index
    %90 = vector.load %arg12[%c8, %c0_27] : memref<64x1024xf32, #tpu.memory_space<vmem>>, vector<8x512xf32>
    %c0_28 = arith.constant 0 : index
    %c0_29 = arith.constant 0 : index
    %91 = vector.load %arg5[%c0_28, %c0_29] : memref<128x512xf32, #tpu.memory_space<vmem>>, vector<128x512xf32>
    %cst_30 = arith.constant dense<0.000000e+00> : vector<8x512xf32>
    %92 = tpu.matmul %80, %91, %cst_30 {dimension_numbers = #tpu.dot_dimension_numbers<[1], [0], [0], [1], [0, 0, 1, 1], [], []>} : vector<8x128xf32>, vector<128x512xf32>, vector<8x512xf32> -> vector<8x512xf32>
    %93 = arith.addf %90, %92 : vector<8x512xf32>
    %c48 = arith.constant 48 : index
    %c512_31 = arith.constant 512 : index
    %94 = vector.load %arg12[%c48, %c512_31] : memref<64x1024xf32, #tpu.memory_space<vmem>>, vector<8x512xf32>
    %c0_32 = arith.constant 0 : index
    %c0_33 = arith.constant 0 : index
    %95 = vector.load %arg6[%c0_32, %c0_33] : memref<128x512xf32, #tpu.memory_space<vmem>>, vector<128x512xf32>
    %cst_34 = arith.constant dense<0.000000e+00> : vector<8x512xf32>
    %96 = tpu.matmul %86, %95, %cst_34 {dimension_numbers = #tpu.dot_dimension_numbers<[1], [0], [0], [1], [0, 0, 1, 1], [], []>} : vector<8x128xf32>, vector<128x512xf32>, vector<8x512xf32> -> vector<8x512xf32>
    %97 = arith.addf %94, %96 : vector<8x512xf32>
    %98 = vector.extract_strided_slice %93 {offsets = [0, 0], sizes = [8, 128], strides = [1, 1]} : vector<8x512xf32> to vector<8x128xf32>
    %99 = arith.negf %98 : vector<8x128xf32>
    %100 = math.exp %99 : vector<8x128xf32>
    %cst_35 = arith.constant 1.000000e+00 : f32
    %101 = vector.broadcast %cst_35 : f32 to vector<8x128xf32>
    %102 = arith.addf %101, %100 : vector<8x128xf32>
    %103 = arith.divf %101, %102 : vector<8x128xf32>
    %104 = vector.extract_strided_slice %93 {offsets = [0, 128], sizes = [8, 128], strides = [1, 1]} : vector<8x512xf32> to vector<8x128xf32>
    %105 = arith.negf %104 : vector<8x128xf32>
    %106 = math.exp %105 : vector<8x128xf32>
    %cst_36 = arith.constant 1.000000e+00 : f32
    %107 = vector.broadcast %cst_36 : f32 to vector<8x128xf32>
    %108 = arith.addf %107, %106 : vector<8x128xf32>
    %109 = arith.divf %107, %108 : vector<8x128xf32>
    %110 = vector.extract_strided_slice %93 {offsets = [0, 256], sizes = [8, 128], strides = [1, 1]} : vector<8x512xf32> to vector<8x128xf32>
    %111 = math.tanh %110 : vector<8x128xf32>
    %112 = vector.extract_strided_slice %93 {offsets = [0, 384], sizes = [8, 128], strides = [1, 1]} : vector<8x512xf32> to vector<8x128xf32>
    %113 = arith.negf %112 : vector<8x128xf32>
    %114 = math.exp %113 : vector<8x128xf32>
    %cst_37 = arith.constant 1.000000e+00 : f32
    %115 = vector.broadcast %cst_37 : f32 to vector<8x128xf32>
    %116 = arith.addf %115, %114 : vector<8x128xf32>
    %117 = arith.divf %115, %116 : vector<8x128xf32>
    %118 = arith.mulf %109, %83 : vector<8x128xf32>
    %119 = arith.mulf %103, %111 : vector<8x128xf32>
    %120 = arith.addf %118, %119 : vector<8x128xf32>
    %121 = math.tanh %120 : vector<8x128xf32>
    %122 = arith.mulf %117, %121 : vector<8x128xf32>
    %123 = vector.extract_strided_slice %97 {offsets = [0, 0], sizes = [8, 128], strides = [1, 1]} : vector<8x512xf32> to vector<8x128xf32>
    %124 = arith.negf %123 : vector<8x128xf32>
    %125 = math.exp %124 : vector<8x128xf32>
    %cst_38 = arith.constant 1.000000e+00 : f32
    %126 = vector.broadcast %cst_38 : f32 to vector<8x128xf32>
    %127 = arith.addf %126, %125 : vector<8x128xf32>
    %128 = arith.divf %126, %127 : vector<8x128xf32>
    %129 = vector.extract_strided_slice %97 {offsets = [0, 128], sizes = [8, 128], strides = [1, 1]} : vector<8x512xf32> to vector<8x128xf32>
    %130 = arith.negf %129 : vector<8x128xf32>
    %131 = math.exp %130 : vector<8x128xf32>
    %cst_39 = arith.constant 1.000000e+00 : f32
    %132 = vector.broadcast %cst_39 : f32 to vector<8x128xf32>
    %133 = arith.addf %132, %131 : vector<8x128xf32>
    %134 = arith.divf %132, %133 : vector<8x128xf32>
    %135 = vector.extract_strided_slice %97 {offsets = [0, 256], sizes = [8, 128], strides = [1, 1]} : vector<8x512xf32> to vector<8x128xf32>
    %136 = math.tanh %135 : vector<8x128xf32>
    %137 = vector.extract_strided_slice %97 {offsets = [0, 384], sizes = [8, 128], strides = [1, 1]} : vector<8x512xf32> to vector<8x128xf32>
    %138 = arith.negf %137 : vector<8x128xf32>
    %139 = math.exp %138 : vector<8x128xf32>
    %cst_40 = arith.constant 1.000000e+00 : f32
    %140 = vector.broadcast %cst_40 : f32 to vector<8x128xf32>
    %141 = arith.addf %140, %139 : vector<8x128xf32>
    %142 = arith.divf %140, %141 : vector<8x128xf32>
    %143 = arith.mulf %134, %89 : vector<8x128xf32>
    %144 = arith.mulf %128, %136 : vector<8x128xf32>
    %145 = arith.addf %143, %144 : vector<8x128xf32>
    %146 = math.tanh %145 : vector<8x128xf32>
    %147 = arith.mulf %142, %146 : vector<8x128xf32>
    %c1_i32 = arith.constant 1 : i32
    %148 = vector.broadcast %c1_i32 : i32 to vector<8x1xi32>
    %149 = arith.cmpi sgt, %14, %148 : vector<8x1xi32>
    %c6_i32 = arith.constant 6 : i32
    %150 = vector.broadcast %c6_i32 : i32 to vector<8x1xi32>
    %151 = arith.cmpi sgt, %14, %150 : vector<8x1xi32>
    %152 = vector.shape_cast %149 : vector<8x1xi1> to vector<8x1xi1>
    %153 = vector.broadcast %152 : vector<8x1xi1> to vector<8x128xi1>
    %154 = arith.select %153, %122, %80 : vector<8x128xi1>, vector<8x128xf32>
    %155 = vector.shape_cast %149 : vector<8x1xi1> to vector<8x1xi1>
    %156 = vector.broadcast %155 : vector<8x1xi1> to vector<8x128xi1>
    %157 = arith.select %156, %120, %83 : vector<8x128xi1>, vector<8x128xf32>
    %158 = vector.shape_cast %151 : vector<8x1xi1> to vector<8x1xi1>
    %159 = vector.broadcast %158 : vector<8x1xi1> to vector<8x128xi1>
    %160 = arith.select %159, %147, %86 : vector<8x128xi1>, vector<8x128xf32>
    %161 = vector.shape_cast %151 : vector<8x1xi1> to vector<8x1xi1>
    %162 = vector.broadcast %161 : vector<8x1xi1> to vector<8x128xi1>
    %163 = arith.select %162, %145, %89 : vector<8x128xi1>, vector<8x128xf32>
    %c16 = arith.constant 16 : index
    %c0_41 = arith.constant 0 : index
    %164 = vector.load %arg12[%c16, %c0_41] : memref<64x1024xf32, #tpu.memory_space<vmem>>, vector<8x512xf32>
    %c0_42 = arith.constant 0 : index
    %c0_43 = arith.constant 0 : index
    %165 = vector.load %arg5[%c0_42, %c0_43] : memref<128x512xf32, #tpu.memory_space<vmem>>, vector<128x512xf32>
    %cst_44 = arith.constant dense<0.000000e+00> : vector<8x512xf32>
    %166 = tpu.matmul %154, %165, %cst_44 {dimension_numbers = #tpu.dot_dimension_numbers<[1], [0], [0], [1], [0, 0, 1, 1], [], []>} : vector<8x128xf32>, vector<128x512xf32>, vector<8x512xf32> -> vector<8x512xf32>
    %167 = arith.addf %164, %166 : vector<8x512xf32>
    %c40 = arith.constant 40 : index
    %c512_45 = arith.constant 512 : index
    %168 = vector.load %arg12[%c40, %c512_45] : memref<64x1024xf32, #tpu.memory_space<vmem>>, vector<8x512xf32>
    %c0_46 = arith.constant 0 : index
    %c0_47 = arith.constant 0 : index
    %169 = vector.load %arg6[%c0_46, %c0_47] : memref<128x512xf32, #tpu.memory_space<vmem>>, vector<128x512xf32>
    %cst_48 = arith.constant dense<0.000000e+00> : vector<8x512xf32>
    %170 = tpu.matmul %160, %169, %cst_48 {dimension_numbers = #tpu.dot_dimension_numbers<[1], [0], [0], [1], [0, 0, 1, 1], [], []>} : vector<8x128xf32>, vector<128x512xf32>, vector<8x512xf32> -> vector<8x512xf32>
    %171 = arith.addf %168, %170 : vector<8x512xf32>
    %172 = vector.extract_strided_slice %167 {offsets = [0, 0], sizes = [8, 128], strides = [1, 1]} : vector<8x512xf32> to vector<8x128xf32>
    %173 = arith.negf %172 : vector<8x128xf32>
    %174 = math.exp %173 : vector<8x128xf32>
    %cst_49 = arith.constant 1.000000e+00 : f32
    %175 = vector.broadcast %cst_49 : f32 to vector<8x128xf32>
    %176 = arith.addf %175, %174 : vector<8x128xf32>
    %177 = arith.divf %175, %176 : vector<8x128xf32>
    %178 = vector.extract_strided_slice %167 {offsets = [0, 128], sizes = [8, 128], strides = [1, 1]} : vector<8x512xf32> to vector<8x128xf32>
    %179 = arith.negf %178 : vector<8x128xf32>
    %180 = math.exp %179 : vector<8x128xf32>
    %cst_50 = arith.constant 1.000000e+00 : f32
    %181 = vector.broadcast %cst_50 : f32 to vector<8x128xf32>
    %182 = arith.addf %181, %180 : vector<8x128xf32>
    %183 = arith.divf %181, %182 : vector<8x128xf32>
    %184 = vector.extract_strided_slice %167 {offsets = [0, 256], sizes = [8, 128], strides = [1, 1]} : vector<8x512xf32> to vector<8x128xf32>
    %185 = math.tanh %184 : vector<8x128xf32>
    %186 = vector.extract_strided_slice %167 {offsets = [0, 384], sizes = [8, 128], strides = [1, 1]} : vector<8x512xf32> to vector<8x128xf32>
    %187 = arith.negf %186 : vector<8x128xf32>
    %188 = math.exp %187 : vector<8x128xf32>
    %cst_51 = arith.constant 1.000000e+00 : f32
    %189 = vector.broadcast %cst_51 : f32 to vector<8x128xf32>
    %190 = arith.addf %189, %188 : vector<8x128xf32>
    %191 = arith.divf %189, %190 : vector<8x128xf32>
    %192 = arith.mulf %183, %157 : vector<8x128xf32>
    %193 = arith.mulf %177, %185 : vector<8x128xf32>
    %194 = arith.addf %192, %193 : vector<8x128xf32>
    %195 = math.tanh %194 : vector<8x128xf32>
    %196 = arith.mulf %191, %195 : vector<8x128xf32>
    %197 = vector.extract_strided_slice %171 {offsets = [0, 0], sizes = [8, 128], strides = [1, 1]} : vector<8x512xf32> to vector<8x128xf32>
    %198 = arith.negf %197 : vector<8x128xf32>
    %199 = math.exp %198 : vector<8x128xf32>
    %cst_52 = arith.constant 1.000000e+00 : f32
    %200 = vector.broadcast %cst_52 : f32 to vector<8x128xf32>
    %201 = arith.addf %200, %199 : vector<8x128xf32>
    %202 = arith.divf %200, %201 : vector<8x128xf32>
    %203 = vector.extract_strided_slice %171 {offsets = [0, 128], sizes = [8, 128], strides = [1, 1]} : vector<8x512xf32> to vector<8x128xf32>
    %204 = arith.negf %203 : vector<8x128xf32>
    %205 = math.exp %204 : vector<8x128xf32>
    %cst_53 = arith.constant 1.000000e+00 : f32
    %206 = vector.broadcast %cst_53 : f32 to vector<8x128xf32>
    %207 = arith.addf %206, %205 : vector<8x128xf32>
    %208 = arith.divf %206, %207 : vector<8x128xf32>
    %209 = vector.extract_strided_slice %171 {offsets = [0, 256], sizes = [8, 128], strides = [1, 1]} : vector<8x512xf32> to vector<8x128xf32>
    %210 = math.tanh %209 : vector<8x128xf32>
    %211 = vector.extract_strided_slice %171 {offsets = [0, 384], sizes = [8, 128], strides = [1, 1]} : vector<8x512xf32> to vector<8x128xf32>
    %212 = arith.negf %211 : vector<8x128xf32>
    %213 = math.exp %212 : vector<8x128xf32>
    %cst_54 = arith.constant 1.000000e+00 : f32
    %214 = vector.broadcast %cst_54 : f32 to vector<8x128xf32>
    %215 = arith.addf %214, %213 : vector<8x128xf32>
    %216 = arith.divf %214, %215 : vector<8x128xf32>
    %217 = arith.mulf %208, %163 : vector<8x128xf32>
    %218 = arith.mulf %202, %210 : vector<8x128xf32>
    %219 = arith.addf %217, %218 : vector<8x128xf32>
    %220 = math.tanh %219 : vector<8x128xf32>
    %221 = arith.mulf %216, %220 : vector<8x128xf32>
    %c2_i32 = arith.constant 2 : i32
    %222 = vector.broadcast %c2_i32 : i32 to vector<8x1xi32>
    %223 = arith.cmpi sgt, %14, %222 : vector<8x1xi32>
    %c5_i32 = arith.constant 5 : i32
    %224 = vector.broadcast %c5_i32 : i32 to vector<8x1xi32>
    %225 = arith.cmpi sgt, %14, %224 : vector<8x1xi32>
    %226 = vector.shape_cast %223 : vector<8x1xi1> to vector<8x1xi1>
    %227 = vector.broadcast %226 : vector<8x1xi1> to vector<8x128xi1>
    %228 = arith.select %227, %196, %154 : vector<8x128xi1>, vector<8x128xf32>
    %229 = vector.shape_cast %223 : vector<8x1xi1> to vector<8x1xi1>
    %230 = vector.broadcast %229 : vector<8x1xi1> to vector<8x128xi1>
    %231 = arith.select %230, %194, %157 : vector<8x128xi1>, vector<8x128xf32>
    %232 = vector.shape_cast %225 : vector<8x1xi1> to vector<8x1xi1>
    %233 = vector.broadcast %232 : vector<8x1xi1> to vector<8x128xi1>
    %234 = arith.select %233, %221, %160 : vector<8x128xi1>, vector<8x128xf32>
    %235 = vector.shape_cast %225 : vector<8x1xi1> to vector<8x1xi1>
    %236 = vector.broadcast %235 : vector<8x1xi1> to vector<8x128xi1>
    %237 = arith.select %236, %219, %163 : vector<8x128xi1>, vector<8x128xf32>
    %c24 = arith.constant 24 : index
    %c0_55 = arith.constant 0 : index
    %238 = vector.load %arg12[%c24, %c0_55] : memref<64x1024xf32, #tpu.memory_space<vmem>>, vector<8x512xf32>
    %c0_56 = arith.constant 0 : index
    %c0_57 = arith.constant 0 : index
    %239 = vector.load %arg5[%c0_56, %c0_57] : memref<128x512xf32, #tpu.memory_space<vmem>>, vector<128x512xf32>
    %cst_58 = arith.constant dense<0.000000e+00> : vector<8x512xf32>
    %240 = tpu.matmul %228, %239, %cst_58 {dimension_numbers = #tpu.dot_dimension_numbers<[1], [0], [0], [1], [0, 0, 1, 1], [], []>} : vector<8x128xf32>, vector<128x512xf32>, vector<8x512xf32> -> vector<8x512xf32>
    %241 = arith.addf %238, %240 : vector<8x512xf32>
    %c32 = arith.constant 32 : index
    %c512_59 = arith.constant 512 : index
    %242 = vector.load %arg12[%c32, %c512_59] : memref<64x1024xf32, #tpu.memory_space<vmem>>, vector<8x512xf32>
    %c0_60 = arith.constant 0 : index
    %c0_61 = arith.constant 0 : index
    %243 = vector.load %arg6[%c0_60, %c0_61] : memref<128x512xf32, #tpu.memory_space<vmem>>, vector<128x512xf32>
    %cst_62 = arith.constant dense<0.000000e+00> : vector<8x512xf32>
    %244 = tpu.matmul %234, %243, %cst_62 {dimension_numbers = #tpu.dot_dimension_numbers<[1], [0], [0], [1], [0, 0, 1, 1], [], []>} : vector<8x128xf32>, vector<128x512xf32>, vector<8x512xf32> -> vector<8x512xf32>
    %245 = arith.addf %242, %244 : vector<8x512xf32>
    %246 = vector.extract_strided_slice %241 {offsets = [0, 0], sizes = [8, 128], strides = [1, 1]} : vector<8x512xf32> to vector<8x128xf32>
    %247 = arith.negf %246 : vector<8x128xf32>
    %248 = math.exp %247 : vector<8x128xf32>
    %cst_63 = arith.constant 1.000000e+00 : f32
    %249 = vector.broadcast %cst_63 : f32 to vector<8x128xf32>
    %250 = arith.addf %249, %248 : vector<8x128xf32>
    %251 = arith.divf %249, %250 : vector<8x128xf32>
    %252 = vector.extract_strided_slice %241 {offsets = [0, 128], sizes = [8, 128], strides = [1, 1]} : vector<8x512xf32> to vector<8x128xf32>
    %253 = arith.negf %252 : vector<8x128xf32>
    %254 = math.exp %253 : vector<8x128xf32>
    %cst_64 = arith.constant 1.000000e+00 : f32
    %255 = vector.broadcast %cst_64 : f32 to vector<8x128xf32>
    %256 = arith.addf %255, %254 : vector<8x128xf32>
    %257 = arith.divf %255, %256 : vector<8x128xf32>
    %258 = vector.extract_strided_slice %241 {offsets = [0, 256], sizes = [8, 128], strides = [1, 1]} : vector<8x512xf32> to vector<8x128xf32>
    %259 = math.tanh %258 : vector<8x128xf32>
    %260 = vector.extract_strided_slice %241 {offsets = [0, 384], sizes = [8, 128], strides = [1, 1]} : vector<8x512xf32> to vector<8x128xf32>
    %261 = arith.negf %260 : vector<8x128xf32>
    %262 = math.exp %261 : vector<8x128xf32>
    %cst_65 = arith.constant 1.000000e+00 : f32
    %263 = vector.broadcast %cst_65 : f32 to vector<8x128xf32>
    %264 = arith.addf %263, %262 : vector<8x128xf32>
    %265 = arith.divf %263, %264 : vector<8x128xf32>
    %266 = arith.mulf %257, %231 : vector<8x128xf32>
    %267 = arith.mulf %251, %259 : vector<8x128xf32>
    %268 = arith.addf %266, %267 : vector<8x128xf32>
    %269 = math.tanh %268 : vector<8x128xf32>
    %270 = arith.mulf %265, %269 : vector<8x128xf32>
    %271 = vector.extract_strided_slice %245 {offsets = [0, 0], sizes = [8, 128], strides = [1, 1]} : vector<8x512xf32> to vector<8x128xf32>
    %272 = arith.negf %271 : vector<8x128xf32>
    %273 = math.exp %272 : vector<8x128xf32>
    %cst_66 = arith.constant 1.000000e+00 : f32
    %274 = vector.broadcast %cst_66 : f32 to vector<8x128xf32>
    %275 = arith.addf %274, %273 : vector<8x128xf32>
    %276 = arith.divf %274, %275 : vector<8x128xf32>
    %277 = vector.extract_strided_slice %245 {offsets = [0, 128], sizes = [8, 128], strides = [1, 1]} : vector<8x512xf32> to vector<8x128xf32>
    %278 = arith.negf %277 : vector<8x128xf32>
    %279 = math.exp %278 : vector<8x128xf32>
    %cst_67 = arith.constant 1.000000e+00 : f32
    %280 = vector.broadcast %cst_67 : f32 to vector<8x128xf32>
    %281 = arith.addf %280, %279 : vector<8x128xf32>
    %282 = arith.divf %280, %281 : vector<8x128xf32>
    %283 = vector.extract_strided_slice %245 {offsets = [0, 256], sizes = [8, 128], strides = [1, 1]} : vector<8x512xf32> to vector<8x128xf32>
    %284 = math.tanh %283 : vector<8x128xf32>
    %285 = vector.extract_strided_slice %245 {offsets = [0, 384], sizes = [8, 128], strides = [1, 1]} : vector<8x512xf32> to vector<8x128xf32>
    %286 = arith.negf %285 : vector<8x128xf32>
    %287 = math.exp %286 : vector<8x128xf32>
    %cst_68 = arith.constant 1.000000e+00 : f32
    %288 = vector.broadcast %cst_68 : f32 to vector<8x128xf32>
    %289 = arith.addf %288, %287 : vector<8x128xf32>
    %290 = arith.divf %288, %289 : vector<8x128xf32>
    %291 = arith.mulf %282, %237 : vector<8x128xf32>
    %292 = arith.mulf %276, %284 : vector<8x128xf32>
    %293 = arith.addf %291, %292 : vector<8x128xf32>
    %294 = math.tanh %293 : vector<8x128xf32>
    %295 = arith.mulf %290, %294 : vector<8x128xf32>
    %c3_i32 = arith.constant 3 : i32
    %296 = vector.broadcast %c3_i32 : i32 to vector<8x1xi32>
    %297 = arith.cmpi sgt, %14, %296 : vector<8x1xi32>
    %c4_i32 = arith.constant 4 : i32
    %298 = vector.broadcast %c4_i32 : i32 to vector<8x1xi32>
    %299 = arith.cmpi sgt, %14, %298 : vector<8x1xi32>
    %300 = vector.shape_cast %297 : vector<8x1xi1> to vector<8x1xi1>
    %301 = vector.broadcast %300 : vector<8x1xi1> to vector<8x128xi1>
    %302 = arith.select %301, %270, %228 : vector<8x128xi1>, vector<8x128xf32>
    %303 = vector.shape_cast %297 : vector<8x1xi1> to vector<8x1xi1>
    %304 = vector.broadcast %303 : vector<8x1xi1> to vector<8x128xi1>
    %305 = arith.select %304, %268, %231 : vector<8x128xi1>, vector<8x128xf32>
    %306 = vector.shape_cast %299 : vector<8x1xi1> to vector<8x1xi1>
    %307 = vector.broadcast %306 : vector<8x1xi1> to vector<8x128xi1>
    %308 = arith.select %307, %295, %234 : vector<8x128xi1>, vector<8x128xf32>
    %309 = vector.shape_cast %299 : vector<8x1xi1> to vector<8x1xi1>
    %310 = vector.broadcast %309 : vector<8x1xi1> to vector<8x128xi1>
    %311 = arith.select %310, %293, %237 : vector<8x128xi1>, vector<8x128xf32>
    %c32_69 = arith.constant 32 : index
    %c0_70 = arith.constant 0 : index
    %312 = vector.load %arg12[%c32_69, %c0_70] : memref<64x1024xf32, #tpu.memory_space<vmem>>, vector<8x512xf32>
    %c0_71 = arith.constant 0 : index
    %c0_72 = arith.constant 0 : index
    %313 = vector.load %arg5[%c0_71, %c0_72] : memref<128x512xf32, #tpu.memory_space<vmem>>, vector<128x512xf32>
    %cst_73 = arith.constant dense<0.000000e+00> : vector<8x512xf32>
    %314 = tpu.matmul %302, %313, %cst_73 {dimension_numbers = #tpu.dot_dimension_numbers<[1], [0], [0], [1], [0, 0, 1, 1], [], []>} : vector<8x128xf32>, vector<128x512xf32>, vector<8x512xf32> -> vector<8x512xf32>
    %315 = arith.addf %312, %314 : vector<8x512xf32>
    %c24_74 = arith.constant 24 : index
    %c512_75 = arith.constant 512 : index
    %316 = vector.load %arg12[%c24_74, %c512_75] : memref<64x1024xf32, #tpu.memory_space<vmem>>, vector<8x512xf32>
    %c0_76 = arith.constant 0 : index
    %c0_77 = arith.constant 0 : index
    %317 = vector.load %arg6[%c0_76, %c0_77] : memref<128x512xf32, #tpu.memory_space<vmem>>, vector<128x512xf32>
    %cst_78 = arith.constant dense<0.000000e+00> : vector<8x512xf32>
    %318 = tpu.matmul %308, %317, %cst_78 {dimension_numbers = #tpu.dot_dimension_numbers<[1], [0], [0], [1], [0, 0, 1, 1], [], []>} : vector<8x128xf32>, vector<128x512xf32>, vector<8x512xf32> -> vector<8x512xf32>
    %319 = arith.addf %316, %318 : vector<8x512xf32>
    %320 = vector.extract_strided_slice %315 {offsets = [0, 0], sizes = [8, 128], strides = [1, 1]} : vector<8x512xf32> to vector<8x128xf32>
    %321 = arith.negf %320 : vector<8x128xf32>
    %322 = math.exp %321 : vector<8x128xf32>
    %cst_79 = arith.constant 1.000000e+00 : f32
    %323 = vector.broadcast %cst_79 : f32 to vector<8x128xf32>
    %324 = arith.addf %323, %322 : vector<8x128xf32>
    %325 = arith.divf %323, %324 : vector<8x128xf32>
    %326 = vector.extract_strided_slice %315 {offsets = [0, 128], sizes = [8, 128], strides = [1, 1]} : vector<8x512xf32> to vector<8x128xf32>
    %327 = arith.negf %326 : vector<8x128xf32>
    %328 = math.exp %327 : vector<8x128xf32>
    %cst_80 = arith.constant 1.000000e+00 : f32
    %329 = vector.broadcast %cst_80 : f32 to vector<8x128xf32>
    %330 = arith.addf %329, %328 : vector<8x128xf32>
    %331 = arith.divf %329, %330 : vector<8x128xf32>
    %332 = vector.extract_strided_slice %315 {offsets = [0, 256], sizes = [8, 128], strides = [1, 1]} : vector<8x512xf32> to vector<8x128xf32>
    %333 = math.tanh %332 : vector<8x128xf32>
    %334 = vector.extract_strided_slice %315 {offsets = [0, 384], sizes = [8, 128], strides = [1, 1]} : vector<8x512xf32> to vector<8x128xf32>
    %335 = arith.negf %334 : vector<8x128xf32>
    %336 = math.exp %335 : vector<8x128xf32>
    %cst_81 = arith.constant 1.000000e+00 : f32
    %337 = vector.broadcast %cst_81 : f32 to vector<8x128xf32>
    %338 = arith.addf %337, %336 : vector<8x128xf32>
    %339 = arith.divf %337, %338 : vector<8x128xf32>
    %340 = arith.mulf %331, %305 : vector<8x128xf32>
    %341 = arith.mulf %325, %333 : vector<8x128xf32>
    %342 = arith.addf %340, %341 : vector<8x128xf32>
    %343 = math.tanh %342 : vector<8x128xf32>
    %344 = arith.mulf %339, %343 : vector<8x128xf32>
    %345 = vector.extract_strided_slice %319 {offsets = [0, 0], sizes = [8, 128], strides = [1, 1]} : vector<8x512xf32> to vector<8x128xf32>
    %346 = arith.negf %345 : vector<8x128xf32>
    %347 = math.exp %346 : vector<8x128xf32>
    %cst_82 = arith.constant 1.000000e+00 : f32
    %348 = vector.broadcast %cst_82 : f32 to vector<8x128xf32>
    %349 = arith.addf %348, %347 : vector<8x128xf32>
    %350 = arith.divf %348, %349 : vector<8x128xf32>
    %351 = vector.extract_strided_slice %319 {offsets = [0, 128], sizes = [8, 128], strides = [1, 1]} : vector<8x512xf32> to vector<8x128xf32>
    %352 = arith.negf %351 : vector<8x128xf32>
    %353 = math.exp %352 : vector<8x128xf32>
    %cst_83 = arith.constant 1.000000e+00 : f32
    %354 = vector.broadcast %cst_83 : f32 to vector<8x128xf32>
    %355 = arith.addf %354, %353 : vector<8x128xf32>
    %356 = arith.divf %354, %355 : vector<8x128xf32>
    %357 = vector.extract_strided_slice %319 {offsets = [0, 256], sizes = [8, 128], strides = [1, 1]} : vector<8x512xf32> to vector<8x128xf32>
    %358 = math.tanh %357 : vector<8x128xf32>
    %359 = vector.extract_strided_slice %319 {offsets = [0, 384], sizes = [8, 128], strides = [1, 1]} : vector<8x512xf32> to vector<8x128xf32>
    %360 = arith.negf %359 : vector<8x128xf32>
    %361 = math.exp %360 : vector<8x128xf32>
    %cst_84 = arith.constant 1.000000e+00 : f32
    %362 = vector.broadcast %cst_84 : f32 to vector<8x128xf32>
    %363 = arith.addf %362, %361 : vector<8x128xf32>
    %364 = arith.divf %362, %363 : vector<8x128xf32>
    %365 = arith.mulf %356, %311 : vector<8x128xf32>
    %366 = arith.mulf %350, %358 : vector<8x128xf32>
    %367 = arith.addf %365, %366 : vector<8x128xf32>
    %368 = math.tanh %367 : vector<8x128xf32>
    %369 = arith.mulf %364, %368 : vector<8x128xf32>
    %c4_i32_85 = arith.constant 4 : i32
    %370 = vector.broadcast %c4_i32_85 : i32 to vector<8x1xi32>
    %371 = arith.cmpi sgt, %14, %370 : vector<8x1xi32>
    %c3_i32_86 = arith.constant 3 : i32
    %372 = vector.broadcast %c3_i32_86 : i32 to vector<8x1xi32>
    %373 = arith.cmpi sgt, %14, %372 : vector<8x1xi32>
    %374 = vector.shape_cast %371 : vector<8x1xi1> to vector<8x1xi1>
    %375 = vector.broadcast %374 : vector<8x1xi1> to vector<8x128xi1>
    %376 = arith.select %375, %344, %302 : vector<8x128xi1>, vector<8x128xf32>
    %377 = vector.shape_cast %371 : vector<8x1xi1> to vector<8x1xi1>
    %378 = vector.broadcast %377 : vector<8x1xi1> to vector<8x128xi1>
    %379 = arith.select %378, %342, %305 : vector<8x128xi1>, vector<8x128xf32>
    %380 = vector.shape_cast %373 : vector<8x1xi1> to vector<8x1xi1>
    %381 = vector.broadcast %380 : vector<8x1xi1> to vector<8x128xi1>
    %382 = arith.select %381, %369, %308 : vector<8x128xi1>, vector<8x128xf32>
    %383 = vector.shape_cast %373 : vector<8x1xi1> to vector<8x1xi1>
    %384 = vector.broadcast %383 : vector<8x1xi1> to vector<8x128xi1>
    %385 = arith.select %384, %367, %311 : vector<8x128xi1>, vector<8x128xf32>
    %c40_87 = arith.constant 40 : index
    %c0_88 = arith.constant 0 : index
    %386 = vector.load %arg12[%c40_87, %c0_88] : memref<64x1024xf32, #tpu.memory_space<vmem>>, vector<8x512xf32>
    %c0_89 = arith.constant 0 : index
    %c0_90 = arith.constant 0 : index
    %387 = vector.load %arg5[%c0_89, %c0_90] : memref<128x512xf32, #tpu.memory_space<vmem>>, vector<128x512xf32>
    %cst_91 = arith.constant dense<0.000000e+00> : vector<8x512xf32>
    %388 = tpu.matmul %376, %387, %cst_91 {dimension_numbers = #tpu.dot_dimension_numbers<[1], [0], [0], [1], [0, 0, 1, 1], [], []>} : vector<8x128xf32>, vector<128x512xf32>, vector<8x512xf32> -> vector<8x512xf32>
    %389 = arith.addf %386, %388 : vector<8x512xf32>
    %c16_92 = arith.constant 16 : index
    %c512_93 = arith.constant 512 : index
    %390 = vector.load %arg12[%c16_92, %c512_93] : memref<64x1024xf32, #tpu.memory_space<vmem>>, vector<8x512xf32>
    %c0_94 = arith.constant 0 : index
    %c0_95 = arith.constant 0 : index
    %391 = vector.load %arg6[%c0_94, %c0_95] : memref<128x512xf32, #tpu.memory_space<vmem>>, vector<128x512xf32>
    %cst_96 = arith.constant dense<0.000000e+00> : vector<8x512xf32>
    %392 = tpu.matmul %382, %391, %cst_96 {dimension_numbers = #tpu.dot_dimension_numbers<[1], [0], [0], [1], [0, 0, 1, 1], [], []>} : vector<8x128xf32>, vector<128x512xf32>, vector<8x512xf32> -> vector<8x512xf32>
    %393 = arith.addf %390, %392 : vector<8x512xf32>
    %394 = vector.extract_strided_slice %389 {offsets = [0, 0], sizes = [8, 128], strides = [1, 1]} : vector<8x512xf32> to vector<8x128xf32>
    %395 = arith.negf %394 : vector<8x128xf32>
    %396 = math.exp %395 : vector<8x128xf32>
    %cst_97 = arith.constant 1.000000e+00 : f32
    %397 = vector.broadcast %cst_97 : f32 to vector<8x128xf32>
    %398 = arith.addf %397, %396 : vector<8x128xf32>
    %399 = arith.divf %397, %398 : vector<8x128xf32>
    %400 = vector.extract_strided_slice %389 {offsets = [0, 128], sizes = [8, 128], strides = [1, 1]} : vector<8x512xf32> to vector<8x128xf32>
    %401 = arith.negf %400 : vector<8x128xf32>
    %402 = math.exp %401 : vector<8x128xf32>
    %cst_98 = arith.constant 1.000000e+00 : f32
    %403 = vector.broadcast %cst_98 : f32 to vector<8x128xf32>
    %404 = arith.addf %403, %402 : vector<8x128xf32>
    %405 = arith.divf %403, %404 : vector<8x128xf32>
    %406 = vector.extract_strided_slice %389 {offsets = [0, 256], sizes = [8, 128], strides = [1, 1]} : vector<8x512xf32> to vector<8x128xf32>
    %407 = math.tanh %406 : vector<8x128xf32>
    %408 = vector.extract_strided_slice %389 {offsets = [0, 384], sizes = [8, 128], strides = [1, 1]} : vector<8x512xf32> to vector<8x128xf32>
    %409 = arith.negf %408 : vector<8x128xf32>
    %410 = math.exp %409 : vector<8x128xf32>
    %cst_99 = arith.constant 1.000000e+00 : f32
    %411 = vector.broadcast %cst_99 : f32 to vector<8x128xf32>
    %412 = arith.addf %411, %410 : vector<8x128xf32>
    %413 = arith.divf %411, %412 : vector<8x128xf32>
    %414 = arith.mulf %405, %379 : vector<8x128xf32>
    %415 = arith.mulf %399, %407 : vector<8x128xf32>
    %416 = arith.addf %414, %415 : vector<8x128xf32>
    %417 = math.tanh %416 : vector<8x128xf32>
    %418 = arith.mulf %413, %417 : vector<8x128xf32>
    %419 = vector.extract_strided_slice %393 {offsets = [0, 0], sizes = [8, 128], strides = [1, 1]} : vector<8x512xf32> to vector<8x128xf32>
    %420 = arith.negf %419 : vector<8x128xf32>
    %421 = math.exp %420 : vector<8x128xf32>
    %cst_100 = arith.constant 1.000000e+00 : f32
    %422 = vector.broadcast %cst_100 : f32 to vector<8x128xf32>
    %423 = arith.addf %422, %421 : vector<8x128xf32>
    %424 = arith.divf %422, %423 : vector<8x128xf32>
    %425 = vector.extract_strided_slice %393 {offsets = [0, 128], sizes = [8, 128], strides = [1, 1]} : vector<8x512xf32> to vector<8x128xf32>
    %426 = arith.negf %425 : vector<8x128xf32>
    %427 = math.exp %426 : vector<8x128xf32>
    %cst_101 = arith.constant 1.000000e+00 : f32
    %428 = vector.broadcast %cst_101 : f32 to vector<8x128xf32>
    %429 = arith.addf %428, %427 : vector<8x128xf32>
    %430 = arith.divf %428, %429 : vector<8x128xf32>
    %431 = vector.extract_strided_slice %393 {offsets = [0, 256], sizes = [8, 128], strides = [1, 1]} : vector<8x512xf32> to vector<8x128xf32>
    %432 = math.tanh %431 : vector<8x128xf32>
    %433 = vector.extract_strided_slice %393 {offsets = [0, 384], sizes = [8, 128], strides = [1, 1]} : vector<8x512xf32> to vector<8x128xf32>
    %434 = arith.negf %433 : vector<8x128xf32>
    %435 = math.exp %434 : vector<8x128xf32>
    %cst_102 = arith.constant 1.000000e+00 : f32
    %436 = vector.broadcast %cst_102 : f32 to vector<8x128xf32>
    %437 = arith.addf %436, %435 : vector<8x128xf32>
    %438 = arith.divf %436, %437 : vector<8x128xf32>
    %439 = arith.mulf %430, %385 : vector<8x128xf32>
    %440 = arith.mulf %424, %432 : vector<8x128xf32>
    %441 = arith.addf %439, %440 : vector<8x128xf32>
    %442 = math.tanh %441 : vector<8x128xf32>
    %443 = arith.mulf %438, %442 : vector<8x128xf32>
    %c5_i32_103 = arith.constant 5 : i32
    %444 = vector.broadcast %c5_i32_103 : i32 to vector<8x1xi32>
    %445 = arith.cmpi sgt, %14, %444 : vector<8x1xi32>
    %c2_i32_104 = arith.constant 2 : i32
    %446 = vector.broadcast %c2_i32_104 : i32 to vector<8x1xi32>
    %447 = arith.cmpi sgt, %14, %446 : vector<8x1xi32>
    %448 = vector.shape_cast %445 : vector<8x1xi1> to vector<8x1xi1>
    %449 = vector.broadcast %448 : vector<8x1xi1> to vector<8x128xi1>
    %450 = arith.select %449, %418, %376 : vector<8x128xi1>, vector<8x128xf32>
    %451 = vector.shape_cast %445 : vector<8x1xi1> to vector<8x1xi1>
    %452 = vector.broadcast %451 : vector<8x1xi1> to vector<8x128xi1>
    %453 = arith.select %452, %416, %379 : vector<8x128xi1>, vector<8x128xf32>
    %454 = vector.shape_cast %447 : vector<8x1xi1> to vector<8x1xi1>
    %455 = vector.broadcast %454 : vector<8x1xi1> to vector<8x128xi1>
    %456 = arith.select %455, %443, %382 : vector<8x128xi1>, vector<8x128xf32>
    %457 = vector.shape_cast %447 : vector<8x1xi1> to vector<8x1xi1>
    %458 = vector.broadcast %457 : vector<8x1xi1> to vector<8x128xi1>
    %459 = arith.select %458, %441, %385 : vector<8x128xi1>, vector<8x128xf32>
    %c48_105 = arith.constant 48 : index
    %c0_106 = arith.constant 0 : index
    %460 = vector.load %arg12[%c48_105, %c0_106] : memref<64x1024xf32, #tpu.memory_space<vmem>>, vector<8x512xf32>
    %c0_107 = arith.constant 0 : index
    %c0_108 = arith.constant 0 : index
    %461 = vector.load %arg5[%c0_107, %c0_108] : memref<128x512xf32, #tpu.memory_space<vmem>>, vector<128x512xf32>
    %cst_109 = arith.constant dense<0.000000e+00> : vector<8x512xf32>
    %462 = tpu.matmul %450, %461, %cst_109 {dimension_numbers = #tpu.dot_dimension_numbers<[1], [0], [0], [1], [0, 0, 1, 1], [], []>} : vector<8x128xf32>, vector<128x512xf32>, vector<8x512xf32> -> vector<8x512xf32>
    %463 = arith.addf %460, %462 : vector<8x512xf32>
    %c8_110 = arith.constant 8 : index
    %c512_111 = arith.constant 512 : index
    %464 = vector.load %arg12[%c8_110, %c512_111] : memref<64x1024xf32, #tpu.memory_space<vmem>>, vector<8x512xf32>
    %c0_112 = arith.constant 0 : index
    %c0_113 = arith.constant 0 : index
    %465 = vector.load %arg6[%c0_112, %c0_113] : memref<128x512xf32, #tpu.memory_space<vmem>>, vector<128x512xf32>
    %cst_114 = arith.constant dense<0.000000e+00> : vector<8x512xf32>
    %466 = tpu.matmul %456, %465, %cst_114 {dimension_numbers = #tpu.dot_dimension_numbers<[1], [0], [0], [1], [0, 0, 1, 1], [], []>} : vector<8x128xf32>, vector<128x512xf32>, vector<8x512xf32> -> vector<8x512xf32>
    %467 = arith.addf %464, %466 : vector<8x512xf32>
    %468 = vector.extract_strided_slice %463 {offsets = [0, 0], sizes = [8, 128], strides = [1, 1]} : vector<8x512xf32> to vector<8x128xf32>
    %469 = arith.negf %468 : vector<8x128xf32>
    %470 = math.exp %469 : vector<8x128xf32>
    %cst_115 = arith.constant 1.000000e+00 : f32
    %471 = vector.broadcast %cst_115 : f32 to vector<8x128xf32>
    %472 = arith.addf %471, %470 : vector<8x128xf32>
    %473 = arith.divf %471, %472 : vector<8x128xf32>
    %474 = vector.extract_strided_slice %463 {offsets = [0, 128], sizes = [8, 128], strides = [1, 1]} : vector<8x512xf32> to vector<8x128xf32>
    %475 = arith.negf %474 : vector<8x128xf32>
    %476 = math.exp %475 : vector<8x128xf32>
    %cst_116 = arith.constant 1.000000e+00 : f32
    %477 = vector.broadcast %cst_116 : f32 to vector<8x128xf32>
    %478 = arith.addf %477, %476 : vector<8x128xf32>
    %479 = arith.divf %477, %478 : vector<8x128xf32>
    %480 = vector.extract_strided_slice %463 {offsets = [0, 256], sizes = [8, 128], strides = [1, 1]} : vector<8x512xf32> to vector<8x128xf32>
    %481 = math.tanh %480 : vector<8x128xf32>
    %482 = vector.extract_strided_slice %463 {offsets = [0, 384], sizes = [8, 128], strides = [1, 1]} : vector<8x512xf32> to vector<8x128xf32>
    %483 = arith.negf %482 : vector<8x128xf32>
    %484 = math.exp %483 : vector<8x128xf32>
    %cst_117 = arith.constant 1.000000e+00 : f32
    %485 = vector.broadcast %cst_117 : f32 to vector<8x128xf32>
    %486 = arith.addf %485, %484 : vector<8x128xf32>
    %487 = arith.divf %485, %486 : vector<8x128xf32>
    %488 = arith.mulf %479, %453 : vector<8x128xf32>
    %489 = arith.mulf %473, %481 : vector<8x128xf32>
    %490 = arith.addf %488, %489 : vector<8x128xf32>
    %491 = math.tanh %490 : vector<8x128xf32>
    %492 = arith.mulf %487, %491 : vector<8x128xf32>
    %493 = vector.extract_strided_slice %467 {offsets = [0, 0], sizes = [8, 128], strides = [1, 1]} : vector<8x512xf32> to vector<8x128xf32>
    %494 = arith.negf %493 : vector<8x128xf32>
    %495 = math.exp %494 : vector<8x128xf32>
    %cst_118 = arith.constant 1.000000e+00 : f32
    %496 = vector.broadcast %cst_118 : f32 to vector<8x128xf32>
    %497 = arith.addf %496, %495 : vector<8x128xf32>
    %498 = arith.divf %496, %497 : vector<8x128xf32>
    %499 = vector.extract_strided_slice %467 {offsets = [0, 128], sizes = [8, 128], strides = [1, 1]} : vector<8x512xf32> to vector<8x128xf32>
    %500 = arith.negf %499 : vector<8x128xf32>
    %501 = math.exp %500 : vector<8x128xf32>
    %cst_119 = arith.constant 1.000000e+00 : f32
    %502 = vector.broadcast %cst_119 : f32 to vector<8x128xf32>
    %503 = arith.addf %502, %501 : vector<8x128xf32>
    %504 = arith.divf %502, %503 : vector<8x128xf32>
    %505 = vector.extract_strided_slice %467 {offsets = [0, 256], sizes = [8, 128], strides = [1, 1]} : vector<8x512xf32> to vector<8x128xf32>
    %506 = math.tanh %505 : vector<8x128xf32>
    %507 = vector.extract_strided_slice %467 {offsets = [0, 384], sizes = [8, 128], strides = [1, 1]} : vector<8x512xf32> to vector<8x128xf32>
    %508 = arith.negf %507 : vector<8x128xf32>
    %509 = math.exp %508 : vector<8x128xf32>
    %cst_120 = arith.constant 1.000000e+00 : f32
    %510 = vector.broadcast %cst_120 : f32 to vector<8x128xf32>
    %511 = arith.addf %510, %509 : vector<8x128xf32>
    %512 = arith.divf %510, %511 : vector<8x128xf32>
    %513 = arith.mulf %504, %459 : vector<8x128xf32>
    %514 = arith.mulf %498, %506 : vector<8x128xf32>
    %515 = arith.addf %513, %514 : vector<8x128xf32>
    %516 = math.tanh %515 : vector<8x128xf32>
    %517 = arith.mulf %512, %516 : vector<8x128xf32>
    %c6_i32_121 = arith.constant 6 : i32
    %518 = vector.broadcast %c6_i32_121 : i32 to vector<8x1xi32>
    %519 = arith.cmpi sgt, %14, %518 : vector<8x1xi32>
    %c1_i32_122 = arith.constant 1 : i32
    %520 = vector.broadcast %c1_i32_122 : i32 to vector<8x1xi32>
    %521 = arith.cmpi sgt, %14, %520 : vector<8x1xi32>
    %522 = vector.shape_cast %519 : vector<8x1xi1> to vector<8x1xi1>
    %523 = vector.broadcast %522 : vector<8x1xi1> to vector<8x128xi1>
    %524 = arith.select %523, %492, %450 : vector<8x128xi1>, vector<8x128xf32>
    %525 = vector.shape_cast %519 : vector<8x1xi1> to vector<8x1xi1>
    %526 = vector.broadcast %525 : vector<8x1xi1> to vector<8x128xi1>
    %527 = arith.select %526, %490, %453 : vector<8x128xi1>, vector<8x128xf32>
    %528 = vector.shape_cast %521 : vector<8x1xi1> to vector<8x1xi1>
    %529 = vector.broadcast %528 : vector<8x1xi1> to vector<8x128xi1>
    %530 = arith.select %529, %517, %456 : vector<8x128xi1>, vector<8x128xf32>
    %531 = vector.shape_cast %521 : vector<8x1xi1> to vector<8x1xi1>
    %532 = vector.broadcast %531 : vector<8x1xi1> to vector<8x128xi1>
    %533 = arith.select %532, %515, %459 : vector<8x128xi1>, vector<8x128xf32>
    %c56_123 = arith.constant 56 : index
    %c0_124 = arith.constant 0 : index
    %534 = vector.load %arg12[%c56_123, %c0_124] : memref<64x1024xf32, #tpu.memory_space<vmem>>, vector<8x512xf32>
    %c0_125 = arith.constant 0 : index
    %c0_126 = arith.constant 0 : index
    %535 = vector.load %arg5[%c0_125, %c0_126] : memref<128x512xf32, #tpu.memory_space<vmem>>, vector<128x512xf32>
    %cst_127 = arith.constant dense<0.000000e+00> : vector<8x512xf32>
    %536 = tpu.matmul %524, %535, %cst_127 {dimension_numbers = #tpu.dot_dimension_numbers<[1], [0], [0], [1], [0, 0, 1, 1], [], []>} : vector<8x128xf32>, vector<128x512xf32>, vector<8x512xf32> -> vector<8x512xf32>
    %537 = arith.addf %534, %536 : vector<8x512xf32>
    %c0_128 = arith.constant 0 : index
    %c512_129 = arith.constant 512 : index
    %538 = vector.load %arg12[%c0_128, %c512_129] : memref<64x1024xf32, #tpu.memory_space<vmem>>, vector<8x512xf32>
    %c0_130 = arith.constant 0 : index
    %c0_131 = arith.constant 0 : index
    %539 = vector.load %arg6[%c0_130, %c0_131] : memref<128x512xf32, #tpu.memory_space<vmem>>, vector<128x512xf32>
    %cst_132 = arith.constant dense<0.000000e+00> : vector<8x512xf32>
    %540 = tpu.matmul %530, %539, %cst_132 {dimension_numbers = #tpu.dot_dimension_numbers<[1], [0], [0], [1], [0, 0, 1, 1], [], []>} : vector<8x128xf32>, vector<128x512xf32>, vector<8x512xf32> -> vector<8x512xf32>
    %541 = arith.addf %538, %540 : vector<8x512xf32>
    %542 = vector.extract_strided_slice %537 {offsets = [0, 0], sizes = [8, 128], strides = [1, 1]} : vector<8x512xf32> to vector<8x128xf32>
    %543 = arith.negf %542 : vector<8x128xf32>
    %544 = math.exp %543 : vector<8x128xf32>
    %cst_133 = arith.constant 1.000000e+00 : f32
    %545 = vector.broadcast %cst_133 : f32 to vector<8x128xf32>
    %546 = arith.addf %545, %544 : vector<8x128xf32>
    %547 = arith.divf %545, %546 : vector<8x128xf32>
    %548 = vector.extract_strided_slice %537 {offsets = [0, 128], sizes = [8, 128], strides = [1, 1]} : vector<8x512xf32> to vector<8x128xf32>
    %549 = arith.negf %548 : vector<8x128xf32>
    %550 = math.exp %549 : vector<8x128xf32>
    %cst_134 = arith.constant 1.000000e+00 : f32
    %551 = vector.broadcast %cst_134 : f32 to vector<8x128xf32>
    %552 = arith.addf %551, %550 : vector<8x128xf32>
    %553 = arith.divf %551, %552 : vector<8x128xf32>
    %554 = vector.extract_strided_slice %537 {offsets = [0, 256], sizes = [8, 128], strides = [1, 1]} : vector<8x512xf32> to vector<8x128xf32>
    %555 = math.tanh %554 : vector<8x128xf32>
    %556 = vector.extract_strided_slice %537 {offsets = [0, 384], sizes = [8, 128], strides = [1, 1]} : vector<8x512xf32> to vector<8x128xf32>
    %557 = arith.negf %556 : vector<8x128xf32>
    %558 = math.exp %557 : vector<8x128xf32>
    %cst_135 = arith.constant 1.000000e+00 : f32
    %559 = vector.broadcast %cst_135 : f32 to vector<8x128xf32>
    %560 = arith.addf %559, %558 : vector<8x128xf32>
    %561 = arith.divf %559, %560 : vector<8x128xf32>
    %562 = arith.mulf %553, %527 : vector<8x128xf32>
    %563 = arith.mulf %547, %555 : vector<8x128xf32>
    %564 = arith.addf %562, %563 : vector<8x128xf32>
    %565 = math.tanh %564 : vector<8x128xf32>
    %566 = arith.mulf %561, %565 : vector<8x128xf32>
    %567 = vector.extract_strided_slice %541 {offsets = [0, 0], sizes = [8, 128], strides = [1, 1]} : vector<8x512xf32> to vector<8x128xf32>
    %568 = arith.negf %567 : vector<8x128xf32>
    %569 = math.exp %568 : vector<8x128xf32>
    %cst_136 = arith.constant 1.000000e+00 : f32
    %570 = vector.broadcast %cst_136 : f32 to vector<8x128xf32>
    %571 = arith.addf %570, %569 : vector<8x128xf32>
    %572 = arith.divf %570, %571 : vector<8x128xf32>
    %573 = vector.extract_strided_slice %541 {offsets = [0, 128], sizes = [8, 128], strides = [1, 1]} : vector<8x512xf32> to vector<8x128xf32>
    %574 = arith.negf %573 : vector<8x128xf32>
    %575 = math.exp %574 : vector<8x128xf32>
    %cst_137 = arith.constant 1.000000e+00 : f32
    %576 = vector.broadcast %cst_137 : f32 to vector<8x128xf32>
    %577 = arith.addf %576, %575 : vector<8x128xf32>
    %578 = arith.divf %576, %577 : vector<8x128xf32>
    %579 = vector.extract_strided_slice %541 {offsets = [0, 256], sizes = [8, 128], strides = [1, 1]} : vector<8x512xf32> to vector<8x128xf32>
    %580 = math.tanh %579 : vector<8x128xf32>
    %581 = vector.extract_strided_slice %541 {offsets = [0, 384], sizes = [8, 128], strides = [1, 1]} : vector<8x512xf32> to vector<8x128xf32>
    %582 = arith.negf %581 : vector<8x128xf32>
    %583 = math.exp %582 : vector<8x128xf32>
    %cst_138 = arith.constant 1.000000e+00 : f32
    %584 = vector.broadcast %cst_138 : f32 to vector<8x128xf32>
    %585 = arith.addf %584, %583 : vector<8x128xf32>
    %586 = arith.divf %584, %585 : vector<8x128xf32>
    %587 = arith.mulf %578, %533 : vector<8x128xf32>
    %588 = arith.mulf %572, %580 : vector<8x128xf32>
    %589 = arith.addf %587, %588 : vector<8x128xf32>
    %590 = math.tanh %589 : vector<8x128xf32>
    %591 = arith.mulf %586, %590 : vector<8x128xf32>
    %c7_i32_139 = arith.constant 7 : i32
    %592 = vector.broadcast %c7_i32_139 : i32 to vector<8x1xi32>
    %593 = arith.cmpi sgt, %14, %592 : vector<8x1xi32>
    %c0_i32_140 = arith.constant 0 : i32
    %594 = vector.broadcast %c0_i32_140 : i32 to vector<8x1xi32>
    %595 = arith.cmpi sgt, %14, %594 : vector<8x1xi32>
    %596 = vector.shape_cast %593 : vector<8x1xi1> to vector<8x1xi1>
    %597 = vector.broadcast %596 : vector<8x1xi1> to vector<8x128xi1>
    %598 = arith.select %597, %566, %524 : vector<8x128xi1>, vector<8x128xf32>
    %599 = vector.shape_cast %595 : vector<8x1xi1> to vector<8x1xi1>
    %600 = vector.broadcast %599 : vector<8x1xi1> to vector<8x128xi1>
    %601 = arith.select %600, %591, %530 : vector<8x128xi1>, vector<8x128xf32>
    %602 = arith.addf %598, %601 : vector<8x128xf32>
    %cst_141 = arith.constant 5.000000e-01 : f32
    %603 = vector.broadcast %cst_141 : f32 to vector<8x128xf32>
    %604 = arith.mulf %603, %602 : vector<8x128xf32>
    %c0_142 = arith.constant 0 : index
    %c0_143 = arith.constant 0 : index
    %605 = vector.load %arg7[%c0_142, %c0_143] : memref<128x128xf32, #tpu.memory_space<vmem>>, vector<128x128xf32>
    %cst_144 = arith.constant dense<0.000000e+00> : vector<8x128xf32>
    %606 = tpu.matmul %604, %605, %cst_144 {dimension_numbers = #tpu.dot_dimension_numbers<[1], [0], [0], [1], [0, 0, 1, 1], [], []>} : vector<8x128xf32>, vector<128x128xf32>, vector<8x128xf32> -> vector<8x128xf32>
    %c0_145 = arith.constant 0 : index
    %c0_146 = arith.constant 0 : index
    %607 = vector.load %arg8[%c0_145, %c0_146] : memref<1x128xf32, #tpu.memory_space<vmem>>, vector<1x128xf32>
    %608 = vector.broadcast %607 : vector<1x128xf32> to vector<8x128xf32>
    %609 = arith.addf %606, %608 : vector<8x128xf32>
    %cst_147 = arith.constant 0.000000e+00 : f32
    %610 = vector.broadcast %cst_147 : f32 to vector<8x128xf32>
    %611 = arith.cmpf ogt, %609, %610 : vector<8x128xf32>
    %cst_148 = arith.constant 0.00999999977 : f32
    %612 = vector.broadcast %cst_148 : f32 to vector<8x128xf32>
    %613 = arith.mulf %612, %609 : vector<8x128xf32>
    %614 = arith.select %611, %609, %613 : vector<8x128xi1>, vector<8x128xf32>
    %c0_149 = arith.constant 0 : index
    %c0_150 = arith.constant 0 : index
    %615 = vector.load %arg9[%c0_149, %c0_150] : memref<128x128xf32, #tpu.memory_space<vmem>>, vector<128x128xf32>
    %cst_151 = arith.constant dense<0.000000e+00> : vector<8x128xf32>
    %616 = tpu.matmul %614, %615, %cst_151 {dimension_numbers = #tpu.dot_dimension_numbers<[1], [0], [0], [1], [0, 0, 1, 1], [], []>} : vector<8x128xf32>, vector<128x128xf32>, vector<8x128xf32> -> vector<8x128xf32>
    %c0_152 = arith.constant 0 : index
    %c0_153 = arith.constant 0 : index
    %617 = vector.load %arg10[%c0_152, %c0_153] : memref<1x128xf32, #tpu.memory_space<vmem>>, vector<1x128xf32>
    %618 = vector.broadcast %617 : vector<1x128xf32> to vector<8x128xf32>
    %619 = arith.addf %616, %618 : vector<8x128xf32>
    %c0_154 = arith.constant 0 : index
    %c0_155 = arith.constant 0 : index
    %620 = vector.load %arg11[%c0_154, %c0_155] : memref<8x128xf32, #tpu.memory_space<vmem>>, vector<8x128xf32>
    tpu.vector_store %arg11[%c0_154, %c0_155], %619 {strides = array<i32>} : memref<8x128xf32, #tpu.memory_space<vmem>>, vector<8x128xf32>,
    return
  }
}

</mosaic_0001>

<llo_original>
// kernel: lstm_classifier_forward.1
$region0: #{lstm_classifier_forward.1}
  #allocation0 [shape = 'u32[]', space=smem, size = 0x4, offset = 0x4, fixed_abs, tag = 'smem constant byte address 0x4 - core index']
  #allocation1 [shape = 'u32[144,128]{1,0:T(1,128)}', space=vmem, size = 0x12000, scoped, tag = 'internal scratch']
  #allocation2 [shape = 'f32[64,1024]{1,0:T(8,128)}', space=vmem, size = 0x40000, scoped, tag = 'scratch operand']
  %s0 = inlined_call_operand.vmem [shape: s32[64,1], index: 0, kind: input, shape index: {}]
  %s1 = inlined_call_operand.vmem [shape: s32[8,1], index: 1, kind: input, shape index: {}]
  %s2 = inlined_call_operand.hbm [shape: f32[128,128], index: 2, kind: input, shape index: {}]
  %s3 = inlined_call_operand.hbm [shape: f32[128,1024], index: 3, kind: input, shape index: {}]
  %s4 = inlined_call_operand.hbm [shape: f32[1,1024], index: 4, kind: input, shape index: {}]
  %s5 = inlined_call_operand.hbm [shape: f32[128,512], index: 5, kind: input, shape index: {}]
  %s6 = inlined_call_operand.hbm [shape: f32[128,512], index: 6, kind: input, shape index: {}]
  %s7 = inlined_call_operand.hbm [shape: f32[128,128], index: 7, kind: input, shape index: {}]
  %s8 = inlined_call_operand.vmem [shape: f32[1,128], index: 8, kind: input, shape index: {}]
  %s9 = inlined_call_operand.vmem [shape: f32[128,128], index: 9, kind: input, shape index: {}]
  %s10 = inlined_call_operand.vmem [shape: f32[1,128], index: 10, kind: input, shape index: {}]
  %s11 = inlined_call_operand.hbm [shape: f32[8,128], index: 11, kind: output, shape index: {}]
  %s12 = sld [smem:[#allocation0]]
  $region78: #{lstm_classifier_forward.1} parent=0
    _
  %s14 = ssub.s32 1, %s12
  %s15 = scalar_select 0, %s14, %s12
  $region1: #{lstm_classifier_forward.1} parent=0
    #allocation3 [shape = 'u8[65536]{0}', space=vmem, size = 0x10000, scoped, tag = 'input window, operand 2, single buffered']
    #allocation4 [shape = 's32[1]{0}', space=sflag, size = 0x4, scoped, tag = 'scoped memory for lstm_classifier_forward.1']
    #allocation5 [shape = 's32[1]{0}', space=sflag, size = 0x4, scoped, tag = 'scoped memory for lstm_classifier_forward.1']
    #allocation6 [shape = 'u8[524288]{0}', space=vmem, size = 0x80000, scoped, tag = 'input window, operand 3, single buffered']
    #allocation7 [shape = 's32[1]{0}', space=sflag, size = 0x4, scoped, tag = 'scoped memory for lstm_classifier_forward.1']
    #allocation8 [shape = 'u8[4096]{0}', space=vmem, size = 0x1000, scoped, tag = 'input window, operand 4, single buffered']
    #allocation9 [shape = 'u8[262144]{0}', space=vmem, size = 0x40000, scoped, tag = 'input window, operand 5, single buffered']
    #allocation10 [shape = 's32[1]{0}', space=sflag, size = 0x4, scoped, tag = 'scoped memory for lstm_classifier_forward.1']
    #allocation11 [shape = 'u8[262144]{0}', space=vmem, size = 0x40000, scoped, tag = 'input window, operand 6, single buffered']
    #allocation12 [shape = 'u8[65536]{0}', space=vmem, size = 0x10000, scoped, tag = 'input window, operand 7, single buffered']
    #allocation13 [shape = 's32[1]{0}', space=sflag, size = 0x4, scoped, tag = 'scoped memory for lstm_classifier_forward.1']
    #allocation14 [shape = 'u8[4096]{0}', space=vmem, size = 0x1000, scoped, tag = 'output window, operand 0, single buffered']
    %16 = vsyncpa [#allocation4], 0
    %17 = vsyncpa [#allocation7], 0
    %18 = vsyncpa [#allocation10], 0
    %19 = vsyncpa [#allocation13], 0
    %20 = vsyncpa [#allocation5], 0
    // Predicated region
    $region2: #{lstm_classifier_forward.1} parent=1 // pred_check
      _
    $region3: #{lstm_classifier_forward.1} parent=1 // pred_check_branch
      %22 = sbr.rel (0) target = $region5
    $region4: #{lstm_classifier_forward.1} parent=1 // pred_region
      _
    $region5: #{lstm_classifier_forward.1} parent=1 // pred_fallthru
      _
    // Predicated region
    $region6: #{lstm_classifier_forward.1} parent=1 // pred_check
      _
    $region7: #{lstm_classifier_forward.1} parent=1 // pred_check_branch
      %24 = sbr.rel (0) target = $region9
    $region8: #{lstm_classifier_forward.1} parent=1 // pred_region
      _
    $region9: #{lstm_classifier_forward.1} parent=1 // pred_fallthru
      _
    // Predicated region
    $region10: #{lstm_classifier_forward.1} parent=1 // pred_check
      _
    $region11: #{lstm_classifier_forward.1} parent=1 // pred_check_branch
      %26 = sbr.rel (0) target = $region13
    $region12: #{lstm_classifier_forward.1} parent=1 // pred_region
      %s28 = ssub.s32 2048, 2048
      %29 = vsyncadd [#allocation4], %s28
      %s30 = sshll.u32 [#allocation3], 4
      %s31 = int_to_ptr.vmem [resolvable:$true] %s30
      %36 = dma.hbm_to_vmem [thread:$0]  %s2, 2048, %s31, [#allocation4], 128, 128, 8
    $region13: #{lstm_classifier_forward.1} parent=1 // pred_fallthru
      _
    // Predicated region
    $region14: #{lstm_classifier_forward.1} parent=1 // pred_check
      _
    $region15: #{lstm_classifier_forward.1} parent=1 // pred_check_branch
      %38 = sbr.rel (0) target = $region17
    $region16: #{lstm_classifier_forward.1} parent=1 // pred_region
      %s40 = ssub.s32 16384, 16384
      %41 = vsyncadd [#allocation7], %s40
      %s42 = sshll.u32 [#allocation6], 4
      %s43 = int_to_ptr.vmem [resolvable:$true] %s42
      %48 = dma.hbm_to_vmem [thread:$0]  %s3, 16384, %s43, [#allocation7], 1024, 1024, 64
    $region17: #{lstm_classifier_forward.1} parent=1 // pred_fallthru
      _
    // Predicated region
    $region18: #{lstm_classifier_forward.1} parent=1 // pred_check
      _
    $region19: #{lstm_classifier_forward.1} parent=1 // pred_check_branch
      %50 = sbr.rel (0) target = $region21
    $region20: #{lstm_classifier_forward.1} parent=1 // pred_region
      %s52 = ssub.s32 128, 128
      %53 = vsyncadd [#allocation7], %s52
      %s55 = sshll.u32 [#allocation8], 4
      %s56 = int_to_ptr.vmem [resolvable:$true] %s55
      %58 = dma.hbm_to_vmem [thread:$0]  %s4, 128, %s56, [#allocation7]
    $region21: #{lstm_classifier_forward.1} parent=1 // pred_fallthru
      _
    // Predicated region
    $region22: #{lstm_classifier_forward.1} parent=1 // pred_check
      _
    $region23: #{lstm_classifier_forward.1} parent=1 // pred_check_branch
      %60 = sbr.rel (0) target = $region25
    $region24: #{lstm_classifier_forward.1} parent=1 // pred_region
      %s62 = ssub.s32 8192, 8192
      %63 = vsyncadd [#allocation10], %s62
      %s64 = sshll.u32 [#allocation9], 4
      %s65 = int_to_ptr.vmem [resolvable:$true] %s64
      %70 = dma.hbm_to_vmem [thread:$0]  %s5, 8192, %s65, [#allocation10], 512, 512, 32
    $region25: #{lstm_classifier_forward.1} parent=1 // pred_fallthru
      _
    // Predicated region
    $region26: #{lstm_classifier_forward.1} parent=1 // pred_check
      _
    $region27: #{lstm_classifier_forward.1} parent=1 // pred_check_branch
      %72 = sbr.rel (0) target = $region29
    $region28: #{lstm_classifier_forward.1} parent=1 // pred_region
      %s74 = ssub.s32 8192, 8192
      %75 = vsyncadd [#allocation10], %s74
      %s76 = sshll.u32 [#allocation11], 4
      %s77 = int_to_ptr.vmem [resolvable:$true] %s76
      %82 = dma.hbm_to_vmem [thread:$0]  %s6, 8192, %s77, [#allocation10], 512, 512, 32
    $region29: #{lstm_classifier_forward.1} parent=1 // pred_fallthru
      _
    // Predicated region
    $region30: #{lstm_classifier_forward.1} parent=1 // pred_check
      _
    $region31: #{lstm_classifier_forward.1} parent=1 // pred_check_branch
      %84 = sbr.rel (0) target = $region33
    $region32: #{lstm_classifier_forward.1} parent=1 // pred_region
      %s86 = ssub.s32 2048, 2048
      %87 = vsyncadd [#allocation13], %s86
      %s88 = sshll.u32 [#allocation12], 4
      %s89 = int_to_ptr.vmem [resolvable:$true] %s88
      %94 = dma.hbm_to_vmem [thread:$0]  %s7, 2048, %s89, [#allocation13], 128, 128, 8
    $region33: #{lstm_classifier_forward.1} parent=1 // pred_fallthru
      _
    // Predicated region
    $region34: #{lstm_classifier_forward.1} parent=1 // pred_check
      _
    $region35: #{lstm_classifier_forward.1} parent=1 // pred_check_branch
      %96 = sbr.rel (0) target = $region37
    $region36: #{lstm_classifier_forward.1} parent=1 // pred_region
      _
    $region37: #{lstm_classifier_forward.1} parent=1 // pred_fallthru
      _
    // Predicated region
    $region38: #{lstm_classifier_forward.1} parent=1 // pred_check
      _
    $region39: #{lstm_classifier_forward.1} parent=1 // pred_check_branch
      %98 = sbr.rel (0) target = $region41
    $region40: #{lstm_classifier_forward.1} parent=1 // pred_region
      _
    $region41: #{lstm_classifier_forward.1} parent=1 // pred_fallthru
      _
    // Predicated region
    $region42: #{lstm_classifier_forward.1} parent=1 // pred_check
      _
    $region43: #{lstm_classifier_forward.1} parent=1 // pred_check_branch
      %100 = sbr.rel (0) target = $region45
    $region44: #{lstm_classifier_forward.1} parent=1 // pred_region
      _
    $region45: #{lstm_classifier_forward.1} parent=1 // pred_fallthru
      _
    // Predicated region
    $region46: #{lstm_classifier_forward.1} parent=1 // pred_check
      _
    $region47: #{lstm_classifier_forward.1} parent=1 // pred_check_branch
      %102 = sbr.rel (0) target = $region49
    $region48: #{lstm_classifier_forward.1} parent=1 // pred_region
      %103 = dma.done [#allocation4], 2048
    $region49: #{lstm_classifier_forward.1} parent=1 // pred_fallthru
      _
    // Predicated region
    $region50: #{lstm_classifier_forward.1} parent=1 // pred_check
      _
    $region51: #{lstm_classifier_forward.1} parent=1 // pred_check_branch
      %105 = sbr.rel (0) target = $region53
    $region52: #{lstm_classifier_forward.1} parent=1 // pred_region
      %106 = dma.done [#allocation7], 16384
    $region53: #{lstm_classifier_forward.1} parent=1 // pred_fallthru
      _
    // Predicated region
    $region54: #{lstm_classifier_forward.1} parent=1 // pred_check
      _
    $region55: #{lstm_classifier_forward.1} parent=1 // pred_check_branch
      %108 = sbr.rel (0) target = $region57
    $region56: #{lstm_classifier_forward.1} parent=1 // pred_region
      %109 = dma.done [#allocation7], 128
    $region57: #{lstm_classifier_forward.1} parent=1 // pred_fallthru
      _
    // Predicated region
    $region58: #{lstm_classifier_forward.1} parent=1 // pred_check
      _
    $region59: #{lstm_classifier_forward.1} parent=1 // pred_check_branch
      %111 = sbr.rel (0) target = $region61
    $region60: #{lstm_classifier_forward.1} parent=1 // pred_region
      %112 = dma.done [#allocation10], 8192
    $region61: #{lstm_classifier_forward.1} parent=1 // pred_fallthru
      _
    // Predicated region
    $region62: #{lstm_classifier_forward.1} parent=1 // pred_check
      _
    $region63: #{lstm_classifier_forward.1} parent=1 // pred_check_branch
      %114 = sbr.rel (0) target = $region65
    $region64: #{lstm_classifier_forward.1} parent=1 // pred_region
      %115 = dma.done [#allocation10], 8192
    $region65: #{lstm_classifier_forward.1} parent=1 // pred_fallthru
      _
    // Predicated region
    $region66: #{lstm_classifier_forward.1} parent=1 // pred_check
      _
    $region67: #{lstm_classifier_forward.1} parent=1 // pred_check_branch
      %117 = sbr.rel (0) target = $region69
    $region68: #{lstm_classifier_forward.1} parent=1 // pred_region
      %118 = dma.done [#allocation13], 2048
    $region69: #{lstm_classifier_forward.1} parent=1 // pred_fallthru
      _
    %v119 = vld [vmem:[%s0] sm:$0xff]
    %v120 = vld [vmem:[%s0 + $0x8] sm:$0xff]
    %v121 = vld [vmem:[%s0 + $0x10] sm:$0xff]
    %v122 = vld [vmem:[%s0 + $0x18] sm:$0xff]
    %v123 = vld [vmem:[%s0 + $0x20] sm:$0xff]
    %v124 = vld [vmem:[%s0 + $0x28] sm:$0xff]
    %v125 = vld [vmem:[%s0 + $0x30] sm:$0xff]
    %v126 = vld [vmem:[%s0 + $0x38] sm:$0xff]
    %v127 = vlaneseq
    %v128 = vand.u32 %v127, 127
    %129 = vset.pattern.permute.xlu0 0
    %130 = vperm.xlu0 %129, %v119
    %v131 = vpop.permute.xlu0 %130
    %132 = vset.pattern.permute.xlu0 0
    %133 = vperm.xlu0 %132, %v120
    %v134 = vpop.permute.xlu0 %133
    %135 = vset.pattern.permute.xlu0 0
    %136 = vperm.xlu0 %135, %v121
    %v137 = vpop.permute.xlu0 %136
    %138 = vset.pattern.permute.xlu0 0
    %139 = vperm.xlu0 %138, %v122
    %v140 = vpop.permute.xlu0 %139
    %141 = vset.pattern.permute.xlu0 0
    %142 = vperm.xlu0 %141, %v123
    %v143 = vpop.permute.xlu0 %142
    %144 = vset.pattern.permute.xlu0 0
    %145 = vperm.xlu0 %144, %v124
    %v146 = vpop.permute.xlu0 %145
    %147 = vset.pattern.permute.xlu0 0
    %148 = vperm.xlu0 %147, %v125
    %v149 = vpop.permute.xlu0 %148
    %150 = vset.pattern.permute.xlu0 0
    %151 = vperm.xlu0 %150, %v126
    %v152 = vpop.permute.xlu0 %151
    %vm153 = vcmp.eq.s32.totalorder %v131, %v128
    %vm154 = vcmp.eq.s32.totalorder %v134, %v128
    %vm155 = vcmp.eq.s32.totalorder %v137, %v128
    %vm156 = vcmp.eq.s32.totalorder %v140, %v128
    %vm157 = vcmp.eq.s32.totalorder %v143, %v128
    %vm158 = vcmp.eq.s32.totalorder %v146, %v128
    %vm159 = vcmp.eq.s32.totalorder %v149, %v128
    %vm160 = vcmp.eq.s32.totalorder %v152, %v128
    %v161 = vsel %vm153, 1, 0
    %v162 = vsel %vm154, 1, 0
    %v163 = vsel %vm155, 1, 0
    %v164 = vsel %vm156, 1, 0
    %v165 = vsel %vm157, 1, 0
    %v166 = vsel %vm158, 1, 0
    %v167 = vsel %vm159, 1, 0
    %v168 = vsel %vm160, 1, 0
    %v169 = vcvt.s32.f32 %v161
    %v170 = vcvt.s32.f32 %v162
    %v171 = vcvt.s32.f32 %v163
    %v172 = vcvt.s32.f32 %v164
    %v173 = vcvt.s32.f32 %v165
    %v174 = vcvt.s32.f32 %v166
    %v175 = vcvt.s32.f32 %v167
    %v176 = vcvt.s32.f32 %v168
    %v177 = vld [vmem:[#allocation3] sm:$0xff]
    %v178 = vld [vmem:[#allocation3 + $0x8] sm:$0xff]
    %v179 = vld [vmem:[#allocation3 + $0x10] sm:$0xff]
    %v180 = vld [vmem:[#allocation3 + $0x18] sm:$0xff]
    %v181 = vld [vmem:[#allocation3 + $0x20] sm:$0xff]
    %v182 = vld [vmem:[#allocation3 + $0x28] sm:$0xff]
    %v183 = vld [vmem:[#allocation3 + $0x30] sm:$0xff]
    %v184 = vld [vmem:[#allocation3 + $0x38] sm:$0xff]
    %v185 = vld [vmem:[#allocation3 + $0x40] sm:$0xff]
    %v186 = vld [vmem:[#allocation3 + $0x48] sm:$0xff]
    %v187 = vld [vmem:[#allocation3 + $0x50] sm:$0xff]
    %v188 = vld [vmem:[#allocation3 + $0x58] sm:$0xff]
    %v189 = vld [vmem:[#allocation3 + $0x60] sm:$0xff]
    %v190 = vld [vmem:[#allocation3 + $0x68] sm:$0xff]
    %v191 = vld [vmem:[#allocation3 + $0x70] sm:$0xff]
    %v192 = vld [vmem:[#allocation3 + $0x78] sm:$0xff]
    %193 = vmatprep.subr.mxu0 0.0
    %194 = vmatpush1.msra.mxu0 %v177
    %195 = vmatprep.subr.mxu0 0.0
    %196 = vmatpush1.msra.mxu0 %v178
    %197 = vmatprep.subr.mxu0 0.0
    %198 = vmatpush1.msra.mxu0 %v179
    %199 = vmatprep.subr.mxu0 0.0
    %200 = vmatpush1.msra.mxu0 %v180
    %201 = vmatprep.subr.mxu0 0.0
    %202 = vmatpush1.msra.mxu0 %v181
    %203 = vmatprep.subr.mxu0 0.0
    %204 = vmatpush1.msra.mxu0 %v182
    %205 = vmatprep.subr.mxu0 0.0
    %206 = vmatpush1.msra.mxu0 %v183
    %207 = vmatprep.subr.mxu0 0.0
    %208 = vmatpush1.msra.mxu0 %v184
    %209 = vmatprep.subr.mxu0 0.0
    %210 = vmatpush1.msra.mxu0 %v185
    %211 = vmatprep.subr.mxu0 0.0
    %212 = vmatpush1.msra.mxu0 %v186
    %213 = vmatprep.subr.mxu0 0.0
    %214 = vmatpush1.msra.mxu0 %v187
    %215 = vmatprep.subr.mxu0 0.0
    %216 = vmatpush1.msra.mxu0 %v188
    %217 = vmatprep.subr.mxu0 0.0
    %218 = vmatpush1.msra.mxu0 %v189
    %219 = vmatprep.subr.mxu0 0.0
    %220 = vmatpush1.msra.mxu0 %v190
    %221 = vmatprep.subr.mxu0 0.0
    %222 = vmatpush1.msra.mxu0 %v191
    %223 = vmatprep.subr.mxu0 0.0
    %224 = vmatpush1.msra.mxu0 %v192
    %225 = vmatprep.subr.mxu0 0.0
    %226 = vmatpush1.msra.mxu0 0.0
    %227 = vmatprep.subr.mxu0 0.0
    %228 = vmatpush1.msra.mxu0 0.0
    %229 = vmatprep.subr.mxu0 0.0
    %230 = vmatpush1.msra.mxu0 0.0
    %231 = vmatprep.subr.mxu0 0.0
    %232 = vmatpush1.msra.mxu0 0.0
    %233 = vmatprep.subr.mxu0 0.0
    %234 = vmatpush1.msra.mxu0 0.0
    %235 = vmatprep.subr.mxu0 0.0
    %236 = vmatpush1.msra.mxu0 0.0
    %237 = vmatprep.subr.mxu0 0.0
    %238 = vmatpush1.msra.mxu0 0.0
    %239 = vmatprep.subr.mxu0 0.0
    %240 = vmatpush1.msra.mxu0 0.0
    %241 = vmatprep.subr.mxu0 0.0
    %242 = vmatpush1.msra.mxu0 0.0
    %243 = vmatprep.subr.mxu0 0.0
    %244 = vmatpush1.msra.mxu0 0.0
    %245 = vmatprep.subr.mxu0 0.0
    %246 = vmatpush1.msra.mxu0 0.0
    %247 = vmatprep.subr.mxu0 0.0
    %248 = vmatpush1.msra.mxu0 0.0
    %249 = vmatprep.subr.mxu0 0.0
    %250 = vmatpush1.msra.mxu0 0.0
    %251 = vmatprep.subr.mxu0 0.0
    %252 = vmatpush1.msra.mxu0 0.0
    %253 = vmatprep.subr.mxu0 0.0
    %254 = vmatpush1.msra.mxu0 0.0
    %255 = vmatprep.subr.mxu0 0.0
    %256 = vmatpush1.msra.mxu0 0.0
    %257 = vmatprep.mubr.f32.mxu0 0.0
    %258 = vmatmul.mubr.f32.gmra.mrb[0].mxu0 %v169
    %v259 = vpop.f32.mrb[0].mxu0
    %v260 = vadd.f32 0.0, %v259
    %v261 = vpop.f32.mrb[0].mxu0
    %262 = vmatprep.mubr.f32.mxu0 0.0
    %263 = vmatmul.mubr.f32.gmra.mrb[0].mxu0 %v170
    %v264 = vpop.f32.mrb[0].mxu0
    %v265 = vadd.f32 0.0, %v264
    %v266 = vpop.f32.mrb[0].mxu0
    %267 = vmatprep.mubr.f32.mxu0 0.0
    %268 = vmatmul.mubr.f32.gmra.mrb[0].mxu0 %v171
    %v269 = vpop.f32.mrb[0].mxu0
    %v270 = vadd.f32 0.0, %v269
    %v271 = vpop.f32.mrb[0].mxu0
    %272 = vmatprep.mubr.f32.mxu0 0.0
    %273 = vmatmul.mubr.f32.gmra.mrb[0].mxu0 %v172
    %v274 = vpop.f32.mrb[0].mxu0
    %v275 = vadd.f32 0.0, %v274
    %v276 = vpop.f32.mrb[0].mxu0
    %277 = vmatprep.mubr.f32.mxu0 0.0
    %278 = vmatmul.mubr.f32.gmra.mrb[0].mxu0 %v173
    %v279 = vpop.f32.mrb[0].mxu0
    %v280 = vadd.f32 0.0, %v279
    %v281 = vpop.f32.mrb[0].mxu0
    %282 = vmatprep.mubr.f32.mxu0 0.0
    %283 = vmatmul.mubr.f32.gmra.mrb[0].mxu0 %v174
    %v284 = vpop.f32.mrb[0].mxu0
    %v285 = vadd.f32 0.0, %v284
    %v286 = vpop.f32.mrb[0].mxu0
    %287 = vmatprep.mubr.f32.mxu0 0.0
    %288 = vmatmul.mubr.f32.gmra.mrb[0].mxu0 %v175
    %v289 = vpop.f32.mrb[0].mxu0
    %v290 = vadd.f32 0.0, %v289
    %v291 = vpop.f32.mrb[0].mxu0
    %292 = vmatprep.mubr.f32.mxu0 0.0
    %293 = vmatmul.mubr.f32.gmra.mrb[0].mxu0 %v176
    %v294 = vpop.f32.mrb[0].mxu0
    %v295 = vadd.f32 0.0, %v294
    %v296 = vpop.f32.mrb[0].mxu0
    %297 = vdwg.mxu0
    %v298 = vld [vmem:[#allocation6] sm:$0xff]
    %v299 = vld [vmem:[#allocation6 + $0x8] sm:$0xff]
    %v300 = vld [vmem:[#allocation6 + $0x10] sm:$0xff]
    %v301 = vld [vmem:[#allocation6 + $0x18] sm:$0xff]
    %v302 = vld [vmem:[#allocation6 + $0x20] sm:$0xff]
    %v303 = vld [vmem:[#allocation6 + $0x28] sm:$0xff]
    %v304 = vld [vmem:[#allocation6 + $0x30] sm:$0xff]
    %v305 = vld [vmem:[#allocation6 + $0x38] sm:$0xff]
    %v306 = vld [vmem:[#allocation6 + $0x40] sm:$0xff]
    %v307 = vld [vmem:[#allocation6 + $0x48] sm:$0xff]
    %v308 = vld [vmem:[#allocation6 + $0x50] sm:$0xff]
    %v309 = vld [vmem:[#allocation6 + $0x58] sm:$0xff]
    %v310 = vld [vmem:[#allocation6 + $0x60] sm:$0xff]
    %v311 = vld [vmem:[#allocation6 + $0x68] sm:$0xff]
    %v312 = vld [vmem:[#allocation6 + $0x70] sm:$0xff]
    %v313 = vld [vmem:[#allocation6 + $0x78] sm:$0xff]
    %v314 = vld [vmem:[#allocation6 + $0x80] sm:$0xff]
    %v315 = vld [vmem:[#allocation6 + $0x88] sm:$0xff]
    %v316 = vld [vmem:[#allocation6 + $0x90] sm:$0xff]
    %v317 = vld [vmem:[#allocation6 + $0x98] sm:$0xff]
    %v318 = vld [vmem:[#allocation6 + $0xa0] sm:$0xff]
    %v319 = vld [vmem:[#allocation6 + $0xa8] sm:$0xff]
    %v320 = vld [vmem:[#allocation6 + $0xb0] sm:$0xff]
    %v321 = vld [vmem:[#allocation6 + $0xb8] sm:$0xff]
    %v322 = vld [vmem:[#allocation6 + $0xc0] sm:$0xff]
    %v323 = vld [vmem:[#allocation6 + $0xc8] sm:$0xff]
    %v324 = vld [vmem:[#allocation6 + $0xd0] sm:$0xff]
    %v325 = vld [vmem:[#allocation6 + $0xd8] sm:$0xff]
    %v326 = vld [vmem:[#allocation6 + $0xe0] sm:$0xff]
    %v327 = vld [vmem:[#allocation6 + $0xe8] sm:$0xff]
    %v328 = vld [vmem:[#allocation6 + $0xf0] sm:$0xff]
    %v329 = vld [vmem:[#allocation6 + $0xf8] sm:$0xff]
    %v330 = vld [vmem:[#allocation6 + $0x100] sm:$0xff]
    %v331 = vld [vmem:[#allocation6 + $0x108] sm:$0xff]
    %v332 = vld [vmem:[#allocation6 + $0x110] sm:$0xff]
    %v333 = vld [vmem:[#allocation6 + $0x118] sm:$0xff]
    %v334 = vld [vmem:[#allocation6 + $0x120] sm:$0xff]
    %v335 = vld [vmem:[#allocation6 + $0x128] sm:$0xff]
    %v336 = vld [vmem:[#allocation6 + $0x130] sm:$0xff]
    %v337 = vld [vmem:[#allocation6 + $0x138] sm:$0xff]
    %v338 = vld [vmem:[#allocation6 + $0x140] sm:$0xff]
    %v339 = vld [vmem:[#allocation6 + $0x148] sm:$0xff]
    %v340 = vld [vmem:[#allocation6 + $0x150] sm:$0xff]
    %v341 = vld [vmem:[#allocation6 + $0x158] sm:$0xff]
    %v342 = vld [vmem:[#allocation6 + $0x160] sm:$0xff]
    %v343 = vld [vmem:[#allocation6 + $0x168] sm:$0xff]
    %v344 = vld [vmem:[#allocation6 + $0x170] sm:$0xff]
    %v345 = vld [vmem:[#allocation6 + $0x178] sm:$0xff]
    %v346 = vld [vmem:[#allocation6 + $0x180] sm:$0xff]
    %v347 = vld [vmem:[#allocation6 + $0x188] sm:$0xff]
    %v348 = vld [vmem:[#allocation6 + $0x190] sm:$0xff]
    %v349 = vld [vmem:[#allocation6 + $0x198] sm:$0xff]
    %v350 = vld [vmem:[#allocation6 + $0x1a0] sm:$0xff]
    %v351 = vld [vmem:[#allocation6 + $0x1a8] sm:$0xff]
    %v352 = vld [vmem:[#allocation6 + $0x1b0] sm:$0xff]
    %v353 = vld [vmem:[#allocation6 + $0x1b8] sm:$0xff]
    %v354 = vld [vmem:[#allocation6 + $0x1c0] sm:$0xff]
    %v355 = vld [vmem:[#allocation6 + $0x1c8] sm:$0xff]
    %v356 = vld [vmem:[#allocation6 + $0x1d0] sm:$0xff]
    %v357 = vld [vmem:[#allocation6 + $0x1d8] sm:$0xff]
    %v358 = vld [vmem:[#allocation6 + $0x1e0] sm:$0xff]
    %v359 = vld [vmem:[#allocation6 + $0x1e8] sm:$0xff]
    %v360 = vld [vmem:[#allocation6 + $0x1f0] sm:$0xff]
    %v361 = vld [vmem:[#allocation6 + $0x1f8] sm:$0xff]
    %v362 = vld [vmem:[#allocation6 + $0x200] sm:$0xff]
    %v363 = vld [vmem:[#allocation6 + $0x208] sm:$0xff]
    %v364 = vld [vmem:[#allocation6 + $0x210] sm:$0xff]
    %v365 = vld [vmem:[#allocation6 + $0x218] sm:$0xff]
    %v366 = vld [vmem:[#allocation6 + $0x220] sm:$0xff]
    %v367 = vld [vmem:[#allocation6 + $0x228] sm:$0xff]
    %v368 = vld [vmem:[#allocation6 + $0x230] sm:$0xff]
    %v369 = vld [vmem:[#allocation6 + $0x238] sm:$0xff]
    %v370 = vld [vmem:[#allocation6 + $0x240] sm:$0xff]
    %v371 = vld [vmem:[#allocation6 + $0x248] sm:$0xff]
    %v372 = vld [vmem:[#allocation6 + $0x250] sm:$0xff]
    %v373 = vld [vmem:[#allocation6 + $0x258] sm:$0xff]
    %v374 = vld [vmem:[#allocation6 + $0x260] sm:$0xff]
    %v375 = vld [vmem:[#allocation6 + $0x268] sm:$0xff]
    %v376 = vld [vmem:[#allocation6 + $0x270] sm:$0xff]
    %v377 = vld [vmem:[#allocation6 + $0x278] sm:$0xff]
    %v378 = vld [vmem:[#allocation6 + $0x280] sm:$0xff]
    %v379 = vld [vmem:[#allocation6 + $0x288] sm:$0xff]
    %v380 = vld [vmem:[#allocation6 + $0x290] sm:$0xff]
    %v381 = vld [vmem:[#allocation6 + $0x298] sm:$0xff]
    %v382 = vld [vmem:[#allocation6 + $0x2a0] sm:$0xff]
    %v383 = vld [vmem:[#allocation6 + $0x2a8] sm:$0xff]
    %v384 = vld [vmem:[#allocation6 + $0x2b0] sm:$0xff]
    %v385 = vld [vmem:[#allocation6 + $0x2b8] sm:$0xff]
    %v386 = vld [vmem:[#allocation6 + $0x2c0] sm:$0xff]
    %v387 = vld [vmem:[#allocation6 + $0x2c8] sm:$0xff]
    %v388 = vld [vmem:[#allocation6 + $0x2d0] sm:$0xff]
    %v389 = vld [vmem:[#allocation6 + $0x2d8] sm:$0xff]
    %v390 = vld [vmem:[#allocation6 + $0x2e0] sm:$0xff]
    %v391 = vld [vmem:[#allocation6 + $0x2e8] sm:$0xff]
    %v392 = vld [vmem:[#allocation6 + $0x2f0] sm:$0xff]
    %v393 = vld [vmem:[#allocation6 + $0x2f8] sm:$0xff]
    %v394 = vld [vmem:[#allocation6 + $0x300] sm:$0xff]
    %v395 = vld [vmem:[#allocation6 + $0x308] sm:$0xff]
    %v396 = vld [vmem:[#allocation6 + $0x310] sm:$0xff]
    %v397 = vld [vmem:[#allocation6 + $0x318] sm:$0xff]
    %v398 = vld [vmem:[#allocation6 + $0x320] sm:$0xff]
    %v399 = vld [vmem:[#allocation6 + $0x328] sm:$0xff]
    %v400 = vld [vmem:[#allocation6 + $0x330] sm:$0xff]
    %v401 = vld [vmem:[#allocation6 + $0x338] sm:$0xff]
    %v402 = vld [vmem:[#allocation6 + $0x340] sm:$0xff]
    %v403 = vld [vmem:[#allocation6 + $0x348] sm:$0xff]
    %v404 = vld [vmem:[#allocation6 + $0x350] sm:$0xff]
    %v405 = vld [vmem:[#allocation6 + $0x358] sm:$0xff]
    %v406 = vld [vmem:[#allocation6 + $0x360] sm:$0xff]
    %v407 = vld [vmem:[#allocation6 + $0x368] sm:$0xff]
    %v408 = vld [vmem:[#allocation6 + $0x370] sm:$0xff]
    %v409 = vld [vmem:[#allocation6 + $0x378] sm:$0xff]
    %v410 = vld [vmem:[#allocation6 + $0x380] sm:$0xff]
    %v411 = vld [vmem:[#allocation6 + $0x388] sm:$0xff]
    %v412 = vld [vmem:[#allocation6 + $0x390] sm:$0xff]
    %v413 = vld [vmem:[#allocation6 + $0x398] sm:$0xff]
    %v414 = vld [vmem:[#allocation6 + $0x3a0] sm:$0xff]
    %v415 = vld [vmem:[#allocation6 + $0x3a8] sm:$0xff]
    %v416 = vld [vmem:[#allocation6 + $0x3b0] sm:$0xff]
    %v417 = vld [vmem:[#allocation6 + $0x3b8] sm:$0xff]
    %v418 = vld [vmem:[#allocation6 + $0x3c0] sm:$0xff]
    %v419 = vld [vmem:[#allocation6 + $0x3c8] sm:$0xff]
    %v420 = vld [vmem:[#allocation6 + $0x3d0] sm:$0xff]
    %v421 = vld [vmem:[#allocation6 + $0x3d8] sm:$0xff]
    %v422 = vld [vmem:[#allocation6 + $0x3e0] sm:$0xff]
    %v423 = vld [vmem:[#allocation6 + $0x3e8] sm:$0xff]
    %v424 = vld [vmem:[#allocation6 + $0x3f0] sm:$0xff]
    %v425 = vld [vmem:[#allocation6 + $0x3f8] sm:$0xff]
    %v426 = vld [vmem:[#allocation8] sm:$0xff]
    %v428 = vlaneseq
    %v429 = vshrl.u32 %v428, 7
    %v430 = vsub.s32 0, %v429
    %v431 = vrot.slane %v426, %v430
    %v432 = vlaneseq
    %v433 = vshrl.u32 %v432, 7
    %v434 = vsub.s32 1, %v433
    %v435 = vrot.slane %v426, %v434
    %v436 = vlaneseq
    %v437 = vshrl.u32 %v436, 7
    %v438 = vsub.s32 2, %v437
    %v439 = vrot.slane %v426, %v438
    %v440 = vlaneseq
    %v441 = vshrl.u32 %v440, 7
    %v442 = vsub.s32 3, %v441
    %v443 = vrot.slane %v426, %v442
    %v444 = vlaneseq
    %v445 = vshrl.u32 %v444, 7
    %v446 = vsub.s32 4, %v445
    %v447 = vrot.slane %v426, %v446
    %v448 = vlaneseq
    %v449 = vshrl.u32 %v448, 7
    %v450 = vsub.s32 5, %v449
    %v451 = vrot.slane %v426, %v450
    %v452 = vlaneseq
    %v453 = vshrl.u32 %v452, 7
    %v454 = vsub.s32 6, %v453
    %v455 = vrot.slane %v426, %v454
    %v456 = vlaneseq
    %v457 = vshrl.u32 %v456, 7
    %v458 = vsub.s32 7, %v457
    %v459 = vrot.slane %v426, %v458
    %468 = vmatprep.subr.mxu0 %v299
    %469 = vmatpush1.msra.mxu0 %v298
    %470 = vmatprep.subr.mxu0 %v307
    %471 = vmatpush1.msra.mxu0 %v306
    %472 = vmatprep.subr.mxu0 %v315
    %473 = vmatpush1.msra.mxu0 %v314
    %474 = vmatprep.subr.mxu0 %v323
    %475 = vmatpush1.msra.mxu0 %v322
    %476 = vmatprep.subr.mxu0 %v331
    %477 = vmatpush1.msra.mxu0 %v330
    %478 = vmatprep.subr.mxu0 %v339
    %479 = vmatpush1.msra.mxu0 %v338
    %480 = vmatprep.subr.mxu0 %v347
    %481 = vmatpush1.msra.mxu0 %v346
    %482 = vmatprep.subr.mxu0 %v355
    %483 = vmatpush1.msra.mxu0 %v354
    %484 = vmatprep.subr.mxu0 %v363
    %485 = vmatpush1.msra.mxu0 %v362
    %486 = vmatprep.subr.mxu0 %v371
    %487 = vmatpush1.msra.mxu0 %v370
    %488 = vmatprep.subr.mxu0 %v379
    %489 = vmatpush1.msra.mxu0 %v378
    %490 = vmatprep.subr.mxu0 %v387
    %491 = vmatpush1.msra.mxu0 %v386
    %492 = vmatprep.subr.mxu0 %v395
    %493 = vmatpush1.msra.mxu0 %v394
    %494 = vmatprep.subr.mxu0 %v403
    %495 = vmatpush1.msra.mxu0 %v402
    %496 = vmatprep.subr.mxu0 %v411
    %497 = vmatpush1.msra.mxu0 %v410
    %498 = vmatprep.subr.mxu0 %v419
    %499 = vmatpush1.msra.mxu0 %v418
    %500 = vmatprep.subr.mxu0 0.0
    %501 = vmatpush1.msra.mxu0 0.0
    %502 = vmatprep.subr.mxu0 0.0
    %503 = vmatpush1.msra.mxu0 0.0
    %504 = vmatprep.subr.mxu0 0.0
    %505 = vmatpush1.msra.mxu0 0.0
    %506 = vmatprep.subr.mxu0 0.0
    %507 = vmatpush1.msra.mxu0 0.0
    %508 = vmatprep.subr.mxu0 0.0
    %509 = vmatpush1.msra.mxu0 0.0
    %510 = vmatprep.subr.mxu0 0.0
    %511 = vmatpush1.msra.mxu0 0.0
    %512 = vmatprep.subr.mxu0 0.0
    %513 = vmatpush1.msra.mxu0 0.0
    %514 = vmatprep.subr.mxu0 0.0
    %515 = vmatpush1.msra.mxu0 0.0
    %516 = vmatprep.subr.mxu0 0.0
    %517 = vmatpush1.msra.mxu0 0.0
    %518 = vmatprep.subr.mxu0 0.0
    %519 = vmatpush1.msra.mxu0 0.0
    %520 = vmatprep.subr.mxu0 0.0
    %521 = vmatpush1.msra.mxu0 0.0
    %522 = vmatprep.subr.mxu0 0.0
    %523 = vmatpush1.msra.mxu0 0.0
    %524 = vmatprep.subr.mxu0 0.0
    %525 = vmatpush1.msra.mxu0 0.0
    %526 = vmatprep.subr.mxu0 0.0
    %527 = vmatpush1.msra.mxu0 0.0
    %528 = vmatprep.subr.mxu0 0.0
    %529 = vmatpush1.msra.mxu0 0.0
    %530 = vmatprep.subr.mxu0 0.0
    %531 = vmatpush1.msra.mxu0 0.0
    %532 = vmatprep.mubr.f32.mxu0 0.0
    %533 = vmatmul.mubr.f32.gmra.mrb[0].mxu0 %v260
    %v534 = vpop.f32.mrb[0].mxu0
    %v535 = vadd.f32 %v431, %v534
    %v536 = vpop.f32.mrb[0].mxu0
    %v537 = vadd.f32 %v435, %v536
    %538 = vmatprep.mubr.f32.mxu0 0.0
    %539 = vmatmul.mubr.f32.gmra.mrb[0].mxu0 %v265
    %v540 = vpop.f32.mrb[0].mxu0
    %v541 = vadd.f32 %v431, %v540
    %v542 = vpop.f32.mrb[0].mxu0
    %v543 = vadd.f32 %v435, %v542
    %544 = vmatprep.mubr.f32.mxu0 0.0
    %545 = vmatmul.mubr.f32.gmra.mrb[0].mxu0 %v270
    %v546 = vpop.f32.mrb[0].mxu0
    %v547 = vadd.f32 %v431, %v546
    %v548 = vpop.f32.mrb[0].mxu0
    %v549 = vadd.f32 %v435, %v548
    %550 = vmatprep.mubr.f32.mxu0 0.0
    %551 = vmatmul.mubr.f32.gmra.mrb[0].mxu0 %v275
    %v552 = vpop.f32.mrb[0].mxu0
    %v553 = vadd.f32 %v431, %v552
    %v554 = vpop.f32.mrb[0].mxu0
    %v555 = vadd.f32 %v435, %v554
    %556 = vmatprep.mubr.f32.mxu0 0.0
    %557 = vmatmul.mubr.f32.gmra.mrb[0].mxu0 %v280
    %v558 = vpop.f32.mrb[0].mxu0
    %v559 = vadd.f32 %v431, %v558
    %v560 = vpop.f32.mrb[0].mxu0
    %v561 = vadd.f32 %v435, %v560
    %562 = vmatprep.mubr.f32.mxu0 0.0
    %563 = vmatmul.mubr.f32.gmra.mrb[0].mxu0 %v285
    %v564 = vpop.f32.mrb[0].mxu0
    %v565 = vadd.f32 %v431, %v564
    %v566 = vpop.f32.mrb[0].mxu0
    %v567 = vadd.f32 %v435, %v566
    %568 = vmatprep.mubr.f32.mxu0 0.0
    %569 = vmatmul.mubr.f32.gmra.mrb[0].mxu0 %v290
    %v570 = vpop.f32.mrb[0].mxu0
    %v571 = vadd.f32 %v431, %v570
    %v572 = vpop.f32.mrb[0].mxu0
    %v573 = vadd.f32 %v435, %v572
    %574 = vmatprep.mubr.f32.mxu0 0.0
    %575 = vmatmul.mubr.f32.gmra.mrb[0].mxu0 %v295
    %v576 = vpop.f32.mrb[0].mxu0
    %v577 = vadd.f32 %v431, %v576
    %v578 = vpop.f32.mrb[0].mxu0
    %v579 = vadd.f32 %v435, %v578
    %580 = vdwg.mxu0
    %581 = vmatprep.subr.mxu0 %v301
    %582 = vmatpush1.msra.mxu0 %v300
    %583 = vmatprep.subr.mxu0 %v309
    %584 = vmatpush1.msra.mxu0 %v308
    %585 = vmatprep.subr.mxu0 %v317
    %586 = vmatpush1.msra.mxu0 %v316
    %587 = vmatprep.subr.mxu0 %v325
    %588 = vmatpush1.msra.mxu0 %v324
    %589 = vmatprep.subr.mxu0 %v333
    %590 = vmatpush1.msra.mxu0 %v332
    %591 = vmatprep.subr.mxu0 %v341
    %592 = vmatpush1.msra.mxu0 %v340
    %593 = vmatprep.subr.mxu0 %v349
    %594 = vmatpush1.msra.mxu0 %v348
    %595 = vmatprep.subr.mxu0 %v357
    %596 = vmatpush1.msra.mxu0 %v356
    %597 = vmatprep.subr.mxu0 %v365
    %598 = vmatpush1.msra.mxu0 %v364
    %599 = vmatprep.subr.mxu0 %v373
    %600 = vmatpush1.msra.mxu0 %v372
    %601 = vmatprep.subr.mxu0 %v381
    %602 = vmatpush1.msra.mxu0 %v380
    %603 = vmatprep.subr.mxu0 %v389
    %604 = vmatpush1.msra.mxu0 %v388
    %605 = vmatprep.subr.mxu0 %v397
    %606 = vmatpush1.msra.mxu0 %v396
    %607 = vmatprep.subr.mxu0 %v405
    %608 = vmatpush1.msra.mxu0 %v404
    %609 = vmatprep.subr.mxu0 %v413
    %610 = vmatpush1.msra.mxu0 %v412
    %611 = vmatprep.subr.mxu0 %v421
    %612 = vmatpush1.msra.mxu0 %v420
    %613 = vmatprep.subr.mxu0 0.0
    %614 = vmatpush1.msra.mxu0 0.0
    %615 = vmatprep.subr.mxu0 0.0
    %616 = vmatpush1.msra.mxu0 0.0
    %617 = vmatprep.subr.mxu0 0.0
    %618 = vmatpush1.msra.mxu0 0.0
    %619 = vmatprep.subr.mxu0 0.0
    %620 = vmatpush1.msra.mxu0 0.0
    %621 = vmatprep.subr.mxu0 0.0
    %622 = vmatpush1.msra.mxu0 0.0
    %623 = vmatprep.subr.mxu0 0.0
    %624 = vmatpush1.msra.mxu0 0.0
    %625 = vmatprep.subr.mxu0 0.0
    %626 = vmatpush1.msra.mxu0 0.0
    %627 = vmatprep.subr.mxu0 0.0
    %628 = vmatpush1.msra.mxu0 0.0
    %629 = vmatprep.subr.mxu0 0.0
    %630 = vmatpush1.msra.mxu0 0.0
    %631 = vmatprep.subr.mxu0 0.0
    %632 = vmatpush1.msra.mxu0 0.0
    %633 = vmatprep.subr.mxu0 0.0
    %634 = vmatpush1.msra.mxu0 0.0
    %635 = vmatprep.subr.mxu0 0.0
    %636 = vmatpush1.msra.mxu0 0.0
    %637 = vmatprep.subr.mxu0 0.0
    %638 = vmatpush1.msra.mxu0 0.0
    %639 = vmatprep.subr.mxu0 0.0
    %640 = vmatpush1.msra.mxu0 0.0
    %641 = vmatprep.subr.mxu0 0.0
    %642 = vmatpush1.msra.mxu0 0.0
    %643 = vmatprep.subr.mxu0 0.0
    %644 = vmatpush1.msra.mxu0 0.0
    %645 = vmatprep.mubr.f32.mxu0 0.0
    %646 = vmatmul.mubr.f32.gmra.mrb[0].mxu0 %v260
    %v647 = vpop.f32.mrb[0].mxu0
    %v648 = vadd.f32 %v439, %v647
    %v649 = vpop.f32.mrb[0].mxu0
    %v650 = vadd.f32 %v443, %v649
    %651 = vmatprep.mubr.f32.mxu0 0.0
    %652 = vmatmul.mubr.f32.gmra.mrb[0].mxu0 %v265
    %v653 = vpop.f32.mrb[0].mxu0
    %v654 = vadd.f32 %v439, %v653
    %v655 = vpop.f32.mrb[0].mxu0
    %v656 = vadd.f32 %v443, %v655
    %657 = vmatprep.mubr.f32.mxu0 0.0
    %658 = vmatmul.mubr.f32.gmra.mrb[0].mxu0 %v270
    %v659 = vpop.f32.mrb[0].mxu0
    %v660 = vadd.f32 %v439, %v659
    %v661 = vpop.f32.mrb[0].mxu0
    %v662 = vadd.f32 %v443, %v661
    %663 = vmatprep.mubr.f32.mxu0 0.0
    %664 = vmatmul.mubr.f32.gmra.mrb[0].mxu0 %v275
    %v665 = vpop.f32.mrb[0].mxu0
    %v666 = vadd.f32 %v439, %v665
    %v667 = vpop.f32.mrb[0].mxu0
    %v668 = vadd.f32 %v443, %v667
    %669 = vmatprep.mubr.f32.mxu0 0.0
    %670 = vmatmul.mubr.f32.gmra.mrb[0].mxu0 %v280
    %v671 = vpop.f32.mrb[0].mxu0
    %v672 = vadd.f32 %v439, %v671
    %v673 = vpop.f32.mrb[0].mxu0
    %v674 = vadd.f32 %v443, %v673
    %675 = vmatprep.mubr.f32.mxu0 0.0
    %676 = vmatmul.mubr.f32.gmra.mrb[0].mxu0 %v285
    %v677 = vpop.f32.mrb[0].mxu0
    %v678 = vadd.f32 %v439, %v677
    %v679 = vpop.f32.mrb[0].mxu0
    %v680 = vadd.f32 %v443, %v679
    %681 = vmatprep.mubr.f32.mxu0 0.0
    %682 = vmatmul.mubr.f32.gmra.mrb[0].mxu0 %v290
    %v683 = vpop.f32.mrb[0].mxu0
    %v684 = vadd.f32 %v439, %v683
    %v685 = vpop.f32.mrb[0].mxu0
    %v686 = vadd.f32 %v443, %v685
    %687 = vmatprep.mubr.f32.mxu0 0.0
    %688 = vmatmul.mubr.f32.gmra.mrb[0].mxu0 %v295
    %v689 = vpop.f32.mrb[0].mxu0
    %v690 = vadd.f32 %v439, %v689
    %v691 = vpop.f32.mrb[0].mxu0
    %v692 = vadd.f32 %v443, %v691
    %693 = vdwg.mxu0
    %694 = vmatprep.subr.mxu0 %v303
    %695 = vmatpush1.msra.mxu0 %v302
    %696 = vmatprep.subr.mxu0 %v311
    %697 = vmatpush1.msra.mxu0 %v310
    %698 = vmatprep.subr.mxu0 %v319
    %699 = vmatpush1.msra.mxu0 %v318
    %700 = vmatprep.subr.mxu0 %v327
    %701 = vmatpush1.msra.mxu0 %v326
    %702 = vmatprep.subr.mxu0 %v335
    %703 = vmatpush1.msra.mxu0 %v334
    %704 = vmatprep.subr.mxu0 %v343
    %705 = vmatpush1.msra.mxu0 %v342
    %706 = vmatprep.subr.mxu0 %v351
    %707 = vmatpush1.msra.mxu0 %v350
    %708 = vmatprep.subr.mxu0 %v359
    %709 = vmatpush1.msra.mxu0 %v358
    %710 = vmatprep.subr.mxu0 %v367
    %711 = vmatpush1.msra.mxu0 %v366
    %712 = vmatprep.subr.mxu0 %v375
    %713 = vmatpush1.msra.mxu0 %v374
    %714 = vmatprep.subr.mxu0 %v383
    %715 = vmatpush1.msra.mxu0 %v382
    %716 = vmatprep.subr.mxu0 %v391
    %717 = vmatpush1.msra.mxu0 %v390
    %718 = vmatprep.subr.mxu0 %v399
    %719 = vmatpush1.msra.mxu0 %v398
    %720 = vmatprep.subr.mxu0 %v407
    %721 = vmatpush1.msra.mxu0 %v406
    %722 = vmatprep.subr.mxu0 %v415
    %723 = vmatpush1.msra.mxu0 %v414
    %724 = vmatprep.subr.mxu0 %v423
    %725 = vmatpush1.msra.mxu0 %v422
    %726 = vmatprep.subr.mxu0 0.0
    %727 = vmatpush1.msra.mxu0 0.0
    %728 = vmatprep.subr.mxu0 0.0
    %729 = vmatpush1.msra.mxu0 0.0
    %730 = vmatprep.subr.mxu0 0.0
    %731 = vmatpush1.msra.mxu0 0.0
    %732 = vmatprep.subr.mxu0 0.0
    %733 = vmatpush1.msra.mxu0 0.0
    %734 = vmatprep.subr.mxu0 0.0
    %735 = vmatpush1.msra.mxu0 0.0
    %736 = vmatprep.subr.mxu0 0.0
    %737 = vmatpush1.msra.mxu0 0.0
    %738 = vmatprep.subr.mxu0 0.0
    %739 = vmatpush1.msra.mxu0 0.0
    %740 = vmatprep.subr.mxu0 0.0
    %741 = vmatpush1.msra.mxu0 0.0
    %742 = vmatprep.subr.mxu0 0.0
    %743 = vmatpush1.msra.mxu0 0.0
    %744 = vmatprep.subr.mxu0 0.0
    %745 = vmatpush1.msra.mxu0 0.0
    %746 = vmatprep.subr.mxu0 0.0
    %747 = vmatpush1.msra.mxu0 0.0
    %748 = vmatprep.subr.mxu0 0.0
    %749 = vmatpush1.msra.mxu0 0.0
    %750 = vmatprep.subr.mxu0 0.0
    %751 = vmatpush1.msra.mxu0 0.0
    %752 = vmatprep.subr.mxu0 0.0
    %753 = vmatpush1.msra.mxu0 0.0
    %754 = vmatprep.subr.mxu0 0.0
    %755 = vmatpush1.msra.mxu0 0.0
    %756 = vmatprep.subr.mxu0 0.0
    %757 = vmatpush1.msra.mxu0 0.0
    %758 = vmatprep.mubr.f32.mxu0 0.0
    %759 = vmatmul.mubr.f32.gmra.mrb[0].mxu0 %v260
    %v760 = vpop.f32.mrb[0].mxu0
    %v761 = vadd.f32 %v447, %v760
    %v762 = vpop.f32.mrb[0].mxu0
    %v763 = vadd.f32 %v451, %v762
    %764 = vmatprep.mubr.f32.mxu0 0.0
    %765 = vmatmul.mubr.f32.gmra.mrb[0].mxu0 %v265
    %v766 = vpop.f32.mrb[0].mxu0
    %v767 = vadd.f32 %v447, %v766
    %v768 = vpop.f32.mrb[0].mxu0
    %v769 = vadd.f32 %v451, %v768
    %770 = vmatprep.mubr.f32.mxu0 0.0
    %771 = vmatmul.mubr.f32.gmra.mrb[0].mxu0 %v270
    %v772 = vpop.f32.mrb[0].mxu0
    %v773 = vadd.f32 %v447, %v772
    %v774 = vpop.f32.mrb[0].mxu0
    %v775 = vadd.f32 %v451, %v774
    %776 = vmatprep.mubr.f32.mxu0 0.0
    %777 = vmatmul.mubr.f32.gmra.mrb[0].mxu0 %v275
    %v778 = vpop.f32.mrb[0].mxu0
    %v779 = vadd.f32 %v447, %v778
    %v780 = vpop.f32.mrb[0].mxu0
    %v781 = vadd.f32 %v451, %v780
    %782 = vmatprep.mubr.f32.mxu0 0.0
    %783 = vmatmul.mubr.f32.gmra.mrb[0].mxu0 %v280
    %v784 = vpop.f32.mrb[0].mxu0
    %v785 = vadd.f32 %v447, %v784
    %v786 = vpop.f32.mrb[0].mxu0
    %v787 = vadd.f32 %v451, %v786
    %788 = vmatprep.mubr.f32.mxu0 0.0
    %789 = vmatmul.mubr.f32.gmra.mrb[0].mxu0 %v285
    %v790 = vpop.f32.mrb[0].mxu0
    %v791 = vadd.f32 %v447, %v790
    %v792 = vpop.f32.mrb[0].mxu0
    %v793 = vadd.f32 %v451, %v792
    %794 = vmatprep.mubr.f32.mxu0 0.0
    %795 = vmatmul.mubr.f32.gmra.mrb[0].mxu0 %v290
    %v796 = vpop.f32.mrb[0].mxu0
    %v797 = vadd.f32 %v447, %v796
    %v798 = vpop.f32.mrb[0].mxu0
    %v799 = vadd.f32 %v451, %v798
    %800 = vmatprep.mubr.f32.mxu0 0.0
    %801 = vmatmul.mubr.f32.gmra.mrb[0].mxu0 %v295
    %v802 = vpop.f32.mrb[0].mxu0
    %v803 = vadd.f32 %v447, %v802
    %v804 = vpop.f32.mrb[0].mxu0
    %v805 = vadd.f32 %v451, %v804
    %806 = vdwg.mxu0
    %807 = vmatprep.subr.mxu0 %v305
    %808 = vmatpush1.msra.mxu0 %v304
    %809 = vmatprep.subr.mxu0 %v313
    %810 = vmatpush1.msra.mxu0 %v312
    %811 = vmatprep.subr.mxu0 %v321
    %812 = vmatpush1.msra.mxu0 %v320
    %813 = vmatprep.subr.mxu0 %v329
    %814 = vmatpush1.msra.mxu0 %v328
    %815 = vmatprep.subr.mxu0 %v337
    %816 = vmatpush1.msra.mxu0 %v336
    %817 = vmatprep.subr.mxu0 %v345
    %818 = vmatpush1.msra.mxu0 %v344
    %819 = vmatprep.subr.mxu0 %v353
    %820 = vmatpush1.msra.mxu0 %v352
    %821 = vmatprep.subr.mxu0 %v361
    %822 = vmatpush1.msra.mxu0 %v360
    %823 = vmatprep.subr.mxu0 %v369
    %824 = vmatpush1.msra.mxu0 %v368
    %825 = vmatprep.subr.mxu0 %v377
    %826 = vmatpush1.msra.mxu0 %v376
    %827 = vmatprep.subr.mxu0 %v385
    %828 = vmatpush1.msra.mxu0 %v384
    %829 = vmatprep.subr.mxu0 %v393
    %830 = vmatpush1.msra.mxu0 %v392
    %831 = vmatprep.subr.mxu0 %v401
    %832 = vmatpush1.msra.mxu0 %v400
    %833 = vmatprep.subr.mxu0 %v409
    %834 = vmatpush1.msra.mxu0 %v408
    %835 = vmatprep.subr.mxu0 %v417
    %836 = vmatpush1.msra.mxu0 %v416
    %837 = vmatprep.subr.mxu0 %v425
    %838 = vmatpush1.msra.mxu0 %v424
    %839 = vmatprep.subr.mxu0 0.0
    %840 = vmatpush1.msra.mxu0 0.0
    %841 = vmatprep.subr.mxu0 0.0
    %842 = vmatpush1.msra.mxu0 0.0
    %843 = vmatprep.subr.mxu0 0.0
    %844 = vmatpush1.msra.mxu0 0.0
    %845 = vmatprep.subr.mxu0 0.0
    %846 = vmatpush1.msra.mxu0 0.0
    %847 = vmatprep.subr.mxu0 0.0
    %848 = vmatpush1.msra.mxu0 0.0
    %849 = vmatprep.subr.mxu0 0.0
    %850 = vmatpush1.msra.mxu0 0.0
    %851 = vmatprep.subr.mxu0 0.0
    %852 = vmatpush1.msra.mxu0 0.0
    %853 = vmatprep.subr.mxu0 0.0
    %854 = vmatpush1.msra.mxu0 0.0
    %855 = vmatprep.subr.mxu0 0.0
    %856 = vmatpush1.msra.mxu0 0.0
    %857 = vmatprep.subr.mxu0 0.0
    %858 = vmatpush1.msra.mxu0 0.0
    %859 = vmatprep.subr.mxu0 0.0
    %860 = vmatpush1.msra.mxu0 0.0
    %861 = vmatprep.subr.mxu0 0.0
    %862 = vmatpush1.msra.mxu0 0.0
    %863 = vmatprep.subr.mxu0 0.0
    %864 = vmatpush1.msra.mxu0 0.0
    %865 = vmatprep.subr.mxu0 0.0
    %866 = vmatpush1.msra.mxu0 0.0
    %867 = vmatprep.subr.mxu0 0.0
    %868 = vmatpush1.msra.mxu0 0.0
    %869 = vmatprep.subr.mxu0 0.0
    %870 = vmatpush1.msra.mxu0 0.0
    %871 = vmatprep.mubr.f32.mxu0 0.0
    %872 = vmatmul.mubr.f32.gmra.mrb[0].mxu0 %v260
    %v873 = vpop.f32.mrb[0].mxu0
    %v874 = vadd.f32 %v455, %v873
    %v875 = vpop.f32.mrb[0].mxu0
    %v876 = vadd.f32 %v459, %v875
    %877 = vmatprep.mubr.f32.mxu0 0.0
    %878 = vmatmul.mubr.f32.gmra.mrb[0].mxu0 %v265
    %v879 = vpop.f32.mrb[0].mxu0
    %v880 = vadd.f32 %v455, %v879
    %v881 = vpop.f32.mrb[0].mxu0
    %v882 = vadd.f32 %v459, %v881
    %883 = vmatprep.mubr.f32.mxu0 0.0
    %884 = vmatmul.mubr.f32.gmra.mrb[0].mxu0 %v270
    %v885 = vpop.f32.mrb[0].mxu0
    %v886 = vadd.f32 %v455, %v885
    %v887 = vpop.f32.mrb[0].mxu0
    %v888 = vadd.f32 %v459, %v887
    %889 = vmatprep.mubr.f32.mxu0 0.0
    %890 = vmatmul.mubr.f32.gmra.mrb[0].mxu0 %v275
    %v891 = vpop.f32.mrb[0].mxu0
    %v892 = vadd.f32 %v455, %v891
    %v893 = vpop.f32.mrb[0].mxu0
    %v894 = vadd.f32 %v459, %v893
    %895 = vmatprep.mubr.f32.mxu0 0.0
    %896 = vmatmul.mubr.f32.gmra.mrb[0].mxu0 %v280
    %v897 = vpop.f32.mrb[0].mxu0
    %v898 = vadd.f32 %v455, %v897
    %v899 = vpop.f32.mrb[0].mxu0
    %v900 = vadd.f32 %v459, %v899
    %901 = vmatprep.mubr.f32.mxu0 0.0
    %902 = vmatmul.mubr.f32.gmra.mrb[0].mxu0 %v285
    %v903 = vpop.f32.mrb[0].mxu0
    %v904 = vadd.f32 %v455, %v903
    %v905 = vpop.f32.mrb[0].mxu0
    %v906 = vadd.f32 %v459, %v905
    %907 = vmatprep.mubr.f32.mxu0 0.0
    %908 = vmatmul.mubr.f32.gmra.mrb[0].mxu0 %v290
    %v909 = vpop.f32.mrb[0].mxu0
    %v910 = vadd.f32 %v455, %v909
    %v911 = vpop.f32.mrb[0].mxu0
    %v912 = vadd.f32 %v459, %v911
    %913 = vmatprep.mubr.f32.mxu0 0.0
    %914 = vmatmul.mubr.f32.gmra.mrb[0].mxu0 %v295
    %v915 = vpop.f32.mrb[0].mxu0
    %v916 = vadd.f32 %v455, %v915
    %v917 = vpop.f32.mrb[0].mxu0
    %v918 = vadd.f32 %v459, %v917
    %919 = vdwg.mxu0
    %920 = vst [vmem:[#allocation2] sm:$0xff] %v535
    %921 = vst [vmem:[#allocation2 + $0x8] sm:$0xff] %v537
    %922 = vst [vmem:[#allocation2 + $0x10] sm:$0xff] %v648
    %923 = vst [vmem:[#allocation2 + $0x18] sm:$0xff] %v650
    %924 = vst [vmem:[#allocation2 + $0x20] sm:$0xff] %v761
    %925 = vst [vmem:[#allocation2 + $0x28] sm:$0xff] %v763
    %926 = vst [vmem:[#allocation2 + $0x30] sm:$0xff] %v874
    %927 = vst [vmem:[#allocation2 + $0x38] sm:$0xff] %v876
    %928 = vst [vmem:[#allocation2 + $0x40] sm:$0xff] %v541
    %929 = vst [vmem:[#allocation2 + $0x48] sm:$0xff] %v543
    %930 = vst [vmem:[#allocation2 + $0x50] sm:$0xff] %v654
    %931 = vst [vmem:[#allocation2 + $0x58] sm:$0xff] %v656
    %932 = vst [vmem:[#allocation2 + $0x60] sm:$0xff] %v767
    %933 = vst [vmem:[#allocation2 + $0x68] sm:$0xff] %v769
    %934 = vst [vmem:[#allocation2 + $0x70] sm:$0xff] %v880
    %935 = vst [vmem:[#allocation2 + $0x78] sm:$0xff] %v882
    %936 = vst [vmem:[#allocation2 + $0x80] sm:$0xff] %v547
    %937 = vst [vmem:[#allocation2 + $0x88] sm:$0xff] %v549
    %938 = vst [vmem:[#allocation2 + $0x90] sm:$0xff] %v660
    %939 = vst [vmem:[#allocation2 + $0x98] sm:$0xff] %v662
    %940 = vst [vmem:[#allocation2 + $0xa0] sm:$0xff] %v773
    %941 = vst [vmem:[#allocation2 + $0xa8] sm:$0xff] %v775
    %942 = vst [vmem:[#allocation2 + $0xb0] sm:$0xff] %v886
    %943 = vst [vmem:[#allocation2 + $0xb8] sm:$0xff] %v888
    %944 = vst [vmem:[#allocation2 + $0xc0] sm:$0xff] %v553
    %945 = vst [vmem:[#allocation2 + $0xc8] sm:$0xff] %v555
    %946 = vst [vmem:[#allocation2 + $0xd0] sm:$0xff] %v666
    %947 = vst [vmem:[#allocation2 + $0xd8] sm:$0xff] %v668
    %948 = vst [vmem:[#allocation2 + $0xe0] sm:$0xff] %v779
    %949 = vst [vmem:[#allocation2 + $0xe8] sm:$0xff] %v781
    %950 = vst [vmem:[#allocation2 + $0xf0] sm:$0xff] %v892
    %951 = vst [vmem:[#allocation2 + $0xf8] sm:$0xff] %v894
    %952 = vst [vmem:[#allocation2 + $0x100] sm:$0xff] %v559
    %953 = vst [vmem:[#allocation2 + $0x108] sm:$0xff] %v561
    %954 = vst [vmem:[#allocation2 + $0x110] sm:$0xff] %v672
    %955 = vst [vmem:[#allocation2 + $0x118] sm:$0xff] %v674
    %956 = vst [vmem:[#allocation2 + $0x120] sm:$0xff] %v785
    %957 = vst [vmem:[#allocation2 + $0x128] sm:$0xff] %v787
    %958 = vst [vmem:[#allocation2 + $0x130] sm:$0xff] %v898
    %959 = vst [vmem:[#allocation2 + $0x138] sm:$0xff] %v900
    %960 = vst [vmem:[#allocation2 + $0x140] sm:$0xff] %v565
    %961 = vst [vmem:[#allocation2 + $0x148] sm:$0xff] %v567
    %962 = vst [vmem:[#allocation2 + $0x150] sm:$0xff] %v678
    %963 = vst [vmem:[#allocation2 + $0x158] sm:$0xff] %v680
    %964 = vst [vmem:[#allocation2 + $0x160] sm:$0xff] %v791
    %965 = vst [vmem:[#allocation2 + $0x168] sm:$0xff] %v793
    %966 = vst [vmem:[#allocation2 + $0x170] sm:$0xff] %v904
    %967 = vst [vmem:[#allocation2 + $0x178] sm:$0xff] %v906
    %968 = vst [vmem:[#allocation2 + $0x180] sm:$0xff] %v571
    %969 = vst [vmem:[#allocation2 + $0x188] sm:$0xff] %v573
    %970 = vst [vmem:[#allocation2 + $0x190] sm:$0xff] %v684
    %971 = vst [vmem:[#allocation2 + $0x198] sm:$0xff] %v686
    %972 = vst [vmem:[#allocation2 + $0x1a0] sm:$0xff] %v797
    %973 = vst [vmem:[#allocation2 + $0x1a8] sm:$0xff] %v799
    %974 = vst [vmem:[#allocation2 + $0x1b0] sm:$0xff] %v910
    %975 = vst [vmem:[#allocation2 + $0x1b8] sm:$0xff] %v912
    %976 = vst [vmem:[#allocation2 + $0x1c0] sm:$0xff] %v577
    %977 = vst [vmem:[#allocation2 + $0x1c8] sm:$0xff] %v579
    %978 = vst [vmem:[#allocation2 + $0x1d0] sm:$0xff] %v690
    %979 = vst [vmem:[#allocation2 + $0x1d8] sm:$0xff] %v692
    %980 = vst [vmem:[#allocation2 + $0x1e0] sm:$0xff] %v803
    %981 = vst [vmem:[#allocation2 + $0x1e8] sm:$0xff] %v805
    %982 = vst [vmem:[#allocation2 + $0x1f0] sm:$0xff] %v916
    %983 = vst [vmem:[#allocation2 + $0x1f8] sm:$0xff] %v918
    %v984 = vld [vmem:[%s1] sm:$0xff]
    %v985 = vld [vmem:[#allocation2] sm:$0xff]
    %v986 = vld [vmem:[#allocation2 + $0x8] sm:$0xff]
    %v987 = vld [vmem:[#allocation2 + $0x10] sm:$0xff]
    %v988 = vld [vmem:[#allocation2 + $0x18] sm:$0xff]
    %v989 = vld [vmem:[#allocation9] sm:$0xff]
    %v990 = vld [vmem:[#allocation9 + $0x8] sm:$0xff]
    %v991 = vld [vmem:[#allocation9 + $0x10] sm:$0xff]
    %v992 = vld [vmem:[#allocation9 + $0x18] sm:$0xff]
    %v993 = vld [vmem:[#allocation9 + $0x20] sm:$0xff]
    %v994 = vld [vmem:[#allocation9 + $0x28] sm:$0xff]
    %v995 = vld [vmem:[#allocation9 + $0x30] sm:$0xff]
    %v996 = vld [vmem:[#allocation9 + $0x38] sm:$0xff]
    %v997 = vld [vmem:[#allocation9 + $0x40] sm:$0xff]
    %v998 = vld [vmem:[#allocation9 + $0x48] sm:$0xff]
    %v999 = vld [vmem:[#allocation9 + $0x50] sm:$0xff]
    %v1000 = vld [vmem:[#allocation9 + $0x58] sm:$0xff]
    %v1001 = vld [vmem:[#allocation9 + $0x60] sm:$0xff]
    %v1002 = vld [vmem:[#allocation9 + $0x68] sm:$0xff]
    %v1003 = vld [vmem:[#allocation9 + $0x70] sm:$0xff]
    %v1004 = vld [vmem:[#allocation9 + $0x78] sm:$0xff]
    %v1005 = vld [vmem:[#allocation9 + $0x80] sm:$0xff]
    %v1006 = vld [vmem:[#allocation9 + $0x88] sm:$0xff]
    %v1007 = vld [vmem:[#allocation9 + $0x90] sm:$0xff]
    %v1008 = vld [vmem:[#allocation9 + $0x98] sm:$0xff]
    %v1009 = vld [vmem:[#allocation9 + $0xa0] sm:$0xff]
    %v1010 = vld [vmem:[#allocation9 + $0xa8] sm:$0xff]
    %v1011 = vld [vmem:[#allocation9 + $0xb0] sm:$0xff]
    %v1012 = vld [vmem:[#allocation9 + $0xb8] sm:$0xff]
    %v1013 = vld [vmem:[#allocation9 + $0xc0] sm:$0xff]
    %v1014 = vld [vmem:[#allocation9 + $0xc8] sm:$0xff]
    %v1015 = vld [vmem:[#allocation9 + $0xd0] sm:$0xff]
    %v1016 = vld [vmem:[#allocation9 + $0xd8] sm:$0xff]
    %v1017 = vld [vmem:[#allocation9 + $0xe0] sm:$0xff]
    %v1018 = vld [vmem:[#allocation9 + $0xe8] sm:$0xff]
    %v1019 = vld [vmem:[#allocation9 + $0xf0] sm:$0xff]
    %v1020 = vld [vmem:[#allocation9 + $0xf8] sm:$0xff]
    %v1021 = vld [vmem:[#allocation9 + $0x100] sm:$0xff]
    %v1022 = vld [vmem:[#allocation9 + $0x108] sm:$0xff]
    %v1023 = vld [vmem:[#allocation9 + $0x110] sm:$0xff]
    %v1024 = vld [vmem:[#allocation9 + $0x118] sm:$0xff]
    %v1025 = vld [vmem:[#allocation9 + $0x120] sm:$0xff]
    %v1026 = vld [vmem:[#allocation9 + $0x128] sm:$0xff]
    %v1027 = vld [vmem:[#allocation9 + $0x130] sm:$0xff]
    %v1028 = vld [vmem:[#allocation9 + $0x138] sm:$0xff]
    %v1029 = vld [vmem:[#allocation9 + $0x140] sm:$0xff]
    %v1030 = vld [vmem:[#allocation9 + $0x148] sm:$0xff]
    %v1031 = vld [vmem:[#allocation9 + $0x150] sm:$0xff]
    %v1032 = vld [vmem:[#allocation9 + $0x158] sm:$0xff]
    %v1033 = vld [vmem:[#allocation9 + $0x160] sm:$0xff]
    %v1034 = vld [vmem:[#allocation9 + $0x168] sm:$0xff]
    %v1035 = vld [vmem:[#allocation9 + $0x170] sm:$0xff]
    %v1036 = vld [vmem:[#allocation9 + $0x178] sm:$0xff]
    %v1037 = vld [vmem:[#allocation9 + $0x180] sm:$0xff]
    %v1038 = vld [vmem:[#allocation9 + $0x188] sm:$0xff]
    %v1039 = vld [vmem:[#allocation9 + $0x190] sm:$0xff]
    %v1040 = vld [vmem:[#allocation9 + $0x198] sm:$0xff]
    %v1041 = vld [vmem:[#allocation9 + $0x1a0] sm:$0xff]
    %v1042 = vld [vmem:[#allocation9 + $0x1a8] sm:$0xff]
    %v1043 = vld [vmem:[#allocation9 + $0x1b0] sm:$0xff]
    %v1044 = vld [vmem:[#allocation9 + $0x1b8] sm:$0xff]
    %v1045 = vld [vmem:[#allocation9 + $0x1c0] sm:$0xff]
    %v1046 = vld [vmem:[#allocation9 + $0x1c8] sm:$0xff]
    %v1047 = vld [vmem:[#allocation9 + $0x1d0] sm:$0xff]
    %v1048 = vld [vmem:[#allocation9 + $0x1d8] sm:$0xff]
    %v1049 = vld [vmem:[#allocation9 + $0x1e0] sm:$0xff]
    %v1050 = vld [vmem:[#allocation9 + $0x1e8] sm:$0xff]
    %v1051 = vld [vmem:[#allocation9 + $0x1f0] sm:$0xff]
    %v1052 = vld [vmem:[#allocation9 + $0x1f8] sm:$0xff]
    %1053 = vmatprep.subr.mxu0 %v990
    %1054 = vmatpush1.msra.mxu0 %v989
    %1055 = vmatprep.subr.mxu0 %v994
    %1056 = vmatpush1.msra.mxu0 %v993
    %1057 = vmatprep.subr.mxu0 %v998
    %1058 = vmatpush1.msra.mxu0 %v997
    %1059 = vmatprep.subr.mxu0 %v1002
    %1060 = vmatpush1.msra.mxu0 %v1001
    %1061 = vmatprep.subr.mxu0 %v1006
    %1062 = vmatpush1.msra.mxu0 %v1005
    %1063 = vmatprep.subr.mxu0 %v1010
    %1064 = vmatpush1.msra.mxu0 %v1009
    %1065 = vmatprep.subr.mxu0 %v1014
    %1066 = vmatpush1.msra.mxu0 %v1013
    %1067 = vmatprep.subr.mxu0 %v1018
    %1068 = vmatpush1.msra.mxu0 %v1017
    %1069 = vmatprep.subr.mxu0 %v1022
    %1070 = vmatpush1.msra.mxu0 %v1021
    %1071 = vmatprep.subr.mxu0 %v1026
    %1072 = vmatpush1.msra.mxu0 %v1025
    %1073 = vmatprep.subr.mxu0 %v1030
    %1074 = vmatpush1.msra.mxu0 %v1029
    %1075 = vmatprep.subr.mxu0 %v1034
    %1076 = vmatpush1.msra.mxu0 %v1033
    %1077 = vmatprep.subr.mxu0 %v1038
    %1078 = vmatpush1.msra.mxu0 %v1037
    %1079 = vmatprep.subr.mxu0 %v1042
    %1080 = vmatpush1.msra.mxu0 %v1041
    %1081 = vmatprep.subr.mxu0 %v1046
    %1082 = vmatpush1.msra.mxu0 %v1045
    %1083 = vmatprep.subr.mxu0 %v1050
    %1084 = vmatpush1.msra.mxu0 %v1049
    %1085 = vmatprep.subr.mxu0 0.0
    %1086 = vmatpush1.msra.mxu0 0.0
    %1087 = vmatprep.subr.mxu0 0.0
    %1088 = vmatpush1.msra.mxu0 0.0
    %1089 = vmatprep.subr.mxu0 0.0
    %1090 = vmatpush1.msra.mxu0 0.0
    %1091 = vmatprep.subr.mxu0 0.0
    %1092 = vmatpush1.msra.mxu0 0.0
    %1093 = vmatprep.subr.mxu0 0.0
    %1094 = vmatpush1.msra.mxu0 0.0
    %1095 = vmatprep.subr.mxu0 0.0
    %1096 = vmatpush1.msra.mxu0 0.0
    %1097 = vmatprep.subr.mxu0 0.0
    %1098 = vmatpush1.msra.mxu0 0.0
    %1099 = vmatprep.subr.mxu0 0.0
    %1100 = vmatpush1.msra.mxu0 0.0
    %1101 = vmatprep.subr.mxu0 0.0
    %1102 = vmatpush1.msra.mxu0 0.0
    %1103 = vmatprep.subr.mxu0 0.0
    %1104 = vmatpush1.msra.mxu0 0.0
    %1105 = vmatprep.subr.mxu0 0.0
    %1106 = vmatpush1.msra.mxu0 0.0
    %1107 = vmatprep.subr.mxu0 0.0
    %1108 = vmatpush1.msra.mxu0 0.0
    %1109 = vmatprep.subr.mxu0 0.0
    %1110 = vmatpush1.msra.mxu0 0.0
    %1111 = vmatprep.subr.mxu0 0.0
    %1112 = vmatpush1.msra.mxu0 0.0
    %1113 = vmatprep.subr.mxu0 0.0
    %1114 = vmatpush1.msra.mxu0 0.0
    %1115 = vmatprep.subr.mxu0 0.0
    %1116 = vmatpush1.msra.mxu0 0.0
    %1117 = vmatprep.mubr.f32.mxu0 0.0
    %1118 = vmatmul.mubr.f32.gmra.mrb[0].mxu0 0.0
    %v1119 = vpop.f32.mrb[0].mxu0
    %v1120 = vadd.f32 0.0, %v1119
    %v1121 = vpop.f32.mrb[0].mxu0
    %v1122 = vadd.f32 0.0, %v1121
    %1123 = vdwg.mxu0
    %1124 = vmatprep.subr.mxu0 %v992
    %1125 = vmatpush1.msra.mxu0 %v991
    %1126 = vmatprep.subr.mxu0 %v996
    %1127 = vmatpush1.msra.mxu0 %v995
    %1128 = vmatprep.subr.mxu0 %v1000
    %1129 = vmatpush1.msra.mxu0 %v999
    %1130 = vmatprep.subr.mxu0 %v1004
    %1131 = vmatpush1.msra.mxu0 %v1003
    %1132 = vmatprep.subr.mxu0 %v1008
    %1133 = vmatpush1.msra.mxu0 %v1007
    %1134 = vmatprep.subr.mxu0 %v1012
    %1135 = vmatpush1.msra.mxu0 %v1011
    %1136 = vmatprep.subr.mxu0 %v1016
    %1137 = vmatpush1.msra.mxu0 %v1015
    %1138 = vmatprep.subr.mxu0 %v1020
    %1139 = vmatpush1.msra.mxu0 %v1019
    %1140 = vmatprep.subr.mxu0 %v1024
    %1141 = vmatpush1.msra.mxu0 %v1023
    %1142 = vmatprep.subr.mxu0 %v1028
    %1143 = vmatpush1.msra.mxu0 %v1027
    %1144 = vmatprep.subr.mxu0 %v1032
    %1145 = vmatpush1.msra.mxu0 %v1031
    %1146 = vmatprep.subr.mxu0 %v1036
    %1147 = vmatpush1.msra.mxu0 %v1035
    %1148 = vmatprep.subr.mxu0 %v1040
    %1149 = vmatpush1.msra.mxu0 %v1039
    %1150 = vmatprep.subr.mxu0 %v1044
    %1151 = vmatpush1.msra.mxu0 %v1043
    %1152 = vmatprep.subr.mxu0 %v1048
    %1153 = vmatpush1.msra.mxu0 %v1047
    %1154 = vmatprep.subr.mxu0 %v1052
    %1155 = vmatpush1.msra.mxu0 %v1051
    %1156 = vmatprep.subr.mxu0 0.0
    %1157 = vmatpush1.msra.mxu0 0.0
    %1158 = vmatprep.subr.mxu0 0.0
    %1159 = vmatpush1.msra.mxu0 0.0
    %1160 = vmatprep.subr.mxu0 0.0
    %1161 = vmatpush1.msra.mxu0 0.0
    %1162 = vmatprep.subr.mxu0 0.0
    %1163 = vmatpush1.msra.mxu0 0.0
    %1164 = vmatprep.subr.mxu0 0.0
    %1165 = vmatpush1.msra.mxu0 0.0
    %1166 = vmatprep.subr.mxu0 0.0
    %1167 = vmatpush1.msra.mxu0 0.0
    %1168 = vmatprep.subr.mxu0 0.0
    %1169 = vmatpush1.msra.mxu0 0.0
    %1170 = vmatprep.subr.mxu0 0.0
    %1171 = vmatpush1.msra.mxu0 0.0
    %1172 = vmatprep.subr.mxu0 0.0
    %1173 = vmatpush1.msra.mxu0 0.0
    %1174 = vmatprep.subr.mxu0 0.0
    %1175 = vmatpush1.msra.mxu0 0.0
    %1176 = vmatprep.subr.mxu0 0.0
    %1177 = vmatpush1.msra.mxu0 0.0
    %1178 = vmatprep.subr.mxu0 0.0
    %1179 = vmatpush1.msra.mxu0 0.0
    %1180 = vmatprep.subr.mxu0 0.0
    %1181 = vmatpush1.msra.mxu0 0.0
    %1182 = vmatprep.subr.mxu0 0.0
    %1183 = vmatpush1.msra.mxu0 0.0
    %1184 = vmatprep.subr.mxu0 0.0
    %1185 = vmatpush1.msra.mxu0 0.0
    %1186 = vmatprep.subr.mxu0 0.0
    %1187 = vmatpush1.msra.mxu0 0.0
    %1188 = vmatprep.mubr.f32.mxu0 0.0
    %1189 = vmatmul.mubr.f32.gmra.mrb[0].mxu0 0.0
    %v1190 = vpop.f32.mrb[0].mxu0
    %v1191 = vadd.f32 0.0, %v1190
    %v1192 = vpop.f32.mrb[0].mxu0
    %v1193 = vadd.f32 0.0, %v1192
    %1194 = vdwg.mxu0
    %v1195 = vadd.f32 %v985, %v1120
    %v1196 = vadd.f32 %v986, %v1122
    %v1197 = vadd.f32 %v987, %v1191
    %v1198 = vadd.f32 %v988, %v1193
    %v1199 = vld [vmem:[#allocation2 + $0x1e0] sm:$0xff]
    %v1200 = vld [vmem:[#allocation2 + $0x1e8] sm:$0xff]
    %v1201 = vld [vmem:[#allocation2 + $0x1f0] sm:$0xff]
    %v1202 = vld [vmem:[#allocation2 + $0x1f8] sm:$0xff]
    %v1203 = vld [vmem:[#allocation11] sm:$0xff]
    %v1204 = vld [vmem:[#allocation11 + $0x8] sm:$0xff]
    %v1205 = vld [vmem:[#allocation11 + $0x10] sm:$0xff]
    %v1206 = vld [vmem:[#allocation11 + $0x18] sm:$0xff]
    %v1207 = vld [vmem:[#allocation11 + $0x20] sm:$0xff]
    %v1208 = vld [vmem:[#allocation11 + $0x28] sm:$0xff]
    %v1209 = vld [vmem:[#allocation11 + $0x30] sm:$0xff]
    %v1210 = vld [vmem:[#allocation11 + $0x38] sm:$0xff]
    %v1211 = vld [vmem:[#allocation11 + $0x40] sm:$0xff]
    %v1212 = vld [vmem:[#allocation11 + $0x48] sm:$0xff]
    %v1213 = vld [vmem:[#allocation11 + $0x50] sm:$0xff]
    %v1214 = vld [vmem:[#allocation11 + $0x58] sm:$0xff]
    %v1215 = vld [vmem:[#allocation11 + $0x60] sm:$0xff]
    %v1216 = vld [vmem:[#allocation11 + $0x68] sm:$0xff]
    %v1217 = vld [vmem:[#allocation11 + $0x70] sm:$0xff]
    %v1218 = vld [vmem:[#allocation11 + $0x78] sm:$0xff]
    %v1219 = vld [vmem:[#allocation11 + $0x80] sm:$0xff]
    %v1220 = vld [vmem:[#allocation11 + $0x88] sm:$0xff]
    %v1221 = vld [vmem:[#allocation11 + $0x90] sm:$0xff]
    %v1222 = vld [vmem:[#allocation11 + $0x98] sm:$0xff]
    %v1223 = vld [vmem:[#allocation11 + $0xa0] sm:$0xff]
    %v1224 = vld [vmem:[#allocation11 + $0xa8] sm:$0xff]
    %v1225 = vld [vmem:[#allocation11 + $0xb0] sm:$0xff]
    %v1226 = vld [vmem:[#allocation11 + $0xb8] sm:$0xff]
    %v1227 = vld [vmem:[#allocation11 + $0xc0] sm:$0xff]
    %v1228 = vld [vmem:[#allocation11 + $0xc8] sm:$0xff]
    %v1229 = vld [vmem:[#allocation11 + $0xd0] sm:$0xff]
    %v1230 = vld [vmem:[#allocation11 + $0xd8] sm:$0xff]
    %v1231 = vld [vmem:[#allocation11 + $0xe0] sm:$0xff]
    %v1232 = vld [vmem:[#allocation11 + $0xe8] sm:$0xff]
    %v1233 = vld [vmem:[#allocation11 + $0xf0] sm:$0xff]
    %v1234 = vld [vmem:[#allocation11 + $0xf8] sm:$0xff]
    %v1235 = vld [vmem:[#allocation11 + $0x100] sm:$0xff]
    %v1236 = vld [vmem:[#allocation11 + $0x108] sm:$0xff]
    %v1237 = vld [vmem:[#allocation11 + $0x110] sm:$0xff]
    %v1238 = vld [vmem:[#allocation11 + $0x118] sm:$0xff]
    %v1239 = vld [vmem:[#allocation11 + $0x120] sm:$0xff]
    %v1240 = vld [vmem:[#allocation11 + $0x128] sm:$0xff]
    %v1241 = vld [vmem:[#allocation11 + $0x130] sm:$0xff]
    %v1242 = vld [vmem:[#allocation11 + $0x138] sm:$0xff]
    %v1243 = vld [vmem:[#allocation11 + $0x140] sm:$0xff]
    %v1244 = vld [vmem:[#allocation11 + $0x148] sm:$0xff]
    %v1245 = vld [vmem:[#allocation11 + $0x150] sm:$0xff]
    %v1246 = vld [vmem:[#allocation11 + $0x158] sm:$0xff]
    %v1247 = vld [vmem:[#allocation11 + $0x160] sm:$0xff]
    %v1248 = vld [vmem:[#allocation11 + $0x168] sm:$0xff]
    %v1249 = vld [vmem:[#allocation11 + $0x170] sm:$0xff]
    %v1250 = vld [vmem:[#allocation11 + $0x178] sm:$0xff]
    %v1251 = vld [vmem:[#allocation11 + $0x180] sm:$0xff]
    %v1252 = vld [vmem:[#allocation11 + $0x188] sm:$0xff]
    %v1253 = vld [vmem:[#allocation11 + $0x190] sm:$0xff]
    %v1254 = vld [vmem:[#allocation11 + $0x198] sm:$0xff]
    %v1255 = vld [vmem:[#allocation11 + $0x1a0] sm:$0xff]
    %v1256 = vld [vmem:[#allocation11 + $0x1a8] sm:$0xff]
    %v1257 = vld [vmem:[#allocation11 + $0x1b0] sm:$0xff]
    %v1258 = vld [vmem:[#allocation11 + $0x1b8] sm:$0xff]
    %v1259 = vld [vmem:[#allocation11 + $0x1c0] sm:$0xff]
    %v1260 = vld [vmem:[#allocation11 + $0x1c8] sm:$0xff]
    %v1261 = vld [vmem:[#allocation11 + $0x1d0] sm:$0xff]
    %v1262 = vld [vmem:[#allocation11 + $0x1d8] sm:$0xff]
    %v1263 = vld [vmem:[#allocation11 + $0x1e0] sm:$0xff]
    %v1264 = vld [vmem:[#allocation11 + $0x1e8] sm:$0xff]
    %v1265 = vld [vmem:[#allocation11 + $0x1f0] sm:$0xff]
    %v1266 = vld [vmem:[#allocation11 + $0x1f8] sm:$0xff]
    %1267 = vmatprep.subr.mxu0 %v1204
    %1268 = vmatpush1.msra.mxu0 %v1203
    %1269 = vmatprep.subr.mxu0 %v1208
    %1270 = vmatpush1.msra.mxu0 %v1207
    %1271 = vmatprep.subr.mxu0 %v1212
    %1272 = vmatpush1.msra.mxu0 %v1211
    %1273 = vmatprep.subr.mxu0 %v1216
    %1274 = vmatpush1.msra.mxu0 %v1215
    %1275 = vmatprep.subr.mxu0 %v1220
    %1276 = vmatpush1.msra.mxu0 %v1219
    %1277 = vmatprep.subr.mxu0 %v1224
    %1278 = vmatpush1.msra.mxu0 %v1223
    %1279 = vmatprep.subr.mxu0 %v1228
    %1280 = vmatpush1.msra.mxu0 %v1227
    %1281 = vmatprep.subr.mxu0 %v1232
    %1282 = vmatpush1.msra.mxu0 %v1231
    %1283 = vmatprep.subr.mxu0 %v1236
    %1284 = vmatpush1.msra.mxu0 %v1235
    %1285 = vmatprep.subr.mxu0 %v1240
    %1286 = vmatpush1.msra.mxu0 %v1239
    %1287 = vmatprep.subr.mxu0 %v1244
    %1288 = vmatpush1.msra.mxu0 %v1243
    %1289 = vmatprep.subr.mxu0 %v1248
    %1290 = vmatpush1.msra.mxu0 %v1247
    %1291 = vmatprep.subr.mxu0 %v1252
    %1292 = vmatpush1.msra.mxu0 %v1251
    %1293 = vmatprep.subr.mxu0 %v1256
    %1294 = vmatpush1.msra.mxu0 %v1255
    %1295 = vmatprep.subr.mxu0 %v1260
    %1296 = vmatpush1.msra.mxu0 %v1259
    %1297 = vmatprep.subr.mxu0 %v1264
    %1298 = vmatpush1.msra.mxu0 %v1263
    %1299 = vmatprep.subr.mxu0 0.0
    %1300 = vmatpush1.msra.mxu0 0.0
    %1301 = vmatprep.subr.mxu0 0.0
    %1302 = vmatpush1.msra.mxu0 0.0
    %1303 = vmatprep.subr.mxu0 0.0
    %1304 = vmatpush1.msra.mxu0 0.0
    %1305 = vmatprep.subr.mxu0 0.0
    %1306 = vmatpush1.msra.mxu0 0.0
    %1307 = vmatprep.subr.mxu0 0.0
    %1308 = vmatpush1.msra.mxu0 0.0
    %1309 = vmatprep.subr.mxu0 0.0
    %1310 = vmatpush1.msra.mxu0 0.0
    %1311 = vmatprep.subr.mxu0 0.0
    %1312 = vmatpush1.msra.mxu0 0.0
    %1313 = vmatprep.subr.mxu0 0.0
    %1314 = vmatpush1.msra.mxu0 0.0
    %1315 = vmatprep.subr.mxu0 0.0
    %1316 = vmatpush1.msra.mxu0 0.0
    %1317 = vmatprep.subr.mxu0 0.0
    %1318 = vmatpush1.msra.mxu0 0.0
    %1319 = vmatprep.subr.mxu0 0.0
    %1320 = vmatpush1.msra.mxu0 0.0
    %1321 = vmatprep.subr.mxu0 0.0
    %1322 = vmatpush1.msra.mxu0 0.0
    %1323 = vmatprep.subr.mxu0 0.0
    %1324 = vmatpush1.msra.mxu0 0.0
    %1325 = vmatprep.subr.mxu0 0.0
    %1326 = vmatpush1.msra.mxu0 0.0
    %1327 = vmatprep.subr.mxu0 0.0
    %1328 = vmatpush1.msra.mxu0 0.0
    %1329 = vmatprep.subr.mxu0 0.0
    %1330 = vmatpush1.msra.mxu0 0.0
    %1331 = vmatprep.mubr.f32.mxu0 0.0
    %1332 = vmatmul.mubr.f32.gmra.mrb[0].mxu0 0.0
    %v1333 = vpop.f32.mrb[0].mxu0
    %v1334 = vadd.f32 0.0, %v1333
    %v1335 = vpop.f32.mrb[0].mxu0
    %v1336 = vadd.f32 0.0, %v1335
    %1337 = vdwg.mxu0
    %1338 = vmatprep.subr.mxu0 %v1206
    %1339 = vmatpush1.msra.mxu0 %v1205
    %1340 = vmatprep.subr.mxu0 %v1210
    %1341 = vmatpush1.msra.mxu0 %v1209
    %1342 = vmatprep.subr.mxu0 %v1214
    %1343 = vmatpush1.msra.mxu0 %v1213
    %1344 = vmatprep.subr.mxu0 %v1218
    %1345 = vmatpush1.msra.mxu0 %v1217
    %1346 = vmatprep.subr.mxu0 %v1222
    %1347 = vmatpush1.msra.mxu0 %v1221
    %1348 = vmatprep.subr.mxu0 %v1226
    %1349 = vmatpush1.msra.mxu0 %v1225
    %1350 = vmatprep.subr.mxu0 %v1230
    %1351 = vmatpush1.msra.mxu0 %v1229
    %1352 = vmatprep.subr.mxu0 %v1234
    %1353 = vmatpush1.msra.mxu0 %v1233
    %1354 = vmatprep.subr.mxu0 %v1238
    %1355 = vmatpush1.msra.mxu0 %v1237
    %1356 = vmatprep.subr.mxu0 %v1242
    %1357 = vmatpush1.msra.mxu0 %v1241
    %1358 = vmatprep.subr.mxu0 %v1246
    %1359 = vmatpush1.msra.mxu0 %v1245
    %1360 = vmatprep.subr.mxu0 %v1250
    %1361 = vmatpush1.msra.mxu0 %v1249
    %1362 = vmatprep.subr.mxu0 %v1254
    %1363 = vmatpush1.msra.mxu0 %v1253
    %1364 = vmatprep.subr.mxu0 %v1258
    %1365 = vmatpush1.msra.mxu0 %v1257
    %1366 = vmatprep.subr.mxu0 %v1262
    %1367 = vmatpush1.msra.mxu0 %v1261
    %1368 = vmatprep.subr.mxu0 %v1266
    %1369 = vmatpush1.msra.mxu0 %v1265
    %1370 = vmatprep.subr.mxu0 0.0
    %1371 = vmatpush1.msra.mxu0 0.0
    %1372 = vmatprep.subr.mxu0 0.0
    %1373 = vmatpush1.msra.mxu0 0.0
    %1374 = vmatprep.subr.mxu0 0.0
    %1375 = vmatpush1.msra.mxu0 0.0
    %1376 = vmatprep.subr.mxu0 0.0
    %1377 = vmatpush1.msra.mxu0 0.0
    %1378 = vmatprep.subr.mxu0 0.0
    %1379 = vmatpush1.msra.mxu0 0.0
    %1380 = vmatprep.subr.mxu0 0.0
    %1381 = vmatpush1.msra.mxu0 0.0
    %1382 = vmatprep.subr.mxu0 0.0
    %1383 = vmatpush1.msra.mxu0 0.0
    %1384 = vmatprep.subr.mxu0 0.0
    %1385 = vmatpush1.msra.mxu0 0.0
    %1386 = vmatprep.subr.mxu0 0.0
    %1387 = vmatpush1.msra.mxu0 0.0
    %1388 = vmatprep.subr.mxu0 0.0
    %1389 = vmatpush1.msra.mxu0 0.0
    %1390 = vmatprep.subr.mxu0 0.0
    %1391 = vmatpush1.msra.mxu0 0.0
    %1392 = vmatprep.subr.mxu0 0.0
    %1393 = vmatpush1.msra.mxu0 0.0
    %1394 = vmatprep.subr.mxu0 0.0
    %1395 = vmatpush1.msra.mxu0 0.0
    %1396 = vmatprep.subr.mxu0 0.0
    %1397 = vmatpush1.msra.mxu0 0.0
    %1398 = vmatprep.subr.mxu0 0.0
    %1399 = vmatpush1.msra.mxu0 0.0
    %1400 = vmatprep.subr.mxu0 0.0
    %1401 = vmatpush1.msra.mxu0 0.0
    %1402 = vmatprep.mubr.f32.mxu0 0.0
    %1403 = vmatmul.mubr.f32.gmra.mrb[0].mxu0 0.0
    %v1404 = vpop.f32.mrb[0].mxu0
    %v1405 = vadd.f32 0.0, %v1404
    %v1406 = vpop.f32.mrb[0].mxu0
    %v1407 = vadd.f32 0.0, %v1406
    %1408 = vdwg.mxu0
    %v1409 = vadd.f32 %v1199, %v1334
    %v1410 = vadd.f32 %v1200, %v1336
    %v1411 = vadd.f32 %v1201, %v1405
    %v1412 = vadd.f32 %v1202, %v1407
    %v1413 = vxor.u32 %v1195, 2147483648
    %v1414 = vmul.f32 %v1413, 1.442695
    %v1415 = vpow.pop %v1414
    %v1416 = vadd.f32 %v1415, 1.0
    %v1417 = vrcp.pop %v1416
    %v1418 = vmul.f32 1.0, %v1417
    %v1419 = vxor.u32 %v1196, 2147483648
    %v1420 = vmul.f32 %v1419, 1.442695
    %v1421 = vpow.pop %v1420
    %v1422 = vadd.f32 %v1421, 1.0
    %v1423 = vrcp.pop %v1422
    %v1424 = vmul.f32 1.0, %v1423
    %v1425 = vtanh.pop %v1197
    %v1426 = vxor.u32 %v1198, 2147483648
    %v1427 = vmul.f32 %v1426, 1.442695
    %v1428 = vpow.pop %v1427
    %v1429 = vadd.f32 %v1428, 1.0
    %v1430 = vrcp.pop %v1429
    %v1431 = vmul.f32 1.0, %v1430
    %v1432 = vmul.f32 %v1424, 0.0
    %v1433 = vmul.f32 %v1418, %v1425
    %v1434 = vadd.f32 %v1432, %v1433
    %v1435 = vtanh.pop %v1434
    %v1436 = vmul.f32 %v1431, %v1435
    %v1437 = vxor.u32 %v1409, 2147483648
    %v1438 = vmul.f32 %v1437, 1.442695
    %v1439 = vpow.pop %v1438
    %v1440 = vadd.f32 %v1439, 1.0
    %v1441 = vrcp.pop %v1440
    %v1442 = vmul.f32 1.0, %v1441
    %v1443 = vxor.u32 %v1410, 2147483648
    %v1444 = vmul.f32 %v1443, 1.442695
    %v1445 = vpow.pop %v1444
    %v1446 = vadd.f32 %v1445, 1.0
    %v1447 = vrcp.pop %v1446
    %v1448 = vmul.f32 1.0, %v1447
    %v1449 = vtanh.pop %v1411
    %v1450 = vxor.u32 %v1412, 2147483648
    %v1451 = vmul.f32 %v1450, 1.442695
    %v1452 = vpow.pop %v1451
    %v1453 = vadd.f32 %v1452, 1.0
    %v1454 = vrcp.pop %v1453
    %v1455 = vmul.f32 1.0, %v1454
    %v1456 = vmul.f32 %v1448, 0.0
    %v1457 = vmul.f32 %v1442, %v1449
    %v1458 = vadd.f32 %v1456, %v1457
    %v1459 = vtanh.pop %v1458
    %v1460 = vmul.f32 %v1455, %v1459
    %vm1461 = vcmp.gt.s32.totalorder %v984, 0
    %vm1462 = vcmp.gt.s32.totalorder %v984, 7
    %v1463 = vsel %vm1461, 1, 0
    %1464 = vset.pattern.permute.xlu0 0
    %1465 = vperm.xlu0 %1464, %v1463
    %v1466 = vpop.permute.xlu0 %1465
    %vm1467 = vcmp.eq.s32.totalorder %v1466, 1
    %v1468 = vsel %vm1467, %v1436, 0.0
    %v1469 = vsel %vm1467, %v1434, 0.0
    %v1470 = vsel %vm1462, 1, 0
    %1471 = vset.pattern.permute.xlu0 0
    %1472 = vperm.xlu0 %1471, %v1470
    %v1473 = vpop.permute.xlu0 %1472
    %vm1474 = vcmp.eq.s32.totalorder %v1473, 1
    %v1475 = vsel %vm1474, %v1460, 0.0
    %v1476 = vsel %vm1474, %v1458, 0.0
    %v1477 = vld [vmem:[#allocation2 + $0x40] sm:$0xff]
    %v1478 = vld [vmem:[#allocation2 + $0x48] sm:$0xff]
    %v1479 = vld [vmem:[#allocation2 + $0x50] sm:$0xff]
    %v1480 = vld [vmem:[#allocation2 + $0x58] sm:$0xff]
    %1481 = vmatprep.subr.mxu0 %v990
    %1482 = vmatpush1.msra.mxu0 %v989
    %1483 = vmatprep.subr.mxu0 %v994
    %1484 = vmatpush1.msra.mxu0 %v993
    %1485 = vmatprep.subr.mxu0 %v998
    %1486 = vmatpush1.msra.mxu0 %v997
    %1487 = vmatprep.subr.mxu0 %v1002
    %1488 = vmatpush1.msra.mxu0 %v1001
    %1489 = vmatprep.subr.mxu0 %v1006
    %1490 = vmatpush1.msra.mxu0 %v1005
    %1491 = vmatprep.subr.mxu0 %v1010
    %1492 = vmatpush1.msra.mxu0 %v1009
    %1493 = vmatprep.subr.mxu0 %v1014
    %1494 = vmatpush1.msra.mxu0 %v1013
    %1495 = vmatprep.subr.mxu0 %v1018
    %1496 = vmatpush1.msra.mxu0 %v1017
    %1497 = vmatprep.subr.mxu0 %v1022
    %1498 = vmatpush1.msra.mxu0 %v1021
    %1499 = vmatprep.subr.mxu0 %v1026
    %1500 = vmatpush1.msra.mxu0 %v1025
    %1501 = vmatprep.subr.mxu0 %v1030
    %1502 = vmatpush1.msra.mxu0 %v1029
    %1503 = vmatprep.subr.mxu0 %v1034
    %1504 = vmatpush1.msra.mxu0 %v1033
    %1505 = vmatprep.subr.mxu0 %v1038
    %1506 = vmatpush1.msra.mxu0 %v1037
    %1507 = vmatprep.subr.mxu0 %v1042
    %1508 = vmatpush1.msra.mxu0 %v1041
    %1509 = vmatprep.subr.mxu0 %v1046
    %1510 = vmatpush1.msra.mxu0 %v1045
    %1511 = vmatprep.subr.mxu0 %v1050
    %1512 = vmatpush1.msra.mxu0 %v1049
    %1513 = vmatprep.subr.mxu0 0.0
    %1514 = vmatpush1.msra.mxu0 0.0
    %1515 = vmatprep.subr.mxu0 0.0
    %1516 = vmatpush1.msra.mxu0 0.0
    %1517 = vmatprep.subr.mxu0 0.0
    %1518 = vmatpush1.msra.mxu0 0.0
    %1519 = vmatprep.subr.mxu0 0.0
    %1520 = vmatpush1.msra.mxu0 0.0
    %1521 = vmatprep.subr.mxu0 0.0
    %1522 = vmatpush1.msra.mxu0 0.0
    %1523 = vmatprep.subr.mxu0 0.0
    %1524 = vmatpush1.msra.mxu0 0.0
    %1525 = vmatprep.subr.mxu0 0.0
    %1526 = vmatpush1.msra.mxu0 0.0
    %1527 = vmatprep.subr.mxu0 0.0
    %1528 = vmatpush1.msra.mxu0 0.0
    %1529 = vmatprep.subr.mxu0 0.0
    %1530 = vmatpush1.msra.mxu0 0.0
    %1531 = vmatprep.subr.mxu0 0.0
    %1532 = vmatpush1.msra.mxu0 0.0
    %1533 = vmatprep.subr.mxu0 0.0
    %1534 = vmatpush1.msra.mxu0 0.0
    %1535 = vmatprep.subr.mxu0 0.0
    %1536 = vmatpush1.msra.mxu0 0.0
    %1537 = vmatprep.subr.mxu0 0.0
    %1538 = vmatpush1.msra.mxu0 0.0
    %1539 = vmatprep.subr.mxu0 0.0
    %1540 = vmatpush1.msra.mxu0 0.0
    %1541 = vmatprep.subr.mxu0 0.0
    %1542 = vmatpush1.msra.mxu0 0.0
    %1543 = vmatprep.subr.mxu0 0.0
    %1544 = vmatpush1.msra.mxu0 0.0
    %1545 = vmatprep.mubr.f32.mxu0 0.0
    %1546 = vmatmul.mubr.f32.gmra.mrb[0].mxu0 %v1468
    %v1547 = vpop.f32.mrb[0].mxu0
    %v1548 = vadd.f32 0.0, %v1547
    %v1549 = vpop.f32.mrb[0].mxu0
    %v1550 = vadd.f32 0.0, %v1549
    %1551 = vdwg.mxu0
    %1552 = vmatprep.subr.mxu0 %v992
    %1553 = vmatpush1.msra.mxu0 %v991
    %1554 = vmatprep.subr.mxu0 %v996
    %1555 = vmatpush1.msra.mxu0 %v995
    %1556 = vmatprep.subr.mxu0 %v1000
    %1557 = vmatpush1.msra.mxu0 %v999
    %1558 = vmatprep.subr.mxu0 %v1004
    %1559 = vmatpush1.msra.mxu0 %v1003
    %1560 = vmatprep.subr.mxu0 %v1008
    %1561 = vmatpush1.msra.mxu0 %v1007
    %1562 = vmatprep.subr.mxu0 %v1012
    %1563 = vmatpush1.msra.mxu0 %v1011
    %1564 = vmatprep.subr.mxu0 %v1016
    %1565 = vmatpush1.msra.mxu0 %v1015
    %1566 = vmatprep.subr.mxu0 %v1020
    %1567 = vmatpush1.msra.mxu0 %v1019
    %1568 = vmatprep.subr.mxu0 %v1024
    %1569 = vmatpush1.msra.mxu0 %v1023
    %1570 = vmatprep.subr.mxu0 %v1028
    %1571 = vmatpush1.msra.mxu0 %v1027
    %1572 = vmatprep.subr.mxu0 %v1032
    %1573 = vmatpush1.msra.mxu0 %v1031
    %1574 = vmatprep.subr.mxu0 %v1036
    %1575 = vmatpush1.msra.mxu0 %v1035
    %1576 = vmatprep.subr.mxu0 %v1040
    %1577 = vmatpush1.msra.mxu0 %v1039
    %1578 = vmatprep.subr.mxu0 %v1044
    %1579 = vmatpush1.msra.mxu0 %v1043
    %1580 = vmatprep.subr.mxu0 %v1048
    %1581 = vmatpush1.msra.mxu0 %v1047
    %1582 = vmatprep.subr.mxu0 %v1052
    %1583 = vmatpush1.msra.mxu0 %v1051
    %1584 = vmatprep.subr.mxu0 0.0
    %1585 = vmatpush1.msra.mxu0 0.0
    %1586 = vmatprep.subr.mxu0 0.0
    %1587 = vmatpush1.msra.mxu0 0.0
    %1588 = vmatprep.subr.mxu0 0.0
    %1589 = vmatpush1.msra.mxu0 0.0
    %1590 = vmatprep.subr.mxu0 0.0
    %1591 = vmatpush1.msra.mxu0 0.0
    %1592 = vmatprep.subr.mxu0 0.0
    %1593 = vmatpush1.msra.mxu0 0.0
    %1594 = vmatprep.subr.mxu0 0.0
    %1595 = vmatpush1.msra.mxu0 0.0
    %1596 = vmatprep.subr.mxu0 0.0
    %1597 = vmatpush1.msra.mxu0 0.0
    %1598 = vmatprep.subr.mxu0 0.0
    %1599 = vmatpush1.msra.mxu0 0.0
    %1600 = vmatprep.subr.mxu0 0.0
    %1601 = vmatpush1.msra.mxu0 0.0
    %1602 = vmatprep.subr.mxu0 0.0
    %1603 = vmatpush1.msra.mxu0 0.0
    %1604 = vmatprep.subr.mxu0 0.0
    %1605 = vmatpush1.msra.mxu0 0.0
    %1606 = vmatprep.subr.mxu0 0.0
    %1607 = vmatpush1.msra.mxu0 0.0
    %1608 = vmatprep.subr.mxu0 0.0
    %1609 = vmatpush1.msra.mxu0 0.0
    %1610 = vmatprep.subr.mxu0 0.0
    %1611 = vmatpush1.msra.mxu0 0.0
    %1612 = vmatprep.subr.mxu0 0.0
    %1613 = vmatpush1.msra.mxu0 0.0
    %1614 = vmatprep.subr.mxu0 0.0
    %1615 = vmatpush1.msra.mxu0 0.0
    %1616 = vmatprep.mubr.f32.mxu0 0.0
    %1617 = vmatmul.mubr.f32.gmra.mrb[0].mxu0 %v1468
    %v1618 = vpop.f32.mrb[0].mxu0
    %v1619 = vadd.f32 0.0, %v1618
    %v1620 = vpop.f32.mrb[0].mxu0
    %v1621 = vadd.f32 0.0, %v1620
    %1622 = vdwg.mxu0
    %v1623 = vadd.f32 %v1477, %v1548
    %v1624 = vadd.f32 %v1478, %v1550
    %v1625 = vadd.f32 %v1479, %v1619
    %v1626 = vadd.f32 %v1480, %v1621
    %v1627 = vld [vmem:[#allocation2 + $0x1a0] sm:$0xff]
    %v1628 = vld [vmem:[#allocation2 + $0x1a8] sm:$0xff]
    %v1629 = vld [vmem:[#allocation2 + $0x1b0] sm:$0xff]
    %v1630 = vld [vmem:[#allocation2 + $0x1b8] sm:$0xff]
    %1631 = vmatprep.subr.mxu0 %v1204
    %1632 = vmatpush1.msra.mxu0 %v1203
    %1633 = vmatprep.subr.mxu0 %v1208
    %1634 = vmatpush1.msra.mxu0 %v1207
    %1635 = vmatprep.subr.mxu0 %v1212
    %1636 = vmatpush1.msra.mxu0 %v1211
    %1637 = vmatprep.subr.mxu0 %v1216
    %1638 = vmatpush1.msra.mxu0 %v1215
    %1639 = vmatprep.subr.mxu0 %v1220
    %1640 = vmatpush1.msra.mxu0 %v1219
    %1641 = vmatprep.subr.mxu0 %v1224
    %1642 = vmatpush1.msra.mxu0 %v1223
    %1643 = vmatprep.subr.mxu0 %v1228
    %1644 = vmatpush1.msra.mxu0 %v1227
    %1645 = vmatprep.subr.mxu0 %v1232
    %1646 = vmatpush1.msra.mxu0 %v1231
    %1647 = vmatprep.subr.mxu0 %v1236
    %1648 = vmatpush1.msra.mxu0 %v1235
    %1649 = vmatprep.subr.mxu0 %v1240
    %1650 = vmatpush1.msra.mxu0 %v1239
    %1651 = vmatprep.subr.mxu0 %v1244
    %1652 = vmatpush1.msra.mxu0 %v1243
    %1653 = vmatprep.subr.mxu0 %v1248
    %1654 = vmatpush1.msra.mxu0 %v1247
    %1655 = vmatprep.subr.mxu0 %v1252
    %1656 = vmatpush1.msra.mxu0 %v1251
    %1657 = vmatprep.subr.mxu0 %v1256
    %1658 = vmatpush1.msra.mxu0 %v1255
    %1659 = vmatprep.subr.mxu0 %v1260
    %1660 = vmatpush1.msra.mxu0 %v1259
    %1661 = vmatprep.subr.mxu0 %v1264
    %1662 = vmatpush1.msra.mxu0 %v1263
    %1663 = vmatprep.subr.mxu0 0.0
    %1664 = vmatpush1.msra.mxu0 0.0
    %1665 = vmatprep.subr.mxu0 0.0
    %1666 = vmatpush1.msra.mxu0 0.0
    %1667 = vmatprep.subr.mxu0 0.0
    %1668 = vmatpush1.msra.mxu0 0.0
    %1669 = vmatprep.subr.mxu0 0.0
    %1670 = vmatpush1.msra.mxu0 0.0
    %1671 = vmatprep.subr.mxu0 0.0
    %1672 = vmatpush1.msra.mxu0 0.0
    %1673 = vmatprep.subr.mxu0 0.0
    %1674 = vmatpush1.msra.mxu0 0.0
    %1675 = vmatprep.subr.mxu0 0.0
    %1676 = vmatpush1.msra.mxu0 0.0
    %1677 = vmatprep.subr.mxu0 0.0
    %1678 = vmatpush1.msra.mxu0 0.0
    %1679 = vmatprep.subr.mxu0 0.0
    %1680 = vmatpush1.msra.mxu0 0.0
    %1681 = vmatprep.subr.mxu0 0.0
    %1682 = vmatpush1.msra.mxu0 0.0
    %1683 = vmatprep.subr.mxu0 0.0
    %1684 = vmatpush1.msra.mxu0 0.0
    %1685 = vmatprep.subr.mxu0 0.0
    %1686 = vmatpush1.msra.mxu0 0.0
    %1687 = vmatprep.subr.mxu0 0.0
    %1688 = vmatpush1.msra.mxu0 0.0
    %1689 = vmatprep.subr.mxu0 0.0
    %1690 = vmatpush1.msra.mxu0 0.0
    %1691 = vmatprep.subr.mxu0 0.0
    %1692 = vmatpush1.msra.mxu0 0.0
    %1693 = vmatprep.subr.mxu0 0.0
    %1694 = vmatpush1.msra.mxu0 0.0
    %1695 = vmatprep.mubr.f32.mxu0 0.0
    %1696 = vmatmul.mubr.f32.gmra.mrb[0].mxu0 %v1475
    %v1697 = vpop.f32.mrb[0].mxu0
    %v1698 = vadd.f32 0.0, %v1697
    %v1699 = vpop.f32.mrb[0].mxu0
    %v1700 = vadd.f32 0.0, %v1699
    %1701 = vdwg.mxu0
    %1702 = vmatprep.subr.mxu0 %v1206
    %1703 = vmatpush1.msra.mxu0 %v1205
    %1704 = vmatprep.subr.mxu0 %v1210
    %1705 = vmatpush1.msra.mxu0 %v1209
    %1706 = vmatprep.subr.mxu0 %v1214
    %1707 = vmatpush1.msra.mxu0 %v1213
    %1708 = vmatprep.subr.mxu0 %v1218
    %1709 = vmatpush1.msra.mxu0 %v1217
    %1710 = vmatprep.subr.mxu0 %v1222
    %1711 = vmatpush1.msra.mxu0 %v1221
    %1712 = vmatprep.subr.mxu0 %v1226
    %1713 = vmatpush1.msra.mxu0 %v1225
    %1714 = vmatprep.subr.mxu0 %v1230
    %1715 = vmatpush1.msra.mxu0 %v1229
    %1716 = vmatprep.subr.mxu0 %v1234
    %1717 = vmatpush1.msra.mxu0 %v1233
    %1718 = vmatprep.subr.mxu0 %v1238
    %1719 = vmatpush1.msra.mxu0 %v1237
    %1720 = vmatprep.subr.mxu0 %v1242
    %1721 = vmatpush1.msra.mxu0 %v1241
    %1722 = vmatprep.subr.mxu0 %v1246
    %1723 = vmatpush1.msra.mxu0 %v1245
    %1724 = vmatprep.subr.mxu0 %v1250
    %1725 = vmatpush1.msra.mxu0 %v1249
    %1726 = vmatprep.subr.mxu0 %v1254
    %1727 = vmatpush1.msra.mxu0 %v1253
    %1728 = vmatprep.subr.mxu0 %v1258
    %1729 = vmatpush1.msra.mxu0 %v1257
    %1730 = vmatprep.subr.mxu0 %v1262
    %1731 = vmatpush1.msra.mxu0 %v1261
    %1732 = vmatprep.subr.mxu0 %v1266
    %1733 = vmatpush1.msra.mxu0 %v1265
    %1734 = vmatprep.subr.mxu0 0.0
    %1735 = vmatpush1.msra.mxu0 0.0
    %1736 = vmatprep.subr.mxu0 0.0
    %1737 = vmatpush1.msra.mxu0 0.0
    %1738 = vmatprep.subr.mxu0 0.0
    %1739 = vmatpush1.msra.mxu0 0.0
    %1740 = vmatprep.subr.mxu0 0.0
    %1741 = vmatpush1.msra.mxu0 0.0
    %1742 = vmatprep.subr.mxu0 0.0
    %1743 = vmatpush1.msra.mxu0 0.0
    %1744 = vmatprep.subr.mxu0 0.0
    %1745 = vmatpush1.msra.mxu0 0.0
    %1746 = vmatprep.subr.mxu0 0.0
    %1747 = vmatpush1.msra.mxu0 0.0
    %1748 = vmatprep.subr.mxu0 0.0
    %1749 = vmatpush1.msra.mxu0 0.0
    %1750 = vmatprep.subr.mxu0 0.0
    %1751 = vmatpush1.msra.mxu0 0.0
    %1752 = vmatprep.subr.mxu0 0.0
    %1753 = vmatpush1.msra.mxu0 0.0
    %1754 = vmatprep.subr.mxu0 0.0
    %1755 = vmatpush1.msra.mxu0 0.0
    %1756 = vmatprep.subr.mxu0 0.0
    %1757 = vmatpush1.msra.mxu0 0.0
    %1758 = vmatprep.subr.mxu0 0.0
    %1759 = vmatpush1.msra.mxu0 0.0
    %1760 = vmatprep.subr.mxu0 0.0
    %1761 = vmatpush1.msra.mxu0 0.0
    %1762 = vmatprep.subr.mxu0 0.0
    %1763 = vmatpush1.msra.mxu0 0.0
    %1764 = vmatprep.subr.mxu0 0.0
    %1765 = vmatpush1.msra.mxu0 0.0
    %1766 = vmatprep.mubr.f32.mxu0 0.0
    %1767 = vmatmul.mubr.f32.gmra.mrb[0].mxu0 %v1475
    %v1768 = vpop.f32.mrb[0].mxu0
    %v1769 = vadd.f32 0.0, %v1768
    %v1770 = vpop.f32.mrb[0].mxu0
    %v1771 = vadd.f32 0.0, %v1770
    %1772 = vdwg.mxu0
    %v1773 = vadd.f32 %v1627, %v1698
    %v1774 = vadd.f32 %v1628, %v1700
    %v1775 = vadd.f32 %v1629, %v1769
    %v1776 = vadd.f32 %v1630, %v1771
    %v1777 = vxor.u32 %v1623, 2147483648
    %v1778 = vmul.f32 %v1777, 1.442695
    %v1779 = vpow.pop %v1778
    %v1780 = vadd.f32 %v1779, 1.0
    %v1781 = vrcp.pop %v1780
    %v1782 = vmul.f32 1.0, %v1781
    %v1783 = vxor.u32 %v1624, 2147483648
    %v1784 = vmul.f32 %v1783, 1.442695
    %v1785 = vpow.pop %v1784
    %v1786 = vadd.f32 %v1785, 1.0
    %v1787 = vrcp.pop %v1786
    %v1788 = vmul.f32 1.0, %v1787
    %v1789 = vtanh.pop %v1625
    %v1790 = vxor.u32 %v1626, 2147483648
    %v1791 = vmul.f32 %v1790, 1.442695
    %v1792 = vpow.pop %v1791
    %v1793 = vadd.f32 %v1792, 1.0
    %v1794 = vrcp.pop %v1793
    %v1795 = vmul.f32 1.0, %v1794
    %v1796 = vmul.f32 %v1788, %v1469
    %v1797 = vmul.f32 %v1782, %v1789
    %v1798 = vadd.f32 %v1796, %v1797
    %v1799 = vtanh.pop %v1798
    %v1800 = vmul.f32 %v1795, %v1799
    %v1801 = vxor.u32 %v1773, 2147483648
    %v1802 = vmul.f32 %v1801, 1.442695
    %v1803 = vpow.pop %v1802
    %v1804 = vadd.f32 %v1803, 1.0
    %v1805 = vrcp.pop %v1804
    %v1806 = vmul.f32 1.0, %v1805
    %v1807 = vxor.u32 %v1774, 2147483648
    %v1808 = vmul.f32 %v1807, 1.442695
    %v1809 = vpow.pop %v1808
    %v1810 = vadd.f32 %v1809, 1.0
    %v1811 = vrcp.pop %v1810
    %v1812 = vmul.f32 1.0, %v1811
    %v1813 = vtanh.pop %v1775
    %v1814 = vxor.u32 %v1776, 2147483648
    %v1815 = vmul.f32 %v1814, 1.442695
    %v1816 = vpow.pop %v1815
    %v1817 = vadd.f32 %v1816, 1.0
    %v1818 = vrcp.pop %v1817
    %v1819 = vmul.f32 1.0, %v1818
    %v1820 = vmul.f32 %v1812, %v1476
    %v1821 = vmul.f32 %v1806, %v1813
    %v1822 = vadd.f32 %v1820, %v1821
    %v1823 = vtanh.pop %v1822
    %v1824 = vmul.f32 %v1819, %v1823
    %vm1825 = vcmp.gt.s32.totalorder %v984, 1
    %vm1826 = vcmp.gt.s32.totalorder %v984, 6
    %v1827 = vsel %vm1825, 1, 0
    %1828 = vset.pattern.permute.xlu0 0
    %1829 = vperm.xlu0 %1828, %v1827
    %v1830 = vpop.permute.xlu0 %1829
    %vm1831 = vcmp.eq.s32.totalorder %v1830, 1
    %v1832 = vsel %vm1831, %v1800, %v1468
    %v1833 = vsel %vm1831, %v1798, %v1469
    %v1834 = vsel %vm1826, 1, 0
    %1835 = vset.pattern.permute.xlu0 0
    %1836 = vperm.xlu0 %1835, %v1834
    %v1837 = vpop.permute.xlu0 %1836
    %vm1838 = vcmp.eq.s32.totalorder %v1837, 1
    %v1839 = vsel %vm1838, %v1824, %v1475
    %v1840 = vsel %vm1838, %v1822, %v1476
    %v1841 = vld [vmem:[#allocation2 + $0x80] sm:$0xff]
    %v1842 = vld [vmem:[#allocation2 + $0x88] sm:$0xff]
    %v1843 = vld [vmem:[#allocation2 + $0x90] sm:$0xff]
    %v1844 = vld [vmem:[#allocation2 + $0x98] sm:$0xff]
    %1845 = vmatprep.subr.mxu0 %v990
    %1846 = vmatpush1.msra.mxu0 %v989
    %1847 = vmatprep.subr.mxu0 %v994
    %1848 = vmatpush1.msra.mxu0 %v993
    %1849 = vmatprep.subr.mxu0 %v998
    %1850 = vmatpush1.msra.mxu0 %v997
    %1851 = vmatprep.subr.mxu0 %v1002
    %1852 = vmatpush1.msra.mxu0 %v1001
    %1853 = vmatprep.subr.mxu0 %v1006
    %1854 = vmatpush1.msra.mxu0 %v1005
    %1855 = vmatprep.subr.mxu0 %v1010
    %1856 = vmatpush1.msra.mxu0 %v1009
    %1857 = vmatprep.subr.mxu0 %v1014
    %1858 = vmatpush1.msra.mxu0 %v1013
    %1859 = vmatprep.subr.mxu0 %v1018
    %1860 = vmatpush1.msra.mxu0 %v1017
    %1861 = vmatprep.subr.mxu0 %v1022
    %1862 = vmatpush1.msra.mxu0 %v1021
    %1863 = vmatprep.subr.mxu0 %v1026
    %1864 = vmatpush1.msra.mxu0 %v1025
    %1865 = vmatprep.subr.mxu0 %v1030
    %1866 = vmatpush1.msra.mxu0 %v1029
    %1867 = vmatprep.subr.mxu0 %v1034
    %1868 = vmatpush1.msra.mxu0 %v1033
    %1869 = vmatprep.subr.mxu0 %v1038
    %1870 = vmatpush1.msra.mxu0 %v1037
    %1871 = vmatprep.subr.mxu0 %v1042
    %1872 = vmatpush1.msra.mxu0 %v1041
    %1873 = vmatprep.subr.mxu0 %v1046
    %1874 = vmatpush1.msra.mxu0 %v1045
    %1875 = vmatprep.subr.mxu0 %v1050
    %1876 = vmatpush1.msra.mxu0 %v1049
    %1877 = vmatprep.subr.mxu0 0.0
    %1878 = vmatpush1.msra.mxu0 0.0
    %1879 = vmatprep.subr.mxu0 0.0
    %1880 = vmatpush1.msra.mxu0 0.0
    %1881 = vmatprep.subr.mxu0 0.0
    %1882 = vmatpush1.msra.mxu0 0.0
    %1883 = vmatprep.subr.mxu0 0.0
    %1884 = vmatpush1.msra.mxu0 0.0
    %1885 = vmatprep.subr.mxu0 0.0
    %1886 = vmatpush1.msra.mxu0 0.0
    %1887 = vmatprep.subr.mxu0 0.0
    %1888 = vmatpush1.msra.mxu0 0.0
    %1889 = vmatprep.subr.mxu0 0.0
    %1890 = vmatpush1.msra.mxu0 0.0
    %1891 = vmatprep.subr.mxu0 0.0
    %1892 = vmatpush1.msra.mxu0 0.0
    %1893 = vmatprep.subr.mxu0 0.0
    %1894 = vmatpush1.msra.mxu0 0.0
    %1895 = vmatprep.subr.mxu0 0.0
    %1896 = vmatpush1.msra.mxu0 0.0
    %1897 = vmatprep.subr.mxu0 0.0
    %1898 = vmatpush1.msra.mxu0 0.0
    %1899 = vmatprep.subr.mxu0 0.0
    %1900 = vmatpush1.msra.mxu0 0.0
    %1901 = vmatprep.subr.mxu0 0.0
    %1902 = vmatpush1.msra.mxu0 0.0
    %1903 = vmatprep.subr.mxu0 0.0
    %1904 = vmatpush1.msra.mxu0 0.0
    %1905 = vmatprep.subr.mxu0 0.0
    %1906 = vmatpush1.msra.mxu0 0.0
    %1907 = vmatprep.subr.mxu0 0.0
    %1908 = vmatpush1.msra.mxu0 0.0
    %1909 = vmatprep.mubr.f32.mxu0 0.0
    %1910 = vmatmul.mubr.f32.gmra.mrb[0].mxu0 %v1832
    %v1911 = vpop.f32.mrb[0].mxu0
    %v1912 = vadd.f32 0.0, %v1911
    %v1913 = vpop.f32.mrb[0].mxu0
    %v1914 = vadd.f32 0.0, %v1913
    %1915 = vdwg.mxu0
    %1916 = vmatprep.subr.mxu0 %v992
    %1917 = vmatpush1.msra.mxu0 %v991
    %1918 = vmatprep.subr.mxu0 %v996
    %1919 = vmatpush1.msra.mxu0 %v995
    %1920 = vmatprep.subr.mxu0 %v1000
    %1921 = vmatpush1.msra.mxu0 %v999
    %1922 = vmatprep.subr.mxu0 %v1004
    %1923 = vmatpush1.msra.mxu0 %v1003
    %1924 = vmatprep.subr.mxu0 %v1008
    %1925 = vmatpush1.msra.mxu0 %v1007
    %1926 = vmatprep.subr.mxu0 %v1012
    %1927 = vmatpush1.msra.mxu0 %v1011
    %1928 = vmatprep.subr.mxu0 %v1016
    %1929 = vmatpush1.msra.mxu0 %v1015
    %1930 = vmatprep.subr.mxu0 %v1020
    %1931 = vmatpush1.msra.mxu0 %v1019
    %1932 = vmatprep.subr.mxu0 %v1024
    %1933 = vmatpush1.msra.mxu0 %v1023
    %1934 = vmatprep.subr.mxu0 %v1028
    %1935 = vmatpush1.msra.mxu0 %v1027
    %1936 = vmatprep.subr.mxu0 %v1032
    %1937 = vmatpush1.msra.mxu0 %v1031
    %1938 = vmatprep.subr.mxu0 %v1036
    %1939 = vmatpush1.msra.mxu0 %v1035
    %1940 = vmatprep.subr.mxu0 %v1040
    %1941 = vmatpush1.msra.mxu0 %v1039
    %1942 = vmatprep.subr.mxu0 %v1044
    %1943 = vmatpush1.msra.mxu0 %v1043
    %1944 = vmatprep.subr.mxu0 %v1048
    %1945 = vmatpush1.msra.mxu0 %v1047
    %1946 = vmatprep.subr.mxu0 %v1052
    %1947 = vmatpush1.msra.mxu0 %v1051
    %1948 = vmatprep.subr.mxu0 0.0
    %1949 = vmatpush1.msra.mxu0 0.0
    %1950 = vmatprep.subr.mxu0 0.0
    %1951 = vmatpush1.msra.mxu0 0.0
    %1952 = vmatprep.subr.mxu0 0.0
    %1953 = vmatpush1.msra.mxu0 0.0
    %1954 = vmatprep.subr.mxu0 0.0
    %1955 = vmatpush1.msra.mxu0 0.0
    %1956 = vmatprep.subr.mxu0 0.0
    %1957 = vmatpush1.msra.mxu0 0.0
    %1958 = vmatprep.subr.mxu0 0.0
    %1959 = vmatpush1.msra.mxu0 0.0
    %1960 = vmatprep.subr.mxu0 0.0
    %1961 = vmatpush1.msra.mxu0 0.0
    %1962 = vmatprep.subr.mxu0 0.0
    %1963 = vmatpush1.msra.mxu0 0.0
    %1964 = vmatprep.subr.mxu0 0.0
    %1965 = vmatpush1.msra.mxu0 0.0
    %1966 = vmatprep.subr.mxu0 0.0
    %1967 = vmatpush1.msra.mxu0 0.0
    %1968 = vmatprep.subr.mxu0 0.0
    %1969 = vmatpush1.msra.mxu0 0.0
    %1970 = vmatprep.subr.mxu0 0.0
    %1971 = vmatpush1.msra.mxu0 0.0
    %1972 = vmatprep.subr.mxu0 0.0
    %1973 = vmatpush1.msra.mxu0 0.0
    %1974 = vmatprep.subr.mxu0 0.0
    %1975 = vmatpush1.msra.mxu0 0.0
    %1976 = vmatprep.subr.mxu0 0.0
    %1977 = vmatpush1.msra.mxu0 0.0
    %1978 = vmatprep.subr.mxu0 0.0
    %1979 = vmatpush1.msra.mxu0 0.0
    %1980 = vmatprep.mubr.f32.mxu0 0.0
    %1981 = vmatmul.mubr.f32.gmra.mrb[0].mxu0 %v1832
    %v1982 = vpop.f32.mrb[0].mxu0
    %v1983 = vadd.f32 0.0, %v1982
    %v1984 = vpop.f32.mrb[0].mxu0
    %v1985 = vadd.f32 0.0, %v1984
    %1986 = vdwg.mxu0
    %v1987 = vadd.f32 %v1841, %v1912
    %v1988 = vadd.f32 %v1842, %v1914
    %v1989 = vadd.f32 %v1843, %v1983
    %v1990 = vadd.f32 %v1844, %v1985
    %v1991 = vld [vmem:[#allocation2 + $0x160] sm:$0xff]
    %v1992 = vld [vmem:[#allocation2 + $0x168] sm:$0xff]
    %v1993 = vld [vmem:[#allocation2 + $0x170] sm:$0xff]
    %v1994 = vld [vmem:[#allocation2 + $0x178] sm:$0xff]
    %1995 = vmatprep.subr.mxu0 %v1204
    %1996 = vmatpush1.msra.mxu0 %v1203
    %1997 = vmatprep.subr.mxu0 %v1208
    %1998 = vmatpush1.msra.mxu0 %v1207
    %1999 = vmatprep.subr.mxu0 %v1212
    %2000 = vmatpush1.msra.mxu0 %v1211
    %2001 = vmatprep.subr.mxu0 %v1216
    %2002 = vmatpush1.msra.mxu0 %v1215
    %2003 = vmatprep.subr.mxu0 %v1220
    %2004 = vmatpush1.msra.mxu0 %v1219
    %2005 = vmatprep.subr.mxu0 %v1224
    %2006 = vmatpush1.msra.mxu0 %v1223
    %2007 = vmatprep.subr.mxu0 %v1228
    %2008 = vmatpush1.msra.mxu0 %v1227
    %2009 = vmatprep.subr.mxu0 %v1232
    %2010 = vmatpush1.msra.mxu0 %v1231
    %2011 = vmatprep.subr.mxu0 %v1236
    %2012 = vmatpush1.msra.mxu0 %v1235
    %2013 = vmatprep.subr.mxu0 %v1240
    %2014 = vmatpush1.msra.mxu0 %v1239
    %2015 = vmatprep.subr.mxu0 %v1244
    %2016 = vmatpush1.msra.mxu0 %v1243
    %2017 = vmatprep.subr.mxu0 %v1248
    %2018 = vmatpush1.msra.mxu0 %v1247
    %2019 = vmatprep.subr.mxu0 %v1252
    %2020 = vmatpush1.msra.mxu0 %v1251
    %2021 = vmatprep.subr.mxu0 %v1256
    %2022 = vmatpush1.msra.mxu0 %v1255
    %2023 = vmatprep.subr.mxu0 %v1260
    %2024 = vmatpush1.msra.mxu0 %v1259
    %2025 = vmatprep.subr.mxu0 %v1264
    %2026 = vmatpush1.msra.mxu0 %v1263
    %2027 = vmatprep.subr.mxu0 0.0
    %2028 = vmatpush1.msra.mxu0 0.0
    %2029 = vmatprep.subr.mxu0 0.0
    %2030 = vmatpush1.msra.mxu0 0.0
    %2031 = vmatprep.subr.mxu0 0.0
    %2032 = vmatpush1.msra.mxu0 0.0
    %2033 = vmatprep.subr.mxu0 0.0
    %2034 = vmatpush1.msra.mxu0 0.0
    %2035 = vmatprep.subr.mxu0 0.0
    %2036 = vmatpush1.msra.mxu0 0.0
    %2037 = vmatprep.subr.mxu0 0.0
    %2038 = vmatpush1.msra.mxu0 0.0
    %2039 = vmatprep.subr.mxu0 0.0
    %2040 = vmatpush1.msra.mxu0 0.0
    %2041 = vmatprep.subr.mxu0 0.0
    %2042 = vmatpush1.msra.mxu0 0.0
    %2043 = vmatprep.subr.mxu0 0.0
    %2044 = vmatpush1.msra.mxu0 0.0
    %2045 = vmatprep.subr.mxu0 0.0
    %2046 = vmatpush1.msra.mxu0 0.0
    %2047 = vmatprep.subr.mxu0 0.0
    %2048 = vmatpush1.msra.mxu0 0.0
    %2049 = vmatprep.subr.mxu0 0.0
    %2050 = vmatpush1.msra.mxu0 0.0
    %2051 = vmatprep.subr.mxu0 0.0
    %2052 = vmatpush1.msra.mxu0 0.0
    %2053 = vmatprep.subr.mxu0 0.0
    %2054 = vmatpush1.msra.mxu0 0.0
    %2055 = vmatprep.subr.mxu0 0.0
    %2056 = vmatpush1.msra.mxu0 0.0
    %2057 = vmatprep.subr.mxu0 0.0
    %2058 = vmatpush1.msra.mxu0 0.0
    %2059 = vmatprep.mubr.f32.mxu0 0.0
    %2060 = vmatmul.mubr.f32.gmra.mrb[0].mxu0 %v1839
    %v2061 = vpop.f32.mrb[0].mxu0
    %v2062 = vadd.f32 0.0, %v2061
    %v2063 = vpop.f32.mrb[0].mxu0
    %v2064 = vadd.f32 0.0, %v2063
    %2065 = vdwg.mxu0
    %2066 = vmatprep.subr.mxu0 %v1206
    %2067 = vmatpush1.msra.mxu0 %v1205
    %2068 = vmatprep.subr.mxu0 %v1210
    %2069 = vmatpush1.msra.mxu0 %v1209
    %2070 = vmatprep.subr.mxu0 %v1214
    %2071 = vmatpush1.msra.mxu0 %v1213
    %2072 = vmatprep.subr.mxu0 %v1218
    %2073 = vmatpush1.msra.mxu0 %v1217
    %2074 = vmatprep.subr.mxu0 %v1222
    %2075 = vmatpush1.msra.mxu0 %v1221
    %2076 = vmatprep.subr.mxu0 %v1226
    %2077 = vmatpush1.msra.mxu0 %v1225
    %2078 = vmatprep.subr.mxu0 %v1230
    %2079 = vmatpush1.msra.mxu0 %v1229
    %2080 = vmatprep.subr.mxu0 %v1234
    %2081 = vmatpush1.msra.mxu0 %v1233
    %2082 = vmatprep.subr.mxu0 %v1238
    %2083 = vmatpush1.msra.mxu0 %v1237
    %2084 = vmatprep.subr.mxu0 %v1242
    %2085 = vmatpush1.msra.mxu0 %v1241
    %2086 = vmatprep.subr.mxu0 %v1246
    %2087 = vmatpush1.msra.mxu0 %v1245
    %2088 = vmatprep.subr.mxu0 %v1250
    %2089 = vmatpush1.msra.mxu0 %v1249
    %2090 = vmatprep.subr.mxu0 %v1254
    %2091 = vmatpush1.msra.mxu0 %v1253
    %2092 = vmatprep.subr.mxu0 %v1258
    %2093 = vmatpush1.msra.mxu0 %v1257
    %2094 = vmatprep.subr.mxu0 %v1262
    %2095 = vmatpush1.msra.mxu0 %v1261
    %2096 = vmatprep.subr.mxu0 %v1266
    %2097 = vmatpush1.msra.mxu0 %v1265
    %2098 = vmatprep.subr.mxu0 0.0
    %2099 = vmatpush1.msra.mxu0 0.0
    %2100 = vmatprep.subr.mxu0 0.0
    %2101 = vmatpush1.msra.mxu0 0.0
    %2102 = vmatprep.subr.mxu0 0.0
    %2103 = vmatpush1.msra.mxu0 0.0
    %2104 = vmatprep.subr.mxu0 0.0
    %2105 = vmatpush1.msra.mxu0 0.0
    %2106 = vmatprep.subr.mxu0 0.0
    %2107 = vmatpush1.msra.mxu0 0.0
    %2108 = vmatprep.subr.mxu0 0.0
    %2109 = vmatpush1.msra.mxu0 0.0
    %2110 = vmatprep.subr.mxu0 0.0
    %2111 = vmatpush1.msra.mxu0 0.0
    %2112 = vmatprep.subr.mxu0 0.0
    %2113 = vmatpush1.msra.mxu0 0.0
    %2114 = vmatprep.subr.mxu0 0.0
    %2115 = vmatpush1.msra.mxu0 0.0
    %2116 = vmatprep.subr.mxu0 0.0
    %2117 = vmatpush1.msra.mxu0 0.0
    %2118 = vmatprep.subr.mxu0 0.0
    %2119 = vmatpush1.msra.mxu0 0.0
    %2120 = vmatprep.subr.mxu0 0.0
    %2121 = vmatpush1.msra.mxu0 0.0
    %2122 = vmatprep.subr.mxu0 0.0
    %2123 = vmatpush1.msra.mxu0 0.0
    %2124 = vmatprep.subr.mxu0 0.0
    %2125 = vmatpush1.msra.mxu0 0.0
    %2126 = vmatprep.subr.mxu0 0.0
    %2127 = vmatpush1.msra.mxu0 0.0
    %2128 = vmatprep.subr.mxu0 0.0
    %2129 = vmatpush1.msra.mxu0 0.0
    %2130 = vmatprep.mubr.f32.mxu0 0.0
    %2131 = vmatmul.mubr.f32.gmra.mrb[0].mxu0 %v1839
    %v2132 = vpop.f32.mrb[0].mxu0
    %v2133 = vadd.f32 0.0, %v2132
    %v2134 = vpop.f32.mrb[0].mxu0
    %v2135 = vadd.f32 0.0, %v2134
    %2136 = vdwg.mxu0
    %v2137 = vadd.f32 %v1991, %v2062
    %v2138 = vadd.f32 %v1992, %v2064
    %v2139 = vadd.f32 %v1993, %v2133
    %v2140 = vadd.f32 %v1994, %v2135
    %v2141 = vxor.u32 %v1987, 2147483648
    %v2142 = vmul.f32 %v2141, 1.442695
    %v2143 = vpow.pop %v2142
    %v2144 = vadd.f32 %v2143, 1.0
    %v2145 = vrcp.pop %v2144
    %v2146 = vmul.f32 1.0, %v2145
    %v2147 = vxor.u32 %v1988, 2147483648
    %v2148 = vmul.f32 %v2147, 1.442695
    %v2149 = vpow.pop %v2148
    %v2150 = vadd.f32 %v2149, 1.0
    %v2151 = vrcp.pop %v2150
    %v2152 = vmul.f32 1.0, %v2151
    %v2153 = vtanh.pop %v1989
    %v2154 = vxor.u32 %v1990, 2147483648
    %v2155 = vmul.f32 %v2154, 1.442695
    %v2156 = vpow.pop %v2155
    %v2157 = vadd.f32 %v2156, 1.0
    %v2158 = vrcp.pop %v2157
    %v2159 = vmul.f32 1.0, %v2158
    %v2160 = vmul.f32 %v2152, %v1833
    %v2161 = vmul.f32 %v2146, %v2153
    %v2162 = vadd.f32 %v2160, %v2161
    %v2163 = vtanh.pop %v2162
    %v2164 = vmul.f32 %v2159, %v2163
    %v2165 = vxor.u32 %v2137, 2147483648
    %v2166 = vmul.f32 %v2165, 1.442695
    %v2167 = vpow.pop %v2166
    %v2168 = vadd.f32 %v2167, 1.0
    %v2169 = vrcp.pop %v2168
    %v2170 = vmul.f32 1.0, %v2169
    %v2171 = vxor.u32 %v2138, 2147483648
    %v2172 = vmul.f32 %v2171, 1.442695
    %v2173 = vpow.pop %v2172
    %v2174 = vadd.f32 %v2173, 1.0
    %v2175 = vrcp.pop %v2174
    %v2176 = vmul.f32 1.0, %v2175
    %v2177 = vtanh.pop %v2139
    %v2178 = vxor.u32 %v2140, 2147483648
    %v2179 = vmul.f32 %v2178, 1.442695
    %v2180 = vpow.pop %v2179
    %v2181 = vadd.f32 %v2180, 1.0
    %v2182 = vrcp.pop %v2181
    %v2183 = vmul.f32 1.0, %v2182
    %v2184 = vmul.f32 %v2176, %v1840
    %v2185 = vmul.f32 %v2170, %v2177
    %v2186 = vadd.f32 %v2184, %v2185
    %v2187 = vtanh.pop %v2186
    %v2188 = vmul.f32 %v2183, %v2187
    %vm2189 = vcmp.gt.s32.totalorder %v984, 2
    %vm2190 = vcmp.gt.s32.totalorder %v984, 5
    %v2191 = vsel %vm2189, 1, 0
    %2192 = vset.pattern.permute.xlu0 0
    %2193 = vperm.xlu0 %2192, %v2191
    %v2194 = vpop.permute.xlu0 %2193
    %vm2195 = vcmp.eq.s32.totalorder %v2194, 1
    %v2196 = vsel %vm2195, %v2164, %v1832
    %v2197 = vsel %vm2195, %v2162, %v1833
    %v2198 = vsel %vm2190, 1, 0
    %2199 = vset.pattern.permute.xlu0 0
    %2200 = vperm.xlu0 %2199, %v2198
    %v2201 = vpop.permute.xlu0 %2200
    %vm2202 = vcmp.eq.s32.totalorder %v2201, 1
    %v2203 = vsel %vm2202, %v2188, %v1839
    %v2204 = vsel %vm2202, %v2186, %v1840
    %v2205 = vld [vmem:[#allocation2 + $0xc0] sm:$0xff]
    %v2206 = vld [vmem:[#allocation2 + $0xc8] sm:$0xff]
    %v2207 = vld [vmem:[#allocation2 + $0xd0] sm:$0xff]
    %v2208 = vld [vmem:[#allocation2 + $0xd8] sm:$0xff]
    %2209 = vmatprep.subr.mxu0 %v990
    %2210 = vmatpush1.msra.mxu0 %v989
    %2211 = vmatprep.subr.mxu0 %v994
    %2212 = vmatpush1.msra.mxu0 %v993
    %2213 = vmatprep.subr.mxu0 %v998
    %2214 = vmatpush1.msra.mxu0 %v997
    %2215 = vmatprep.subr.mxu0 %v1002
    %2216 = vmatpush1.msra.mxu0 %v1001
    %2217 = vmatprep.subr.mxu0 %v1006
    %2218 = vmatpush1.msra.mxu0 %v1005
    %2219 = vmatprep.subr.mxu0 %v1010
    %2220 = vmatpush1.msra.mxu0 %v1009
    %2221 = vmatprep.subr.mxu0 %v1014
    %2222 = vmatpush1.msra.mxu0 %v1013
    %2223 = vmatprep.subr.mxu0 %v1018
    %2224 = vmatpush1.msra.mxu0 %v1017
    %2225 = vmatprep.subr.mxu0 %v1022
    %2226 = vmatpush1.msra.mxu0 %v1021
    %2227 = vmatprep.subr.mxu0 %v1026
    %2228 = vmatpush1.msra.mxu0 %v1025
    %2229 = vmatprep.subr.mxu0 %v1030
    %2230 = vmatpush1.msra.mxu0 %v1029
    %2231 = vmatprep.subr.mxu0 %v1034
    %2232 = vmatpush1.msra.mxu0 %v1033
    %2233 = vmatprep.subr.mxu0 %v1038
    %2234 = vmatpush1.msra.mxu0 %v1037
    %2235 = vmatprep.subr.mxu0 %v1042
    %2236 = vmatpush1.msra.mxu0 %v1041
    %2237 = vmatprep.subr.mxu0 %v1046
    %2238 = vmatpush1.msra.mxu0 %v1045
    %2239 = vmatprep.subr.mxu0 %v1050
    %2240 = vmatpush1.msra.mxu0 %v1049
    %2241 = vmatprep.subr.mxu0 0.0
    %2242 = vmatpush1.msra.mxu0 0.0
    %2243 = vmatprep.subr.mxu0 0.0
    %2244 = vmatpush1.msra.mxu0 0.0
    %2245 = vmatprep.subr.mxu0 0.0
    %2246 = vmatpush1.msra.mxu0 0.0
    %2247 = vmatprep.subr.mxu0 0.0
    %2248 = vmatpush1.msra.mxu0 0.0
    %2249 = vmatprep.subr.mxu0 0.0
    %2250 = vmatpush1.msra.mxu0 0.0
    %2251 = vmatprep.subr.mxu0 0.0
    %2252 = vmatpush1.msra.mxu0 0.0
    %2253 = vmatprep.subr.mxu0 0.0
    %2254 = vmatpush1.msra.mxu0 0.0
    %2255 = vmatprep.subr.mxu0 0.0
    %2256 = vmatpush1.msra.mxu0 0.0
    %2257 = vmatprep.subr.mxu0 0.0
    %2258 = vmatpush1.msra.mxu0 0.0
    %2259 = vmatprep.subr.mxu0 0.0
    %2260 = vmatpush1.msra.mxu0 0.0
    %2261 = vmatprep.subr.mxu0 0.0
    %2262 = vmatpush1.msra.mxu0 0.0
    %2263 = vmatprep.subr.mxu0 0.0
    %2264 = vmatpush1.msra.mxu0 0.0
    %2265 = vmatprep.subr.mxu0 0.0
    %2266 = vmatpush1.msra.mxu0 0.0
    %2267 = vmatprep.subr.mxu0 0.0
    %2268 = vmatpush1.msra.mxu0 0.0
    %2269 = vmatprep.subr.mxu0 0.0
    %2270 = vmatpush1.msra.mxu0 0.0
    %2271 = vmatprep.subr.mxu0 0.0
    %2272 = vmatpush1.msra.mxu0 0.0
    %2273 = vmatprep.mubr.f32.mxu0 0.0
    %2274 = vmatmul.mubr.f32.gmra.mrb[0].mxu0 %v2196
    %v2275 = vpop.f32.mrb[0].mxu0
    %v2276 = vadd.f32 0.0, %v2275
    %v2277 = vpop.f32.mrb[0].mxu0
    %v2278 = vadd.f32 0.0, %v2277
    %2279 = vdwg.mxu0
    %2280 = vmatprep.subr.mxu0 %v992
    %2281 = vmatpush1.msra.mxu0 %v991
    %2282 = vmatprep.subr.mxu0 %v996
    %2283 = vmatpush1.msra.mxu0 %v995
    %2284 = vmatprep.subr.mxu0 %v1000
    %2285 = vmatpush1.msra.mxu0 %v999
    %2286 = vmatprep.subr.mxu0 %v1004
    %2287 = vmatpush1.msra.mxu0 %v1003
    %2288 = vmatprep.subr.mxu0 %v1008
    %2289 = vmatpush1.msra.mxu0 %v1007
    %2290 = vmatprep.subr.mxu0 %v1012
    %2291 = vmatpush1.msra.mxu0 %v1011
    %2292 = vmatprep.subr.mxu0 %v1016
    %2293 = vmatpush1.msra.mxu0 %v1015
    %2294 = vmatprep.subr.mxu0 %v1020
    %2295 = vmatpush1.msra.mxu0 %v1019
    %2296 = vmatprep.subr.mxu0 %v1024
    %2297 = vmatpush1.msra.mxu0 %v1023
    %2298 = vmatprep.subr.mxu0 %v1028
    %2299 = vmatpush1.msra.mxu0 %v1027
    %2300 = vmatprep.subr.mxu0 %v1032
    %2301 = vmatpush1.msra.mxu0 %v1031
    %2302 = vmatprep.subr.mxu0 %v1036
    %2303 = vmatpush1.msra.mxu0 %v1035
    %2304 = vmatprep.subr.mxu0 %v1040
    %2305 = vmatpush1.msra.mxu0 %v1039
    %2306 = vmatprep.subr.mxu0 %v1044
    %2307 = vmatpush1.msra.mxu0 %v1043
    %2308 = vmatprep.subr.mxu0 %v1048
    %2309 = vmatpush1.msra.mxu0 %v1047
    %2310 = vmatprep.subr.mxu0 %v1052
    %2311 = vmatpush1.msra.mxu0 %v1051
    %2312 = vmatprep.subr.mxu0 0.0
    %2313 = vmatpush1.msra.mxu0 0.0
    %2314 = vmatprep.subr.mxu0 0.0
    %2315 = vmatpush1.msra.mxu0 0.0
    %2316 = vmatprep.subr.mxu0 0.0
    %2317 = vmatpush1.msra.mxu0 0.0
    %2318 = vmatprep.subr.mxu0 0.0
    %2319 = vmatpush1.msra.mxu0 0.0
    %2320 = vmatprep.subr.mxu0 0.0
    %2321 = vmatpush1.msra.mxu0 0.0
    %2322 = vmatprep.subr.mxu0 0.0
    %2323 = vmatpush1.msra.mxu0 0.0
    %2324 = vmatprep.subr.mxu0 0.0
    %2325 = vmatpush1.msra.mxu0 0.0
    %2326 = vmatprep.subr.mxu0 0.0
    %2327 = vmatpush1.msra.mxu0 0.0
    %2328 = vmatprep.subr.mxu0 0.0
    %2329 = vmatpush1.msra.mxu0 0.0
    %2330 = vmatprep.subr.mxu0 0.0
    %2331 = vmatpush1.msra.mxu0 0.0
    %2332 = vmatprep.subr.mxu0 0.0
    %2333 = vmatpush1.msra.mxu0 0.0
    %2334 = vmatprep.subr.mxu0 0.0
    %2335 = vmatpush1.msra.mxu0 0.0
    %2336 = vmatprep.subr.mxu0 0.0
    %2337 = vmatpush1.msra.mxu0 0.0
    %2338 = vmatprep.subr.mxu0 0.0
    %2339 = vmatpush1.msra.mxu0 0.0
    %2340 = vmatprep.subr.mxu0 0.0
    %2341 = vmatpush1.msra.mxu0 0.0
    %2342 = vmatprep.subr.mxu0 0.0
    %2343 = vmatpush1.msra.mxu0 0.0
    %2344 = vmatprep.mubr.f32.mxu0 0.0
    %2345 = vmatmul.mubr.f32.gmra.mrb[0].mxu0 %v2196
    %v2346 = vpop.f32.mrb[0].mxu0
    %v2347 = vadd.f32 0.0, %v2346
    %v2348 = vpop.f32.mrb[0].mxu0
    %v2349 = vadd.f32 0.0, %v2348
    %2350 = vdwg.mxu0
    %v2351 = vadd.f32 %v2205, %v2276
    %v2352 = vadd.f32 %v2206, %v2278
    %v2353 = vadd.f32 %v2207, %v2347
    %v2354 = vadd.f32 %v2208, %v2349
    %v2355 = vld [vmem:[#allocation2 + $0x120] sm:$0xff]
    %v2356 = vld [vmem:[#allocation2 + $0x128] sm:$0xff]
    %v2357 = vld [vmem:[#allocation2 + $0x130] sm:$0xff]
    %v2358 = vld [vmem:[#allocation2 + $0x138] sm:$0xff]
    %2359 = vmatprep.subr.mxu0 %v1204
    %2360 = vmatpush1.msra.mxu0 %v1203
    %2361 = vmatprep.subr.mxu0 %v1208
    %2362 = vmatpush1.msra.mxu0 %v1207
    %2363 = vmatprep.subr.mxu0 %v1212
    %2364 = vmatpush1.msra.mxu0 %v1211
    %2365 = vmatprep.subr.mxu0 %v1216
    %2366 = vmatpush1.msra.mxu0 %v1215
    %2367 = vmatprep.subr.mxu0 %v1220
    %2368 = vmatpush1.msra.mxu0 %v1219
    %2369 = vmatprep.subr.mxu0 %v1224
    %2370 = vmatpush1.msra.mxu0 %v1223
    %2371 = vmatprep.subr.mxu0 %v1228
    %2372 = vmatpush1.msra.mxu0 %v1227
    %2373 = vmatprep.subr.mxu0 %v1232
    %2374 = vmatpush1.msra.mxu0 %v1231
    %2375 = vmatprep.subr.mxu0 %v1236
    %2376 = vmatpush1.msra.mxu0 %v1235
    %2377 = vmatprep.subr.mxu0 %v1240
    %2378 = vmatpush1.msra.mxu0 %v1239
    %2379 = vmatprep.subr.mxu0 %v1244
    %2380 = vmatpush1.msra.mxu0 %v1243
    %2381 = vmatprep.subr.mxu0 %v1248
    %2382 = vmatpush1.msra.mxu0 %v1247
    %2383 = vmatprep.subr.mxu0 %v1252
    %2384 = vmatpush1.msra.mxu0 %v1251
    %2385 = vmatprep.subr.mxu0 %v1256
    %2386 = vmatpush1.msra.mxu0 %v1255
    %2387 = vmatprep.subr.mxu0 %v1260
    %2388 = vmatpush1.msra.mxu0 %v1259
    %2389 = vmatprep.subr.mxu0 %v1264
    %2390 = vmatpush1.msra.mxu0 %v1263
    %2391 = vmatprep.subr.mxu0 0.0
    %2392 = vmatpush1.msra.mxu0 0.0
    %2393 = vmatprep.subr.mxu0 0.0
    %2394 = vmatpush1.msra.mxu0 0.0
    %2395 = vmatprep.subr.mxu0 0.0
    %2396 = vmatpush1.msra.mxu0 0.0
    %2397 = vmatprep.subr.mxu0 0.0
    %2398 = vmatpush1.msra.mxu0 0.0
    %2399 = vmatprep.subr.mxu0 0.0
    %2400 = vmatpush1.msra.mxu0 0.0
    %2401 = vmatprep.subr.mxu0 0.0
    %2402 = vmatpush1.msra.mxu0 0.0
    %2403 = vmatprep.subr.mxu0 0.0
    %2404 = vmatpush1.msra.mxu0 0.0
    %2405 = vmatprep.subr.mxu0 0.0
    %2406 = vmatpush1.msra.mxu0 0.0
    %2407 = vmatprep.subr.mxu0 0.0
    %2408 = vmatpush1.msra.mxu0 0.0
    %2409 = vmatprep.subr.mxu0 0.0
    %2410 = vmatpush1.msra.mxu0 0.0
    %2411 = vmatprep.subr.mxu0 0.0
    %2412 = vmatpush1.msra.mxu0 0.0
    %2413 = vmatprep.subr.mxu0 0.0
    %2414 = vmatpush1.msra.mxu0 0.0
    %2415 = vmatprep.subr.mxu0 0.0
    %2416 = vmatpush1.msra.mxu0 0.0
    %2417 = vmatprep.subr.mxu0 0.0
    %2418 = vmatpush1.msra.mxu0 0.0
    %2419 = vmatprep.subr.mxu0 0.0
    %2420 = vmatpush1.msra.mxu0 0.0
    %2421 = vmatprep.subr.mxu0 0.0
    %2422 = vmatpush1.msra.mxu0 0.0
    %2423 = vmatprep.mubr.f32.mxu0 0.0
    %2424 = vmatmul.mubr.f32.gmra.mrb[0].mxu0 %v2203
    %v2425 = vpop.f32.mrb[0].mxu0
    %v2426 = vadd.f32 0.0, %v2425
    %v2427 = vpop.f32.mrb[0].mxu0
    %v2428 = vadd.f32 0.0, %v2427
    %2429 = vdwg.mxu0
    %2430 = vmatprep.subr.mxu0 %v1206
    %2431 = vmatpush1.msra.mxu0 %v1205
    %2432 = vmatprep.subr.mxu0 %v1210
    %2433 = vmatpush1.msra.mxu0 %v1209
    %2434 = vmatprep.subr.mxu0 %v1214
    %2435 = vmatpush1.msra.mxu0 %v1213
    %2436 = vmatprep.subr.mxu0 %v1218
    %2437 = vmatpush1.msra.mxu0 %v1217
    %2438 = vmatprep.subr.mxu0 %v1222
    %2439 = vmatpush1.msra.mxu0 %v1221
    %2440 = vmatprep.subr.mxu0 %v1226
    %2441 = vmatpush1.msra.mxu0 %v1225
    %2442 = vmatprep.subr.mxu0 %v1230
    %2443 = vmatpush1.msra.mxu0 %v1229
    %2444 = vmatprep.subr.mxu0 %v1234
    %2445 = vmatpush1.msra.mxu0 %v1233
    %2446 = vmatprep.subr.mxu0 %v1238
    %2447 = vmatpush1.msra.mxu0 %v1237
    %2448 = vmatprep.subr.mxu0 %v1242
    %2449 = vmatpush1.msra.mxu0 %v1241
    %2450 = vmatprep.subr.mxu0 %v1246
    %2451 = vmatpush1.msra.mxu0 %v1245
    %2452 = vmatprep.subr.mxu0 %v1250
    %2453 = vmatpush1.msra.mxu0 %v1249
    %2454 = vmatprep.subr.mxu0 %v1254
    %2455 = vmatpush1.msra.mxu0 %v1253
    %2456 = vmatprep.subr.mxu0 %v1258
    %2457 = vmatpush1.msra.mxu0 %v1257
    %2458 = vmatprep.subr.mxu0 %v1262
    %2459 = vmatpush1.msra.mxu0 %v1261
    %2460 = vmatprep.subr.mxu0 %v1266
    %2461 = vmatpush1.msra.mxu0 %v1265
    %2462 = vmatprep.subr.mxu0 0.0
    %2463 = vmatpush1.msra.mxu0 0.0
    %2464 = vmatprep.subr.mxu0 0.0
    %2465 = vmatpush1.msra.mxu0 0.0
    %2466 = vmatprep.subr.mxu0 0.0
    %2467 = vmatpush1.msra.mxu0 0.0
    %2468 = vmatprep.subr.mxu0 0.0
    %2469 = vmatpush1.msra.mxu0 0.0
    %2470 = vmatprep.subr.mxu0 0.0
    %2471 = vmatpush1.msra.mxu0 0.0
    %2472 = vmatprep.subr.mxu0 0.0
    %2473 = vmatpush1.msra.mxu0 0.0
    %2474 = vmatprep.subr.mxu0 0.0
    %2475 = vmatpush1.msra.mxu0 0.0
    %2476 = vmatprep.subr.mxu0 0.0
    %2477 = vmatpush1.msra.mxu0 0.0
    %2478 = vmatprep.subr.mxu0 0.0
    %2479 = vmatpush1.msra.mxu0 0.0
    %2480 = vmatprep.subr.mxu0 0.0
    %2481 = vmatpush1.msra.mxu0 0.0
    %2482 = vmatprep.subr.mxu0 0.0
    %2483 = vmatpush1.msra.mxu0 0.0
    %2484 = vmatprep.subr.mxu0 0.0
    %2485 = vmatpush1.msra.mxu0 0.0
    %2486 = vmatprep.subr.mxu0 0.0
    %2487 = vmatpush1.msra.mxu0 0.0
    %2488 = vmatprep.subr.mxu0 0.0
    %2489 = vmatpush1.msra.mxu0 0.0
    %2490 = vmatprep.subr.mxu0 0.0
    %2491 = vmatpush1.msra.mxu0 0.0
    %2492 = vmatprep.subr.mxu0 0.0
    %2493 = vmatpush1.msra.mxu0 0.0
    %2494 = vmatprep.mubr.f32.mxu0 0.0
    %2495 = vmatmul.mubr.f32.gmra.mrb[0].mxu0 %v2203
    %v2496 = vpop.f32.mrb[0].mxu0
    %v2497 = vadd.f32 0.0, %v2496
    %v2498 = vpop.f32.mrb[0].mxu0
    %v2499 = vadd.f32 0.0, %v2498
    %2500 = vdwg.mxu0
    %v2501 = vadd.f32 %v2355, %v2426
    %v2502 = vadd.f32 %v2356, %v2428
    %v2503 = vadd.f32 %v2357, %v2497
    %v2504 = vadd.f32 %v2358, %v2499
    %v2505 = vxor.u32 %v2351, 2147483648
    %v2506 = vmul.f32 %v2505, 1.442695
    %v2507 = vpow.pop %v2506
    %v2508 = vadd.f32 %v2507, 1.0
    %v2509 = vrcp.pop %v2508
    %v2510 = vmul.f32 1.0, %v2509
    %v2511 = vxor.u32 %v2352, 2147483648
    %v2512 = vmul.f32 %v2511, 1.442695
    %v2513 = vpow.pop %v2512
    %v2514 = vadd.f32 %v2513, 1.0
    %v2515 = vrcp.pop %v2514
    %v2516 = vmul.f32 1.0, %v2515
    %v2517 = vtanh.pop %v2353
    %v2518 = vxor.u32 %v2354, 2147483648
    %v2519 = vmul.f32 %v2518, 1.442695
    %v2520 = vpow.pop %v2519
    %v2521 = vadd.f32 %v2520, 1.0
    %v2522 = vrcp.pop %v2521
    %v2523 = vmul.f32 1.0, %v2522
    %v2524 = vmul.f32 %v2516, %v2197
    %v2525 = vmul.f32 %v2510, %v2517
    %v2526 = vadd.f32 %v2524, %v2525
    %v2527 = vtanh.pop %v2526
    %v2528 = vmul.f32 %v2523, %v2527
    %v2529 = vxor.u32 %v2501, 2147483648
    %v2530 = vmul.f32 %v2529, 1.442695
    %v2531 = vpow.pop %v2530
    %v2532 = vadd.f32 %v2531, 1.0
    %v2533 = vrcp.pop %v2532
    %v2534 = vmul.f32 1.0, %v2533
    %v2535 = vxor.u32 %v2502, 2147483648
    %v2536 = vmul.f32 %v2535, 1.442695
    %v2537 = vpow.pop %v2536
    %v2538 = vadd.f32 %v2537, 1.0
    %v2539 = vrcp.pop %v2538
    %v2540 = vmul.f32 1.0, %v2539
    %v2541 = vtanh.pop %v2503
    %v2542 = vxor.u32 %v2504, 2147483648
    %v2543 = vmul.f32 %v2542, 1.442695
    %v2544 = vpow.pop %v2543
    %v2545 = vadd.f32 %v2544, 1.0
    %v2546 = vrcp.pop %v2545
    %v2547 = vmul.f32 1.0, %v2546
    %v2548 = vmul.f32 %v2540, %v2204
    %v2549 = vmul.f32 %v2534, %v2541
    %v2550 = vadd.f32 %v2548, %v2549
    %v2551 = vtanh.pop %v2550
    %v2552 = vmul.f32 %v2547, %v2551
    %vm2553 = vcmp.gt.s32.totalorder %v984, 3
    %vm2554 = vcmp.gt.s32.totalorder %v984, 4
    %v2555 = vsel %vm2553, 1, 0
    %2556 = vset.pattern.permute.xlu0 0
    %2557 = vperm.xlu0 %2556, %v2555
    %v2558 = vpop.permute.xlu0 %2557
    %vm2559 = vcmp.eq.s32.totalorder %v2558, 1
    %v2560 = vsel %vm2559, %v2528, %v2196
    %v2561 = vsel %vm2559, %v2526, %v2197
    %v2562 = vsel %vm2554, 1, 0
    %2563 = vset.pattern.permute.xlu0 0
    %2564 = vperm.xlu0 %2563, %v2562
    %v2565 = vpop.permute.xlu0 %2564
    %vm2566 = vcmp.eq.s32.totalorder %v2565, 1
    %v2567 = vsel %vm2566, %v2552, %v2203
    %v2568 = vsel %vm2566, %v2550, %v2204
    %v2569 = vld [vmem:[#allocation2 + $0x100] sm:$0xff]
    %v2570 = vld [vmem:[#allocation2 + $0x108] sm:$0xff]
    %v2571 = vld [vmem:[#allocation2 + $0x110] sm:$0xff]
    %v2572 = vld [vmem:[#allocation2 + $0x118] sm:$0xff]
    %2573 = vmatprep.subr.mxu0 %v990
    %2574 = vmatpush1.msra.mxu0 %v989
    %2575 = vmatprep.subr.mxu0 %v994
    %2576 = vmatpush1.msra.mxu0 %v993
    %2577 = vmatprep.subr.mxu0 %v998
    %2578 = vmatpush1.msra.mxu0 %v997
    %2579 = vmatprep.subr.mxu0 %v1002
    %2580 = vmatpush1.msra.mxu0 %v1001
    %2581 = vmatprep.subr.mxu0 %v1006
    %2582 = vmatpush1.msra.mxu0 %v1005
    %2583 = vmatprep.subr.mxu0 %v1010
    %2584 = vmatpush1.msra.mxu0 %v1009
    %2585 = vmatprep.subr.mxu0 %v1014
    %2586 = vmatpush1.msra.mxu0 %v1013
    %2587 = vmatprep.subr.mxu0 %v1018
    %2588 = vmatpush1.msra.mxu0 %v1017
    %2589 = vmatprep.subr.mxu0 %v1022
    %2590 = vmatpush1.msra.mxu0 %v1021
    %2591 = vmatprep.subr.mxu0 %v1026
    %2592 = vmatpush1.msra.mxu0 %v1025
    %2593 = vmatprep.subr.mxu0 %v1030
    %2594 = vmatpush1.msra.mxu0 %v1029
    %2595 = vmatprep.subr.mxu0 %v1034
    %2596 = vmatpush1.msra.mxu0 %v1033
    %2597 = vmatprep.subr.mxu0 %v1038
    %2598 = vmatpush1.msra.mxu0 %v1037
    %2599 = vmatprep.subr.mxu0 %v1042
    %2600 = vmatpush1.msra.mxu0 %v1041
    %2601 = vmatprep.subr.mxu0 %v1046
    %2602 = vmatpush1.msra.mxu0 %v1045
    %2603 = vmatprep.subr.mxu0 %v1050
    %2604 = vmatpush1.msra.mxu0 %v1049
    %2605 = vmatprep.subr.mxu0 0.0
    %2606 = vmatpush1.msra.mxu0 0.0
    %2607 = vmatprep.subr.mxu0 0.0
    %2608 = vmatpush1.msra.mxu0 0.0
    %2609 = vmatprep.subr.mxu0 0.0
    %2610 = vmatpush1.msra.mxu0 0.0
    %2611 = vmatprep.subr.mxu0 0.0
    %2612 = vmatpush1.msra.mxu0 0.0
    %2613 = vmatprep.subr.mxu0 0.0
    %2614 = vmatpush1.msra.mxu0 0.0
    %2615 = vmatprep.subr.mxu0 0.0
    %2616 = vmatpush1.msra.mxu0 0.0
    %2617 = vmatprep.subr.mxu0 0.0
    %2618 = vmatpush1.msra.mxu0 0.0
    %2619 = vmatprep.subr.mxu0 0.0
    %2620 = vmatpush1.msra.mxu0 0.0
    %2621 = vmatprep.subr.mxu0 0.0
    %2622 = vmatpush1.msra.mxu0 0.0
    %2623 = vmatprep.subr.mxu0 0.0
    %2624 = vmatpush1.msra.mxu0 0.0
    %2625 = vmatprep.subr.mxu0 0.0
    %2626 = vmatpush1.msra.mxu0 0.0
    %2627 = vmatprep.subr.mxu0 0.0
    %2628 = vmatpush1.msra.mxu0 0.0
    %2629 = vmatprep.subr.mxu0 0.0
    %2630 = vmatpush1.msra.mxu0 0.0
    %2631 = vmatprep.subr.mxu0 0.0
    %2632 = vmatpush1.msra.mxu0 0.0
    %2633 = vmatprep.subr.mxu0 0.0
    %2634 = vmatpush1.msra.mxu0 0.0
    %2635 = vmatprep.subr.mxu0 0.0
    %2636 = vmatpush1.msra.mxu0 0.0
    %2637 = vmatprep.mubr.f32.mxu0 0.0
    %2638 = vmatmul.mubr.f32.gmra.mrb[0].mxu0 %v2560
    %v2639 = vpop.f32.mrb[0].mxu0
    %v2640 = vadd.f32 0.0, %v2639
    %v2641 = vpop.f32.mrb[0].mxu0
    %v2642 = vadd.f32 0.0, %v2641
    %2643 = vdwg.mxu0
    %2644 = vmatprep.subr.mxu0 %v992
    %2645 = vmatpush1.msra.mxu0 %v991
    %2646 = vmatprep.subr.mxu0 %v996
    %2647 = vmatpush1.msra.mxu0 %v995
    %2648 = vmatprep.subr.mxu0 %v1000
    %2649 = vmatpush1.msra.mxu0 %v999
    %2650 = vmatprep.subr.mxu0 %v1004
    %2651 = vmatpush1.msra.mxu0 %v1003
    %2652 = vmatprep.subr.mxu0 %v1008
    %2653 = vmatpush1.msra.mxu0 %v1007
    %2654 = vmatprep.subr.mxu0 %v1012
    %2655 = vmatpush1.msra.mxu0 %v1011
    %2656 = vmatprep.subr.mxu0 %v1016
    %2657 = vmatpush1.msra.mxu0 %v1015
    %2658 = vmatprep.subr.mxu0 %v1020
    %2659 = vmatpush1.msra.mxu0 %v1019
    %2660 = vmatprep.subr.mxu0 %v1024
    %2661 = vmatpush1.msra.mxu0 %v1023
    %2662 = vmatprep.subr.mxu0 %v1028
    %2663 = vmatpush1.msra.mxu0 %v1027
    %2664 = vmatprep.subr.mxu0 %v1032
    %2665 = vmatpush1.msra.mxu0 %v1031
    %2666 = vmatprep.subr.mxu0 %v1036
    %2667 = vmatpush1.msra.mxu0 %v1035
    %2668 = vmatprep.subr.mxu0 %v1040
    %2669 = vmatpush1.msra.mxu0 %v1039
    %2670 = vmatprep.subr.mxu0 %v1044
    %2671 = vmatpush1.msra.mxu0 %v1043
    %2672 = vmatprep.subr.mxu0 %v1048
    %2673 = vmatpush1.msra.mxu0 %v1047
    %2674 = vmatprep.subr.mxu0 %v1052
    %2675 = vmatpush1.msra.mxu0 %v1051
    %2676 = vmatprep.subr.mxu0 0.0
    %2677 = vmatpush1.msra.mxu0 0.0
    %2678 = vmatprep.subr.mxu0 0.0
    %2679 = vmatpush1.msra.mxu0 0.0
    %2680 = vmatprep.subr.mxu0 0.0
    %2681 = vmatpush1.msra.mxu0 0.0
    %2682 = vmatprep.subr.mxu0 0.0
    %2683 = vmatpush1.msra.mxu0 0.0
    %2684 = vmatprep.subr.mxu0 0.0
    %2685 = vmatpush1.msra.mxu0 0.0
    %2686 = vmatprep.subr.mxu0 0.0
    %2687 = vmatpush1.msra.mxu0 0.0
    %2688 = vmatprep.subr.mxu0 0.0
    %2689 = vmatpush1.msra.mxu0 0.0
    %2690 = vmatprep.subr.mxu0 0.0
    %2691 = vmatpush1.msra.mxu0 0.0
    %2692 = vmatprep.subr.mxu0 0.0
    %2693 = vmatpush1.msra.mxu0 0.0
    %2694 = vmatprep.subr.mxu0 0.0
    %2695 = vmatpush1.msra.mxu0 0.0
    %2696 = vmatprep.subr.mxu0 0.0
    %2697 = vmatpush1.msra.mxu0 0.0
    %2698 = vmatprep.subr.mxu0 0.0
    %2699 = vmatpush1.msra.mxu0 0.0
    %2700 = vmatprep.subr.mxu0 0.0
    %2701 = vmatpush1.msra.mxu0 0.0
    %2702 = vmatprep.subr.mxu0 0.0
    %2703 = vmatpush1.msra.mxu0 0.0
    %2704 = vmatprep.subr.mxu0 0.0
    %2705 = vmatpush1.msra.mxu0 0.0
    %2706 = vmatprep.subr.mxu0 0.0
    %2707 = vmatpush1.msra.mxu0 0.0
    %2708 = vmatprep.mubr.f32.mxu0 0.0
    %2709 = vmatmul.mubr.f32.gmra.mrb[0].mxu0 %v2560
    %v2710 = vpop.f32.mrb[0].mxu0
    %v2711 = vadd.f32 0.0, %v2710
    %v2712 = vpop.f32.mrb[0].mxu0
    %v2713 = vadd.f32 0.0, %v2712
    %2714 = vdwg.mxu0
    %v2715 = vadd.f32 %v2569, %v2640
    %v2716 = vadd.f32 %v2570, %v2642
    %v2717 = vadd.f32 %v2571, %v2711
    %v2718 = vadd.f32 %v2572, %v2713
    %v2719 = vld [vmem:[#allocation2 + $0xe0] sm:$0xff]
    %v2720 = vld [vmem:[#allocation2 + $0xe8] sm:$0xff]
    %v2721 = vld [vmem:[#allocation2 + $0xf0] sm:$0xff]
    %v2722 = vld [vmem:[#allocation2 + $0xf8] sm:$0xff]
    %2723 = vmatprep.subr.mxu0 %v1204
    %2724 = vmatpush1.msra.mxu0 %v1203
    %2725 = vmatprep.subr.mxu0 %v1208
    %2726 = vmatpush1.msra.mxu0 %v1207
    %2727 = vmatprep.subr.mxu0 %v1212
    %2728 = vmatpush1.msra.mxu0 %v1211
    %2729 = vmatprep.subr.mxu0 %v1216
    %2730 = vmatpush1.msra.mxu0 %v1215
    %2731 = vmatprep.subr.mxu0 %v1220
    %2732 = vmatpush1.msra.mxu0 %v1219
    %2733 = vmatprep.subr.mxu0 %v1224
    %2734 = vmatpush1.msra.mxu0 %v1223
    %2735 = vmatprep.subr.mxu0 %v1228
    %2736 = vmatpush1.msra.mxu0 %v1227
    %2737 = vmatprep.subr.mxu0 %v1232
    %2738 = vmatpush1.msra.mxu0 %v1231
    %2739 = vmatprep.subr.mxu0 %v1236
    %2740 = vmatpush1.msra.mxu0 %v1235
    %2741 = vmatprep.subr.mxu0 %v1240
    %2742 = vmatpush1.msra.mxu0 %v1239
    %2743 = vmatprep.subr.mxu0 %v1244
    %2744 = vmatpush1.msra.mxu0 %v1243
    %2745 = vmatprep.subr.mxu0 %v1248
    %2746 = vmatpush1.msra.mxu0 %v1247
    %2747 = vmatprep.subr.mxu0 %v1252
    %2748 = vmatpush1.msra.mxu0 %v1251
    %2749 = vmatprep.subr.mxu0 %v1256
    %2750 = vmatpush1.msra.mxu0 %v1255
    %2751 = vmatprep.subr.mxu0 %v1260
    %2752 = vmatpush1.msra.mxu0 %v1259
    %2753 = vmatprep.subr.mxu0 %v1264
    %2754 = vmatpush1.msra.mxu0 %v1263
    %2755 = vmatprep.subr.mxu0 0.0
    %2756 = vmatpush1.msra.mxu0 0.0
    %2757 = vmatprep.subr.mxu0 0.0
    %2758 = vmatpush1.msra.mxu0 0.0
    %2759 = vmatprep.subr.mxu0 0.0
    %2760 = vmatpush1.msra.mxu0 0.0
    %2761 = vmatprep.subr.mxu0 0.0
    %2762 = vmatpush1.msra.mxu0 0.0
    %2763 = vmatprep.subr.mxu0 0.0
    %2764 = vmatpush1.msra.mxu0 0.0
    %2765 = vmatprep.subr.mxu0 0.0
    %2766 = vmatpush1.msra.mxu0 0.0
    %2767 = vmatprep.subr.mxu0 0.0
    %2768 = vmatpush1.msra.mxu0 0.0
    %2769 = vmatprep.subr.mxu0 0.0
    %2770 = vmatpush1.msra.mxu0 0.0
    %2771 = vmatprep.subr.mxu0 0.0
    %2772 = vmatpush1.msra.mxu0 0.0
    %2773 = vmatprep.subr.mxu0 0.0
    %2774 = vmatpush1.msra.mxu0 0.0
    %2775 = vmatprep.subr.mxu0 0.0
    %2776 = vmatpush1.msra.mxu0 0.0
    %2777 = vmatprep.subr.mxu0 0.0
    %2778 = vmatpush1.msra.mxu0 0.0
    %2779 = vmatprep.subr.mxu0 0.0
    %2780 = vmatpush1.msra.mxu0 0.0
    %2781 = vmatprep.subr.mxu0 0.0
    %2782 = vmatpush1.msra.mxu0 0.0
    %2783 = vmatprep.subr.mxu0 0.0
    %2784 = vmatpush1.msra.mxu0 0.0
    %2785 = vmatprep.subr.mxu0 0.0
    %2786 = vmatpush1.msra.mxu0 0.0
    %2787 = vmatprep.mubr.f32.mxu0 0.0
    %2788 = vmatmul.mubr.f32.gmra.mrb[0].mxu0 %v2567
    %v2789 = vpop.f32.mrb[0].mxu0
    %v2790 = vadd.f32 0.0, %v2789
    %v2791 = vpop.f32.mrb[0].mxu0
    %v2792 = vadd.f32 0.0, %v2791
    %2793 = vdwg.mxu0
    %2794 = vmatprep.subr.mxu0 %v1206
    %2795 = vmatpush1.msra.mxu0 %v1205
    %2796 = vmatprep.subr.mxu0 %v1210
    %2797 = vmatpush1.msra.mxu0 %v1209
    %2798 = vmatprep.subr.mxu0 %v1214
    %2799 = vmatpush1.msra.mxu0 %v1213
    %2800 = vmatprep.subr.mxu0 %v1218
    %2801 = vmatpush1.msra.mxu0 %v1217
    %2802 = vmatprep.subr.mxu0 %v1222
    %2803 = vmatpush1.msra.mxu0 %v1221
    %2804 = vmatprep.subr.mxu0 %v1226
    %2805 = vmatpush1.msra.mxu0 %v1225
    %2806 = vmatprep.subr.mxu0 %v1230
    %2807 = vmatpush1.msra.mxu0 %v1229
    %2808 = vmatprep.subr.mxu0 %v1234
    %2809 = vmatpush1.msra.mxu0 %v1233
    %2810 = vmatprep.subr.mxu0 %v1238
    %2811 = vmatpush1.msra.mxu0 %v1237
    %2812 = vmatprep.subr.mxu0 %v1242
    %2813 = vmatpush1.msra.mxu0 %v1241
    %2814 = vmatprep.subr.mxu0 %v1246
    %2815 = vmatpush1.msra.mxu0 %v1245
    %2816 = vmatprep.subr.mxu0 %v1250
    %2817 = vmatpush1.msra.mxu0 %v1249
    %2818 = vmatprep.subr.mxu0 %v1254
    %2819 = vmatpush1.msra.mxu0 %v1253
    %2820 = vmatprep.subr.mxu0 %v1258
    %2821 = vmatpush1.msra.mxu0 %v1257
    %2822 = vmatprep.subr.mxu0 %v1262
    %2823 = vmatpush1.msra.mxu0 %v1261
    %2824 = vmatprep.subr.mxu0 %v1266
    %2825 = vmatpush1.msra.mxu0 %v1265
    %2826 = vmatprep.subr.mxu0 0.0
    %2827 = vmatpush1.msra.mxu0 0.0
    %2828 = vmatprep.subr.mxu0 0.0
    %2829 = vmatpush1.msra.mxu0 0.0
    %2830 = vmatprep.subr.mxu0 0.0
    %2831 = vmatpush1.msra.mxu0 0.0
    %2832 = vmatprep.subr.mxu0 0.0
    %2833 = vmatpush1.msra.mxu0 0.0
    %2834 = vmatprep.subr.mxu0 0.0
    %2835 = vmatpush1.msra.mxu0 0.0
    %2836 = vmatprep.subr.mxu0 0.0
    %2837 = vmatpush1.msra.mxu0 0.0
    %2838 = vmatprep.subr.mxu0 0.0
    %2839 = vmatpush1.msra.mxu0 0.0
    %2840 = vmatprep.subr.mxu0 0.0
    %2841 = vmatpush1.msra.mxu0 0.0
    %2842 = vmatprep.subr.mxu0 0.0
    %2843 = vmatpush1.msra.mxu0 0.0
    %2844 = vmatprep.subr.mxu0 0.0
    %2845 = vmatpush1.msra.mxu0 0.0
    %2846 = vmatprep.subr.mxu0 0.0
    %2847 = vmatpush1.msra.mxu0 0.0
    %2848 = vmatprep.subr.mxu0 0.0
    %2849 = vmatpush1.msra.mxu0 0.0
    %2850 = vmatprep.subr.mxu0 0.0
    %2851 = vmatpush1.msra.mxu0 0.0
    %2852 = vmatprep.subr.mxu0 0.0
    %2853 = vmatpush1.msra.mxu0 0.0
    %2854 = vmatprep.subr.mxu0 0.0
    %2855 = vmatpush1.msra.mxu0 0.0
    %2856 = vmatprep.subr.mxu0 0.0
    %2857 = vmatpush1.msra.mxu0 0.0
    %2858 = vmatprep.mubr.f32.mxu0 0.0
    %2859 = vmatmul.mubr.f32.gmra.mrb[0].mxu0 %v2567
    %v2860 = vpop.f32.mrb[0].mxu0
    %v2861 = vadd.f32 0.0, %v2860
    %v2862 = vpop.f32.mrb[0].mxu0
    %v2863 = vadd.f32 0.0, %v2862
    %2864 = vdwg.mxu0
    %v2865 = vadd.f32 %v2719, %v2790
    %v2866 = vadd.f32 %v2720, %v2792
    %v2867 = vadd.f32 %v2721, %v2861
    %v2868 = vadd.f32 %v2722, %v2863
    %v2869 = vxor.u32 %v2715, 2147483648
    %v2870 = vmul.f32 %v2869, 1.442695
    %v2871 = vpow.pop %v2870
    %v2872 = vadd.f32 %v2871, 1.0
    %v2873 = vrcp.pop %v2872
    %v2874 = vmul.f32 1.0, %v2873
    %v2875 = vxor.u32 %v2716, 2147483648
    %v2876 = vmul.f32 %v2875, 1.442695
    %v2877 = vpow.pop %v2876
    %v2878 = vadd.f32 %v2877, 1.0
    %v2879 = vrcp.pop %v2878
    %v2880 = vmul.f32 1.0, %v2879
    %v2881 = vtanh.pop %v2717
    %v2882 = vxor.u32 %v2718, 2147483648
    %v2883 = vmul.f32 %v2882, 1.442695
    %v2884 = vpow.pop %v2883
    %v2885 = vadd.f32 %v2884, 1.0
    %v2886 = vrcp.pop %v2885
    %v2887 = vmul.f32 1.0, %v2886
    %v2888 = vmul.f32 %v2880, %v2561
    %v2889 = vmul.f32 %v2874, %v2881
    %v2890 = vadd.f32 %v2888, %v2889
    %v2891 = vtanh.pop %v2890
    %v2892 = vmul.f32 %v2887, %v2891
    %v2893 = vxor.u32 %v2865, 2147483648
    %v2894 = vmul.f32 %v2893, 1.442695
    %v2895 = vpow.pop %v2894
    %v2896 = vadd.f32 %v2895, 1.0
    %v2897 = vrcp.pop %v2896
    %v2898 = vmul.f32 1.0, %v2897
    %v2899 = vxor.u32 %v2866, 2147483648
    %v2900 = vmul.f32 %v2899, 1.442695
    %v2901 = vpow.pop %v2900
    %v2902 = vadd.f32 %v2901, 1.0
    %v2903 = vrcp.pop %v2902
    %v2904 = vmul.f32 1.0, %v2903
    %v2905 = vtanh.pop %v2867
    %v2906 = vxor.u32 %v2868, 2147483648
    %v2907 = vmul.f32 %v2906, 1.442695
    %v2908 = vpow.pop %v2907
    %v2909 = vadd.f32 %v2908, 1.0
    %v2910 = vrcp.pop %v2909
    %v2911 = vmul.f32 1.0, %v2910
    %v2912 = vmul.f32 %v2904, %v2568
    %v2913 = vmul.f32 %v2898, %v2905
    %v2914 = vadd.f32 %v2912, %v2913
    %v2915 = vtanh.pop %v2914
    %v2916 = vmul.f32 %v2911, %v2915
    %v2917 = vsel %vm2566, %v2892, %v2560
    %v2918 = vsel %vm2566, %v2890, %v2561
    %v2919 = vsel %vm2559, %v2916, %v2567
    %v2920 = vsel %vm2559, %v2914, %v2568
    %v2921 = vld [vmem:[#allocation2 + $0x140] sm:$0xff]
    %v2922 = vld [vmem:[#allocation2 + $0x148] sm:$0xff]
    %v2923 = vld [vmem:[#allocation2 + $0x150] sm:$0xff]
    %v2924 = vld [vmem:[#allocation2 + $0x158] sm:$0xff]
    %2925 = vmatprep.subr.mxu0 %v990
    %2926 = vmatpush1.msra.mxu0 %v989
    %2927 = vmatprep.subr.mxu0 %v994
    %2928 = vmatpush1.msra.mxu0 %v993
    %2929 = vmatprep.subr.mxu0 %v998
    %2930 = vmatpush1.msra.mxu0 %v997
    %2931 = vmatprep.subr.mxu0 %v1002
    %2932 = vmatpush1.msra.mxu0 %v1001
    %2933 = vmatprep.subr.mxu0 %v1006
    %2934 = vmatpush1.msra.mxu0 %v1005
    %2935 = vmatprep.subr.mxu0 %v1010
    %2936 = vmatpush1.msra.mxu0 %v1009
    %2937 = vmatprep.subr.mxu0 %v1014
    %2938 = vmatpush1.msra.mxu0 %v1013
    %2939 = vmatprep.subr.mxu0 %v1018
    %2940 = vmatpush1.msra.mxu0 %v1017
    %2941 = vmatprep.subr.mxu0 %v1022
    %2942 = vmatpush1.msra.mxu0 %v1021
    %2943 = vmatprep.subr.mxu0 %v1026
    %2944 = vmatpush1.msra.mxu0 %v1025
    %2945 = vmatprep.subr.mxu0 %v1030
    %2946 = vmatpush1.msra.mxu0 %v1029
    %2947 = vmatprep.subr.mxu0 %v1034
    %2948 = vmatpush1.msra.mxu0 %v1033
    %2949 = vmatprep.subr.mxu0 %v1038
    %2950 = vmatpush1.msra.mxu0 %v1037
    %2951 = vmatprep.subr.mxu0 %v1042
    %2952 = vmatpush1.msra.mxu0 %v1041
    %2953 = vmatprep.subr.mxu0 %v1046
    %2954 = vmatpush1.msra.mxu0 %v1045
    %2955 = vmatprep.subr.mxu0 %v1050
    %2956 = vmatpush1.msra.mxu0 %v1049
    %2957 = vmatprep.subr.mxu0 0.0
    %2958 = vmatpush1.msra.mxu0 0.0
    %2959 = vmatprep.subr.mxu0 0.0
    %2960 = vmatpush1.msra.mxu0 0.0
    %2961 = vmatprep.subr.mxu0 0.0
    %2962 = vmatpush1.msra.mxu0 0.0
    %2963 = vmatprep.subr.mxu0 0.0
    %2964 = vmatpush1.msra.mxu0 0.0
    %2965 = vmatprep.subr.mxu0 0.0
    %2966 = vmatpush1.msra.mxu0 0.0
    %2967 = vmatprep.subr.mxu0 0.0
    %2968 = vmatpush1.msra.mxu0 0.0
    %2969 = vmatprep.subr.mxu0 0.0
    %2970 = vmatpush1.msra.mxu0 0.0
    %2971 = vmatprep.subr.mxu0 0.0
    %2972 = vmatpush1.msra.mxu0 0.0
    %2973 = vmatprep.subr.mxu0 0.0
    %2974 = vmatpush1.msra.mxu0 0.0
    %2975 = vmatprep.subr.mxu0 0.0
    %2976 = vmatpush1.msra.mxu0 0.0
    %2977 = vmatprep.subr.mxu0 0.0
    %2978 = vmatpush1.msra.mxu0 0.0
    %2979 = vmatprep.subr.mxu0 0.0
    %2980 = vmatpush1.msra.mxu0 0.0
    %2981 = vmatprep.subr.mxu0 0.0
    %2982 = vmatpush1.msra.mxu0 0.0
    %2983 = vmatprep.subr.mxu0 0.0
    %2984 = vmatpush1.msra.mxu0 0.0
    %2985 = vmatprep.subr.mxu0 0.0
    %2986 = vmatpush1.msra.mxu0 0.0
    %2987 = vmatprep.subr.mxu0 0.0
    %2988 = vmatpush1.msra.mxu0 0.0
    %2989 = vmatprep.mubr.f32.mxu0 0.0
    %2990 = vmatmul.mubr.f32.gmra.mrb[0].mxu0 %v2917
    %v2991 = vpop.f32.mrb[0].mxu0
    %v2992 = vadd.f32 0.0, %v2991
    %v2993 = vpop.f32.mrb[0].mxu0
    %v2994 = vadd.f32 0.0, %v2993
    %2995 = vdwg.mxu0
    %2996 = vmatprep.subr.mxu0 %v992
    %2997 = vmatpush1.msra.mxu0 %v991
    %2998 = vmatprep.subr.mxu0 %v996
    %2999 = vmatpush1.msra.mxu0 %v995
    %3000 = vmatprep.subr.mxu0 %v1000
    %3001 = vmatpush1.msra.mxu0 %v999
    %3002 = vmatprep.subr.mxu0 %v1004
    %3003 = vmatpush1.msra.mxu0 %v1003
    %3004 = vmatprep.subr.mxu0 %v1008
    %3005 = vmatpush1.msra.mxu0 %v1007
    %3006 = vmatprep.subr.mxu0 %v1012
    %3007 = vmatpush1.msra.mxu0 %v1011
    %3008 = vmatprep.subr.mxu0 %v1016
    %3009 = vmatpush1.msra.mxu0 %v1015
    %3010 = vmatprep.subr.mxu0 %v1020
    %3011 = vmatpush1.msra.mxu0 %v1019
    %3012 = vmatprep.subr.mxu0 %v1024
    %3013 = vmatpush1.msra.mxu0 %v1023
    %3014 = vmatprep.subr.mxu0 %v1028
    %3015 = vmatpush1.msra.mxu0 %v1027
    %3016 = vmatprep.subr.mxu0 %v1032
    %3017 = vmatpush1.msra.mxu0 %v1031
    %3018 = vmatprep.subr.mxu0 %v1036
    %3019 = vmatpush1.msra.mxu0 %v1035
    %3020 = vmatprep.subr.mxu0 %v1040
    %3021 = vmatpush1.msra.mxu0 %v1039
    %3022 = vmatprep.subr.mxu0 %v1044
    %3023 = vmatpush1.msra.mxu0 %v1043
    %3024 = vmatprep.subr.mxu0 %v1048
    %3025 = vmatpush1.msra.mxu0 %v1047
    %3026 = vmatprep.subr.mxu0 %v1052
    %3027 = vmatpush1.msra.mxu0 %v1051
    %3028 = vmatprep.subr.mxu0 0.0
    %3029 = vmatpush1.msra.mxu0 0.0
    %3030 = vmatprep.subr.mxu0 0.0
    %3031 = vmatpush1.msra.mxu0 0.0
    %3032 = vmatprep.subr.mxu0 0.0
    %3033 = vmatpush1.msra.mxu0 0.0
    %3034 = vmatprep.subr.mxu0 0.0
    %3035 = vmatpush1.msra.mxu0 0.0
    %3036 = vmatprep.subr.mxu0 0.0
    %3037 = vmatpush1.msra.mxu0 0.0
    %3038 = vmatprep.subr.mxu0 0.0
    %3039 = vmatpush1.msra.mxu0 0.0
    %3040 = vmatprep.subr.mxu0 0.0
    %3041 = vmatpush1.msra.mxu0 0.0
    %3042 = vmatprep.subr.mxu0 0.0
    %3043 = vmatpush1.msra.mxu0 0.0
    %3044 = vmatprep.subr.mxu0 0.0
    %3045 = vmatpush1.msra.mxu0 0.0
    %3046 = vmatprep.subr.mxu0 0.0
    %3047 = vmatpush1.msra.mxu0 0.0
    %3048 = vmatprep.subr.mxu0 0.0
    %3049 = vmatpush1.msra.mxu0 0.0
    %3050 = vmatprep.subr.mxu0 0.0
    %3051 = vmatpush1.msra.mxu0 0.0
    %3052 = vmatprep.subr.mxu0 0.0
    %3053 = vmatpush1.msra.mxu0 0.0
    %3054 = vmatprep.subr.mxu0 0.0
    %3055 = vmatpush1.msra.mxu0 0.0
    %3056 = vmatprep.subr.mxu0 0.0
    %3057 = vmatpush1.msra.mxu0 0.0
    %3058 = vmatprep.subr.mxu0 0.0
    %3059 = vmatpush1.msra.mxu0 0.0
    %3060 = vmatprep.mubr.f32.mxu0 0.0
    %3061 = vmatmul.mubr.f32.gmra.mrb[0].mxu0 %v2917
    %v3062 = vpop.f32.mrb[0].mxu0
    %v3063 = vadd.f32 0.0, %v3062
    %v3064 = vpop.f32.mrb[0].mxu0
    %v3065 = vadd.f32 0.0, %v3064
    %3066 = vdwg.mxu0
    %v3067 = vadd.f32 %v2921, %v2992
    %v3068 = vadd.f32 %v2922, %v2994
    %v3069 = vadd.f32 %v2923, %v3063
    %v3070 = vadd.f32 %v2924, %v3065
    %v3071 = vld [vmem:[#allocation2 + $0xa0] sm:$0xff]
    %v3072 = vld [vmem:[#allocation2 + $0xa8] sm:$0xff]
    %v3073 = vld [vmem:[#allocation2 + $0xb0] sm:$0xff]
    %v3074 = vld [vmem:[#allocation2 + $0xb8] sm:$0xff]
    %3075 = vmatprep.subr.mxu0 %v1204
    %3076 = vmatpush1.msra.mxu0 %v1203
    %3077 = vmatprep.subr.mxu0 %v1208
    %3078 = vmatpush1.msra.mxu0 %v1207
    %3079 = vmatprep.subr.mxu0 %v1212
    %3080 = vmatpush1.msra.mxu0 %v1211
    %3081 = vmatprep.subr.mxu0 %v1216
    %3082 = vmatpush1.msra.mxu0 %v1215
    %3083 = vmatprep.subr.mxu0 %v1220
    %3084 = vmatpush1.msra.mxu0 %v1219
    %3085 = vmatprep.subr.mxu0 %v1224
    %3086 = vmatpush1.msra.mxu0 %v1223
    %3087 = vmatprep.subr.mxu0 %v1228
    %3088 = vmatpush1.msra.mxu0 %v1227
    %3089 = vmatprep.subr.mxu0 %v1232
    %3090 = vmatpush1.msra.mxu0 %v1231
    %3091 = vmatprep.subr.mxu0 %v1236
    %3092 = vmatpush1.msra.mxu0 %v1235
    %3093 = vmatprep.subr.mxu0 %v1240
    %3094 = vmatpush1.msra.mxu0 %v1239
    %3095 = vmatprep.subr.mxu0 %v1244
    %3096 = vmatpush1.msra.mxu0 %v1243
    %3097 = vmatprep.subr.mxu0 %v1248
    %3098 = vmatpush1.msra.mxu0 %v1247
    %3099 = vmatprep.subr.mxu0 %v1252
    %3100 = vmatpush1.msra.mxu0 %v1251
    %3101 = vmatprep.subr.mxu0 %v1256
    %3102 = vmatpush1.msra.mxu0 %v1255
    %3103 = vmatprep.subr.mxu0 %v1260
    %3104 = vmatpush1.msra.mxu0 %v1259
    %3105 = vmatprep.subr.mxu0 %v1264
    %3106 = vmatpush1.msra.mxu0 %v1263
    %3107 = vmatprep.subr.mxu0 0.0
    %3108 = vmatpush1.msra.mxu0 0.0
    %3109 = vmatprep.subr.mxu0 0.0
    %3110 = vmatpush1.msra.mxu0 0.0
    %3111 = vmatprep.subr.mxu0 0.0
    %3112 = vmatpush1.msra.mxu0 0.0
    %3113 = vmatprep.subr.mxu0 0.0
    %3114 = vmatpush1.msra.mxu0 0.0
    %3115 = vmatprep.subr.mxu0 0.0
    %3116 = vmatpush1.msra.mxu0 0.0
    %3117 = vmatprep.subr.mxu0 0.0
    %3118 = vmatpush1.msra.mxu0 0.0
    %3119 = vmatprep.subr.mxu0 0.0
    %3120 = vmatpush1.msra.mxu0 0.0
    %3121 = vmatprep.subr.mxu0 0.0
    %3122 = vmatpush1.msra.mxu0 0.0
    %3123 = vmatprep.subr.mxu0 0.0
    %3124 = vmatpush1.msra.mxu0 0.0
    %3125 = vmatprep.subr.mxu0 0.0
    %3126 = vmatpush1.msra.mxu0 0.0
    %3127 = vmatprep.subr.mxu0 0.0
    %3128 = vmatpush1.msra.mxu0 0.0
    %3129 = vmatprep.subr.mxu0 0.0
    %3130 = vmatpush1.msra.mxu0 0.0
    %3131 = vmatprep.subr.mxu0 0.0
    %3132 = vmatpush1.msra.mxu0 0.0
    %3133 = vmatprep.subr.mxu0 0.0
    %3134 = vmatpush1.msra.mxu0 0.0
    %3135 = vmatprep.subr.mxu0 0.0
    %3136 = vmatpush1.msra.mxu0 0.0
    %3137 = vmatprep.subr.mxu0 0.0
    %3138 = vmatpush1.msra.mxu0 0.0
    %3139 = vmatprep.mubr.f32.mxu0 0.0
    %3140 = vmatmul.mubr.f32.gmra.mrb[0].mxu0 %v2919
    %v3141 = vpop.f32.mrb[0].mxu0
    %v3142 = vadd.f32 0.0, %v3141
    %v3143 = vpop.f32.mrb[0].mxu0
    %v3144 = vadd.f32 0.0, %v3143
    %3145 = vdwg.mxu0
    %3146 = vmatprep.subr.mxu0 %v1206
    %3147 = vmatpush1.msra.mxu0 %v1205
    %3148 = vmatprep.subr.mxu0 %v1210
    %3149 = vmatpush1.msra.mxu0 %v1209
    %3150 = vmatprep.subr.mxu0 %v1214
    %3151 = vmatpush1.msra.mxu0 %v1213
    %3152 = vmatprep.subr.mxu0 %v1218
    %3153 = vmatpush1.msra.mxu0 %v1217
    %3154 = vmatprep.subr.mxu0 %v1222
    %3155 = vmatpush1.msra.mxu0 %v1221
    %3156 = vmatprep.subr.mxu0 %v1226
    %3157 = vmatpush1.msra.mxu0 %v1225
    %3158 = vmatprep.subr.mxu0 %v1230
    %3159 = vmatpush1.msra.mxu0 %v1229
    %3160 = vmatprep.subr.mxu0 %v1234
    %3161 = vmatpush1.msra.mxu0 %v1233
    %3162 = vmatprep.subr.mxu0 %v1238
    %3163 = vmatpush1.msra.mxu0 %v1237
    %3164 = vmatprep.subr.mxu0 %v1242
    %3165 = vmatpush1.msra.mxu0 %v1241
    %3166 = vmatprep.subr.mxu0 %v1246
    %3167 = vmatpush1.msra.mxu0 %v1245
    %3168 = vmatprep.subr.mxu0 %v1250
    %3169 = vmatpush1.msra.mxu0 %v1249
    %3170 = vmatprep.subr.mxu0 %v1254
    %3171 = vmatpush1.msra.mxu0 %v1253
    %3172 = vmatprep.subr.mxu0 %v1258
    %3173 = vmatpush1.msra.mxu0 %v1257
    %3174 = vmatprep.subr.mxu0 %v1262
    %3175 = vmatpush1.msra.mxu0 %v1261
    %3176 = vmatprep.subr.mxu0 %v1266
    %3177 = vmatpush1.msra.mxu0 %v1265
    %3178 = vmatprep.subr.mxu0 0.0
    %3179 = vmatpush1.msra.mxu0 0.0
    %3180 = vmatprep.subr.mxu0 0.0
    %3181 = vmatpush1.msra.mxu0 0.0
    %3182 = vmatprep.subr.mxu0 0.0
    %3183 = vmatpush1.msra.mxu0 0.0
    %3184 = vmatprep.subr.mxu0 0.0
    %3185 = vmatpush1.msra.mxu0 0.0
    %3186 = vmatprep.subr.mxu0 0.0
    %3187 = vmatpush1.msra.mxu0 0.0
    %3188 = vmatprep.subr.mxu0 0.0
    %3189 = vmatpush1.msra.mxu0 0.0
    %3190 = vmatprep.subr.mxu0 0.0
    %3191 = vmatpush1.msra.mxu0 0.0
    %3192 = vmatprep.subr.mxu0 0.0
    %3193 = vmatpush1.msra.mxu0 0.0
    %3194 = vmatprep.subr.mxu0 0.0
    %3195 = vmatpush1.msra.mxu0 0.0
    %3196 = vmatprep.subr.mxu0 0.0
    %3197 = vmatpush1.msra.mxu0 0.0
    %3198 = vmatprep.subr.mxu0 0.0
    %3199 = vmatpush1.msra.mxu0 0.0
    %3200 = vmatprep.subr.mxu0 0.0
    %3201 = vmatpush1.msra.mxu0 0.0
    %3202 = vmatprep.subr.mxu0 0.0
    %3203 = vmatpush1.msra.mxu0 0.0
    %3204 = vmatprep.subr.mxu0 0.0
    %3205 = vmatpush1.msra.mxu0 0.0
    %3206 = vmatprep.subr.mxu0 0.0
    %3207 = vmatpush1.msra.mxu0 0.0
    %3208 = vmatprep.subr.mxu0 0.0
    %3209 = vmatpush1.msra.mxu0 0.0
    %3210 = vmatprep.mubr.f32.mxu0 0.0
    %3211 = vmatmul.mubr.f32.gmra.mrb[0].mxu0 %v2919
    %v3212 = vpop.f32.mrb[0].mxu0
    %v3213 = vadd.f32 0.0, %v3212
    %v3214 = vpop.f32.mrb[0].mxu0
    %v3215 = vadd.f32 0.0, %v3214
    %3216 = vdwg.mxu0
    %v3217 = vadd.f32 %v3071, %v3142
    %v3218 = vadd.f32 %v3072, %v3144
    %v3219 = vadd.f32 %v3073, %v3213
    %v3220 = vadd.f32 %v3074, %v3215
    %v3221 = vxor.u32 %v3067, 2147483648
    %v3222 = vmul.f32 %v3221, 1.442695
    %v3223 = vpow.pop %v3222
    %v3224 = vadd.f32 %v3223, 1.0
    %v3225 = vrcp.pop %v3224
    %v3226 = vmul.f32 1.0, %v3225
    %v3227 = vxor.u32 %v3068, 2147483648
    %v3228 = vmul.f32 %v3227, 1.442695
    %v3229 = vpow.pop %v3228
    %v3230 = vadd.f32 %v3229, 1.0
    %v3231 = vrcp.pop %v3230
    %v3232 = vmul.f32 1.0, %v3231
    %v3233 = vtanh.pop %v3069
    %v3234 = vxor.u32 %v3070, 2147483648
    %v3235 = vmul.f32 %v3234, 1.442695
    %v3236 = vpow.pop %v3235
    %v3237 = vadd.f32 %v3236, 1.0
    %v3238 = vrcp.pop %v3237
    %v3239 = vmul.f32 1.0, %v3238
    %v3240 = vmul.f32 %v3232, %v2918
    %v3241 = vmul.f32 %v3226, %v3233
    %v3242 = vadd.f32 %v3240, %v3241
    %v3243 = vtanh.pop %v3242
    %v3244 = vmul.f32 %v3239, %v3243
    %v3245 = vxor.u32 %v3217, 2147483648
    %v3246 = vmul.f32 %v3245, 1.442695
    %v3247 = vpow.pop %v3246
    %v3248 = vadd.f32 %v3247, 1.0
    %v3249 = vrcp.pop %v3248
    %v3250 = vmul.f32 1.0, %v3249
    %v3251 = vxor.u32 %v3218, 2147483648
    %v3252 = vmul.f32 %v3251, 1.442695
    %v3253 = vpow.pop %v3252
    %v3254 = vadd.f32 %v3253, 1.0
    %v3255 = vrcp.pop %v3254
    %v3256 = vmul.f32 1.0, %v3255
    %v3257 = vtanh.pop %v3219
    %v3258 = vxor.u32 %v3220, 2147483648
    %v3259 = vmul.f32 %v3258, 1.442695
    %v3260 = vpow.pop %v3259
    %v3261 = vadd.f32 %v3260, 1.0
    %v3262 = vrcp.pop %v3261
    %v3263 = vmul.f32 1.0, %v3262
    %v3264 = vmul.f32 %v3256, %v2920
    %v3265 = vmul.f32 %v3250, %v3257
    %v3266 = vadd.f32 %v3264, %v3265
    %v3267 = vtanh.pop %v3266
    %v3268 = vmul.f32 %v3263, %v3267
    %v3269 = vsel %vm2202, %v3244, %v2917
    %v3270 = vsel %vm2202, %v3242, %v2918
    %v3271 = vsel %vm2195, %v3268, %v2919
    %v3272 = vsel %vm2195, %v3266, %v2920
    %v3273 = vld [vmem:[#allocation2 + $0x180] sm:$0xff]
    %v3274 = vld [vmem:[#allocation2 + $0x188] sm:$0xff]
    %v3275 = vld [vmem:[#allocation2 + $0x190] sm:$0xff]
    %v3276 = vld [vmem:[#allocation2 + $0x198] sm:$0xff]
    %3277 = vmatprep.subr.mxu0 %v990
    %3278 = vmatpush1.msra.mxu0 %v989
    %3279 = vmatprep.subr.mxu0 %v994
    %3280 = vmatpush1.msra.mxu0 %v993
    %3281 = vmatprep.subr.mxu0 %v998
    %3282 = vmatpush1.msra.mxu0 %v997
    %3283 = vmatprep.subr.mxu0 %v1002
    %3284 = vmatpush1.msra.mxu0 %v1001
    %3285 = vmatprep.subr.mxu0 %v1006
    %3286 = vmatpush1.msra.mxu0 %v1005
    %3287 = vmatprep.subr.mxu0 %v1010
    %3288 = vmatpush1.msra.mxu0 %v1009
    %3289 = vmatprep.subr.mxu0 %v1014
    %3290 = vmatpush1.msra.mxu0 %v1013
    %3291 = vmatprep.subr.mxu0 %v1018
    %3292 = vmatpush1.msra.mxu0 %v1017
    %3293 = vmatprep.subr.mxu0 %v1022
    %3294 = vmatpush1.msra.mxu0 %v1021
    %3295 = vmatprep.subr.mxu0 %v1026
    %3296 = vmatpush1.msra.mxu0 %v1025
    %3297 = vmatprep.subr.mxu0 %v1030
    %3298 = vmatpush1.msra.mxu0 %v1029
    %3299 = vmatprep.subr.mxu0 %v1034
    %3300 = vmatpush1.msra.mxu0 %v1033
    %3301 = vmatprep.subr.mxu0 %v1038
    %3302 = vmatpush1.msra.mxu0 %v1037
    %3303 = vmatprep.subr.mxu0 %v1042
    %3304 = vmatpush1.msra.mxu0 %v1041
    %3305 = vmatprep.subr.mxu0 %v1046
    %3306 = vmatpush1.msra.mxu0 %v1045
    %3307 = vmatprep.subr.mxu0 %v1050
    %3308 = vmatpush1.msra.mxu0 %v1049
    %3309 = vmatprep.subr.mxu0 0.0
    %3310 = vmatpush1.msra.mxu0 0.0
    %3311 = vmatprep.subr.mxu0 0.0
    %3312 = vmatpush1.msra.mxu0 0.0
    %3313 = vmatprep.subr.mxu0 0.0
    %3314 = vmatpush1.msra.mxu0 0.0
    %3315 = vmatprep.subr.mxu0 0.0
    %3316 = vmatpush1.msra.mxu0 0.0
    %3317 = vmatprep.subr.mxu0 0.0
    %3318 = vmatpush1.msra.mxu0 0.0
    %3319 = vmatprep.subr.mxu0 0.0
    %3320 = vmatpush1.msra.mxu0 0.0
    %3321 = vmatprep.subr.mxu0 0.0
    %3322 = vmatpush1.msra.mxu0 0.0
    %3323 = vmatprep.subr.mxu0 0.0
    %3324 = vmatpush1.msra.mxu0 0.0
    %3325 = vmatprep.subr.mxu0 0.0
    %3326 = vmatpush1.msra.mxu0 0.0
    %3327 = vmatprep.subr.mxu0 0.0
    %3328 = vmatpush1.msra.mxu0 0.0
    %3329 = vmatprep.subr.mxu0 0.0
    %3330 = vmatpush1.msra.mxu0 0.0
    %3331 = vmatprep.subr.mxu0 0.0
    %3332 = vmatpush1.msra.mxu0 0.0
    %3333 = vmatprep.subr.mxu0 0.0
    %3334 = vmatpush1.msra.mxu0 0.0
    %3335 = vmatprep.subr.mxu0 0.0
    %3336 = vmatpush1.msra.mxu0 0.0
    %3337 = vmatprep.subr.mxu0 0.0
    %3338 = vmatpush1.msra.mxu0 0.0
    %3339 = vmatprep.subr.mxu0 0.0
    %3340 = vmatpush1.msra.mxu0 0.0
    %3341 = vmatprep.mubr.f32.mxu0 0.0
    %3342 = vmatmul.mubr.f32.gmra.mrb[0].mxu0 %v3269
    %v3343 = vpop.f32.mrb[0].mxu0
    %v3344 = vadd.f32 0.0, %v3343
    %v3345 = vpop.f32.mrb[0].mxu0
    %v3346 = vadd.f32 0.0, %v3345
    %3347 = vdwg.mxu0
    %3348 = vmatprep.subr.mxu0 %v992
    %3349 = vmatpush1.msra.mxu0 %v991
    %3350 = vmatprep.subr.mxu0 %v996
    %3351 = vmatpush1.msra.mxu0 %v995
    %3352 = vmatprep.subr.mxu0 %v1000
    %3353 = vmatpush1.msra.mxu0 %v999
    %3354 = vmatprep.subr.mxu0 %v1004
    %3355 = vmatpush1.msra.mxu0 %v1003
    %3356 = vmatprep.subr.mxu0 %v1008
    %3357 = vmatpush1.msra.mxu0 %v1007
    %3358 = vmatprep.subr.mxu0 %v1012
    %3359 = vmatpush1.msra.mxu0 %v1011
    %3360 = vmatprep.subr.mxu0 %v1016
    %3361 = vmatpush1.msra.mxu0 %v1015
    %3362 = vmatprep.subr.mxu0 %v1020
    %3363 = vmatpush1.msra.mxu0 %v1019
    %3364 = vmatprep.subr.mxu0 %v1024
    %3365 = vmatpush1.msra.mxu0 %v1023
    %3366 = vmatprep.subr.mxu0 %v1028
    %3367 = vmatpush1.msra.mxu0 %v1027
    %3368 = vmatprep.subr.mxu0 %v1032
    %3369 = vmatpush1.msra.mxu0 %v1031
    %3370 = vmatprep.subr.mxu0 %v1036
    %3371 = vmatpush1.msra.mxu0 %v1035
    %3372 = vmatprep.subr.mxu0 %v1040
    %3373 = vmatpush1.msra.mxu0 %v1039
    %3374 = vmatprep.subr.mxu0 %v1044
    %3375 = vmatpush1.msra.mxu0 %v1043
    %3376 = vmatprep.subr.mxu0 %v1048
    %3377 = vmatpush1.msra.mxu0 %v1047
    %3378 = vmatprep.subr.mxu0 %v1052
    %3379 = vmatpush1.msra.mxu0 %v1051
    %3380 = vmatprep.subr.mxu0 0.0
    %3381 = vmatpush1.msra.mxu0 0.0
    %3382 = vmatprep.subr.mxu0 0.0
    %3383 = vmatpush1.msra.mxu0 0.0
    %3384 = vmatprep.subr.mxu0 0.0
    %3385 = vmatpush1.msra.mxu0 0.0
    %3386 = vmatprep.subr.mxu0 0.0
    %3387 = vmatpush1.msra.mxu0 0.0
    %3388 = vmatprep.subr.mxu0 0.0
    %3389 = vmatpush1.msra.mxu0 0.0
    %3390 = vmatprep.subr.mxu0 0.0
    %3391 = vmatpush1.msra.mxu0 0.0
    %3392 = vmatprep.subr.mxu0 0.0
    %3393 = vmatpush1.msra.mxu0 0.0
    %3394 = vmatprep.subr.mxu0 0.0
    %3395 = vmatpush1.msra.mxu0 0.0
    %3396 = vmatprep.subr.mxu0 0.0
    %3397 = vmatpush1.msra.mxu0 0.0
    %3398 = vmatprep.subr.mxu0 0.0
    %3399 = vmatpush1.msra.mxu0 0.0
    %3400 = vmatprep.subr.mxu0 0.0
    %3401 = vmatpush1.msra.mxu0 0.0
    %3402 = vmatprep.subr.mxu0 0.0
    %3403 = vmatpush1.msra.mxu0 0.0
    %3404 = vmatprep.subr.mxu0 0.0
    %3405 = vmatpush1.msra.mxu0 0.0
    %3406 = vmatprep.subr.mxu0 0.0
    %3407 = vmatpush1.msra.mxu0 0.0
    %3408 = vmatprep.subr.mxu0 0.0
    %3409 = vmatpush1.msra.mxu0 0.0
    %3410 = vmatprep.subr.mxu0 0.0
    %3411 = vmatpush1.msra.mxu0 0.0
    %3412 = vmatprep.mubr.f32.mxu0 0.0
    %3413 = vmatmul.mubr.f32.gmra.mrb[0].mxu0 %v3269
    %v3414 = vpop.f32.mrb[0].mxu0
    %v3415 = vadd.f32 0.0, %v3414
    %v3416 = vpop.f32.mrb[0].mxu0
    %v3417 = vadd.f32 0.0, %v3416
    %3418 = vdwg.mxu0
    %v3419 = vadd.f32 %v3273, %v3344
    %v3420 = vadd.f32 %v3274, %v3346
    %v3421 = vadd.f32 %v3275, %v3415
    %v3422 = vadd.f32 %v3276, %v3417
    %v3423 = vld [vmem:[#allocation2 + $0x60] sm:$0xff]
    %v3424 = vld [vmem:[#allocation2 + $0x68] sm:$0xff]
    %v3425 = vld [vmem:[#allocation2 + $0x70] sm:$0xff]
    %v3426 = vld [vmem:[#allocation2 + $0x78] sm:$0xff]
    %3427 = vmatprep.subr.mxu0 %v1204
    %3428 = vmatpush1.msra.mxu0 %v1203
    %3429 = vmatprep.subr.mxu0 %v1208
    %3430 = vmatpush1.msra.mxu0 %v1207
    %3431 = vmatprep.subr.mxu0 %v1212
    %3432 = vmatpush1.msra.mxu0 %v1211
    %3433 = vmatprep.subr.mxu0 %v1216
    %3434 = vmatpush1.msra.mxu0 %v1215
    %3435 = vmatprep.subr.mxu0 %v1220
    %3436 = vmatpush1.msra.mxu0 %v1219
    %3437 = vmatprep.subr.mxu0 %v1224
    %3438 = vmatpush1.msra.mxu0 %v1223
    %3439 = vmatprep.subr.mxu0 %v1228
    %3440 = vmatpush1.msra.mxu0 %v1227
    %3441 = vmatprep.subr.mxu0 %v1232
    %3442 = vmatpush1.msra.mxu0 %v1231
    %3443 = vmatprep.subr.mxu0 %v1236
    %3444 = vmatpush1.msra.mxu0 %v1235
    %3445 = vmatprep.subr.mxu0 %v1240
    %3446 = vmatpush1.msra.mxu0 %v1239
    %3447 = vmatprep.subr.mxu0 %v1244
    %3448 = vmatpush1.msra.mxu0 %v1243
    %3449 = vmatprep.subr.mxu0 %v1248
    %3450 = vmatpush1.msra.mxu0 %v1247
    %3451 = vmatprep.subr.mxu0 %v1252
    %3452 = vmatpush1.msra.mxu0 %v1251
    %3453 = vmatprep.subr.mxu0 %v1256
    %3454 = vmatpush1.msra.mxu0 %v1255
    %3455 = vmatprep.subr.mxu0 %v1260
    %3456 = vmatpush1.msra.mxu0 %v1259
    %3457 = vmatprep.subr.mxu0 %v1264
    %3458 = vmatpush1.msra.mxu0 %v1263
    %3459 = vmatprep.subr.mxu0 0.0
    %3460 = vmatpush1.msra.mxu0 0.0
    %3461 = vmatprep.subr.mxu0 0.0
    %3462 = vmatpush1.msra.mxu0 0.0
    %3463 = vmatprep.subr.mxu0 0.0
    %3464 = vmatpush1.msra.mxu0 0.0
    %3465 = vmatprep.subr.mxu0 0.0
    %3466 = vmatpush1.msra.mxu0 0.0
    %3467 = vmatprep.subr.mxu0 0.0
    %3468 = vmatpush1.msra.mxu0 0.0
    %3469 = vmatprep.subr.mxu0 0.0
    %3470 = vmatpush1.msra.mxu0 0.0
    %3471 = vmatprep.subr.mxu0 0.0
    %3472 = vmatpush1.msra.mxu0 0.0
    %3473 = vmatprep.subr.mxu0 0.0
    %3474 = vmatpush1.msra.mxu0 0.0
    %3475 = vmatprep.subr.mxu0 0.0
    %3476 = vmatpush1.msra.mxu0 0.0
    %3477 = vmatprep.subr.mxu0 0.0
    %3478 = vmatpush1.msra.mxu0 0.0
    %3479 = vmatprep.subr.mxu0 0.0
    %3480 = vmatpush1.msra.mxu0 0.0
    %3481 = vmatprep.subr.mxu0 0.0
    %3482 = vmatpush1.msra.mxu0 0.0
    %3483 = vmatprep.subr.mxu0 0.0
    %3484 = vmatpush1.msra.mxu0 0.0
    %3485 = vmatprep.subr.mxu0 0.0
    %3486 = vmatpush1.msra.mxu0 0.0
    %3487 = vmatprep.subr.mxu0 0.0
    %3488 = vmatpush1.msra.mxu0 0.0
    %3489 = vmatprep.subr.mxu0 0.0
    %3490 = vmatpush1.msra.mxu0 0.0
    %3491 = vmatprep.mubr.f32.mxu0 0.0
    %3492 = vmatmul.mubr.f32.gmra.mrb[0].mxu0 %v3271
    %v3493 = vpop.f32.mrb[0].mxu0
    %v3494 = vadd.f32 0.0, %v3493
    %v3495 = vpop.f32.mrb[0].mxu0
    %v3496 = vadd.f32 0.0, %v3495
    %3497 = vdwg.mxu0
    %3498 = vmatprep.subr.mxu0 %v1206
    %3499 = vmatpush1.msra.mxu0 %v1205
    %3500 = vmatprep.subr.mxu0 %v1210
    %3501 = vmatpush1.msra.mxu0 %v1209
    %3502 = vmatprep.subr.mxu0 %v1214
    %3503 = vmatpush1.msra.mxu0 %v1213
    %3504 = vmatprep.subr.mxu0 %v1218
    %3505 = vmatpush1.msra.mxu0 %v1217
    %3506 = vmatprep.subr.mxu0 %v1222
    %3507 = vmatpush1.msra.mxu0 %v1221
    %3508 = vmatprep.subr.mxu0 %v1226
    %3509 = vmatpush1.msra.mxu0 %v1225
    %3510 = vmatprep.subr.mxu0 %v1230
    %3511 = vmatpush1.msra.mxu0 %v1229
    %3512 = vmatprep.subr.mxu0 %v1234
    %3513 = vmatpush1.msra.mxu0 %v1233
    %3514 = vmatprep.subr.mxu0 %v1238
    %3515 = vmatpush1.msra.mxu0 %v1237
    %3516 = vmatprep.subr.mxu0 %v1242
    %3517 = vmatpush1.msra.mxu0 %v1241
    %3518 = vmatprep.subr.mxu0 %v1246
    %3519 = vmatpush1.msra.mxu0 %v1245
    %3520 = vmatprep.subr.mxu0 %v1250
    %3521 = vmatpush1.msra.mxu0 %v1249
    %3522 = vmatprep.subr.mxu0 %v1254
    %3523 = vmatpush1.msra.mxu0 %v1253
    %3524 = vmatprep.subr.mxu0 %v1258
    %3525 = vmatpush1.msra.mxu0 %v1257
    %3526 = vmatprep.subr.mxu0 %v1262
    %3527 = vmatpush1.msra.mxu0 %v1261
    %3528 = vmatprep.subr.mxu0 %v1266
    %3529 = vmatpush1.msra.mxu0 %v1265
    %3530 = vmatprep.subr.mxu0 0.0
    %3531 = vmatpush1.msra.mxu0 0.0
    %3532 = vmatprep.subr.mxu0 0.0
    %3533 = vmatpush1.msra.mxu0 0.0
    %3534 = vmatprep.subr.mxu0 0.0
    %3535 = vmatpush1.msra.mxu0 0.0
    %3536 = vmatprep.subr.mxu0 0.0
    %3537 = vmatpush1.msra.mxu0 0.0
    %3538 = vmatprep.subr.mxu0 0.0
    %3539 = vmatpush1.msra.mxu0 0.0
    %3540 = vmatprep.subr.mxu0 0.0
    %3541 = vmatpush1.msra.mxu0 0.0
    %3542 = vmatprep.subr.mxu0 0.0
    %3543 = vmatpush1.msra.mxu0 0.0
    %3544 = vmatprep.subr.mxu0 0.0
    %3545 = vmatpush1.msra.mxu0 0.0
    %3546 = vmatprep.subr.mxu0 0.0
    %3547 = vmatpush1.msra.mxu0 0.0
    %3548 = vmatprep.subr.mxu0 0.0
    %3549 = vmatpush1.msra.mxu0 0.0
    %3550 = vmatprep.subr.mxu0 0.0
    %3551 = vmatpush1.msra.mxu0 0.0
    %3552 = vmatprep.subr.mxu0 0.0
    %3553 = vmatpush1.msra.mxu0 0.0
    %3554 = vmatprep.subr.mxu0 0.0
    %3555 = vmatpush1.msra.mxu0 0.0
    %3556 = vmatprep.subr.mxu0 0.0
    %3557 = vmatpush1.msra.mxu0 0.0
    %3558 = vmatprep.subr.mxu0 0.0
    %3559 = vmatpush1.msra.mxu0 0.0
    %3560 = vmatprep.subr.mxu0 0.0
    %3561 = vmatpush1.msra.mxu0 0.0
    %3562 = vmatprep.mubr.f32.mxu0 0.0
    %3563 = vmatmul.mubr.f32.gmra.mrb[0].mxu0 %v3271
    %v3564 = vpop.f32.mrb[0].mxu0
    %v3565 = vadd.f32 0.0, %v3564
    %v3566 = vpop.f32.mrb[0].mxu0
    %v3567 = vadd.f32 0.0, %v3566
    %3568 = vdwg.mxu0
    %v3569 = vadd.f32 %v3423, %v3494
    %v3570 = vadd.f32 %v3424, %v3496
    %v3571 = vadd.f32 %v3425, %v3565
    %v3572 = vadd.f32 %v3426, %v3567
    %v3573 = vxor.u32 %v3419, 2147483648
    %v3574 = vmul.f32 %v3573, 1.442695
    %v3575 = vpow.pop %v3574
    %v3576 = vadd.f32 %v3575, 1.0
    %v3577 = vrcp.pop %v3576
    %v3578 = vmul.f32 1.0, %v3577
    %v3579 = vxor.u32 %v3420, 2147483648
    %v3580 = vmul.f32 %v3579, 1.442695
    %v3581 = vpow.pop %v3580
    %v3582 = vadd.f32 %v3581, 1.0
    %v3583 = vrcp.pop %v3582
    %v3584 = vmul.f32 1.0, %v3583
    %v3585 = vtanh.pop %v3421
    %v3586 = vxor.u32 %v3422, 2147483648
    %v3587 = vmul.f32 %v3586, 1.442695
    %v3588 = vpow.pop %v3587
    %v3589 = vadd.f32 %v3588, 1.0
    %v3590 = vrcp.pop %v3589
    %v3591 = vmul.f32 1.0, %v3590
    %v3592 = vmul.f32 %v3584, %v3270
    %v3593 = vmul.f32 %v3578, %v3585
    %v3594 = vadd.f32 %v3592, %v3593
    %v3595 = vtanh.pop %v3594
    %v3596 = vmul.f32 %v3591, %v3595
    %v3597 = vxor.u32 %v3569, 2147483648
    %v3598 = vmul.f32 %v3597, 1.442695
    %v3599 = vpow.pop %v3598
    %v3600 = vadd.f32 %v3599, 1.0
    %v3601 = vrcp.pop %v3600
    %v3602 = vmul.f32 1.0, %v3601
    %v3603 = vxor.u32 %v3570, 2147483648
    %v3604 = vmul.f32 %v3603, 1.442695
    %v3605 = vpow.pop %v3604
    %v3606 = vadd.f32 %v3605, 1.0
    %v3607 = vrcp.pop %v3606
    %v3608 = vmul.f32 1.0, %v3607
    %v3609 = vtanh.pop %v3571
    %v3610 = vxor.u32 %v3572, 2147483648
    %v3611 = vmul.f32 %v3610, 1.442695
    %v3612 = vpow.pop %v3611
    %v3613 = vadd.f32 %v3612, 1.0
    %v3614 = vrcp.pop %v3613
    %v3615 = vmul.f32 1.0, %v3614
    %v3616 = vmul.f32 %v3608, %v3272
    %v3617 = vmul.f32 %v3602, %v3609
    %v3618 = vadd.f32 %v3616, %v3617
    %v3619 = vtanh.pop %v3618
    %v3620 = vmul.f32 %v3615, %v3619
    %v3621 = vsel %vm1838, %v3596, %v3269
    %v3622 = vsel %vm1838, %v3594, %v3270
    %v3623 = vsel %vm1831, %v3620, %v3271
    %v3624 = vsel %vm1831, %v3618, %v3272
    %v3625 = vld [vmem:[#allocation2 + $0x1c0] sm:$0xff]
    %v3626 = vld [vmem:[#allocation2 + $0x1c8] sm:$0xff]
    %v3627 = vld [vmem:[#allocation2 + $0x1d0] sm:$0xff]
    %v3628 = vld [vmem:[#allocation2 + $0x1d8] sm:$0xff]
    %3629 = vmatprep.subr.mxu0 %v990
    %3630 = vmatpush1.msra.mxu0 %v989
    %3631 = vmatprep.subr.mxu0 %v994
    %3632 = vmatpush1.msra.mxu0 %v993
    %3633 = vmatprep.subr.mxu0 %v998
    %3634 = vmatpush1.msra.mxu0 %v997
    %3635 = vmatprep.subr.mxu0 %v1002
    %3636 = vmatpush1.msra.mxu0 %v1001
    %3637 = vmatprep.subr.mxu0 %v1006
    %3638 = vmatpush1.msra.mxu0 %v1005
    %3639 = vmatprep.subr.mxu0 %v1010
    %3640 = vmatpush1.msra.mxu0 %v1009
    %3641 = vmatprep.subr.mxu0 %v1014
    %3642 = vmatpush1.msra.mxu0 %v1013
    %3643 = vmatprep.subr.mxu0 %v1018
    %3644 = vmatpush1.msra.mxu0 %v1017
    %3645 = vmatprep.subr.mxu0 %v1022
    %3646 = vmatpush1.msra.mxu0 %v1021
    %3647 = vmatprep.subr.mxu0 %v1026
    %3648 = vmatpush1.msra.mxu0 %v1025
    %3649 = vmatprep.subr.mxu0 %v1030
    %3650 = vmatpush1.msra.mxu0 %v1029
    %3651 = vmatprep.subr.mxu0 %v1034
    %3652 = vmatpush1.msra.mxu0 %v1033
    %3653 = vmatprep.subr.mxu0 %v1038
    %3654 = vmatpush1.msra.mxu0 %v1037
    %3655 = vmatprep.subr.mxu0 %v1042
    %3656 = vmatpush1.msra.mxu0 %v1041
    %3657 = vmatprep.subr.mxu0 %v1046
    %3658 = vmatpush1.msra.mxu0 %v1045
    %3659 = vmatprep.subr.mxu0 %v1050
    %3660 = vmatpush1.msra.mxu0 %v1049
    %3661 = vmatprep.subr.mxu0 0.0
    %3662 = vmatpush1.msra.mxu0 0.0
    %3663 = vmatprep.subr.mxu0 0.0
    %3664 = vmatpush1.msra.mxu0 0.0
    %3665 = vmatprep.subr.mxu0 0.0
    %3666 = vmatpush1.msra.mxu0 0.0
    %3667 = vmatprep.subr.mxu0 0.0
    %3668 = vmatpush1.msra.mxu0 0.0
    %3669 = vmatprep.subr.mxu0 0.0
    %3670 = vmatpush1.msra.mxu0 0.0
    %3671 = vmatprep.subr.mxu0 0.0
    %3672 = vmatpush1.msra.mxu0 0.0
    %3673 = vmatprep.subr.mxu0 0.0
    %3674 = vmatpush1.msra.mxu0 0.0
    %3675 = vmatprep.subr.mxu0 0.0
    %3676 = vmatpush1.msra.mxu0 0.0
    %3677 = vmatprep.subr.mxu0 0.0
    %3678 = vmatpush1.msra.mxu0 0.0
    %3679 = vmatprep.subr.mxu0 0.0
    %3680 = vmatpush1.msra.mxu0 0.0
    %3681 = vmatprep.subr.mxu0 0.0
    %3682 = vmatpush1.msra.mxu0 0.0
    %3683 = vmatprep.subr.mxu0 0.0
    %3684 = vmatpush1.msra.mxu0 0.0
    %3685 = vmatprep.subr.mxu0 0.0
    %3686 = vmatpush1.msra.mxu0 0.0
    %3687 = vmatprep.subr.mxu0 0.0
    %3688 = vmatpush1.msra.mxu0 0.0
    %3689 = vmatprep.subr.mxu0 0.0
    %3690 = vmatpush1.msra.mxu0 0.0
    %3691 = vmatprep.subr.mxu0 0.0
    %3692 = vmatpush1.msra.mxu0 0.0
    %3693 = vmatprep.mubr.f32.mxu0 0.0
    %3694 = vmatmul.mubr.f32.gmra.mrb[0].mxu0 %v3621
    %v3695 = vpop.f32.mrb[0].mxu0
    %v3696 = vadd.f32 0.0, %v3695
    %v3697 = vpop.f32.mrb[0].mxu0
    %v3698 = vadd.f32 0.0, %v3697
    %3699 = vdwg.mxu0
    %3700 = vmatprep.subr.mxu0 %v992
    %3701 = vmatpush1.msra.mxu0 %v991
    %3702 = vmatprep.subr.mxu0 %v996
    %3703 = vmatpush1.msra.mxu0 %v995
    %3704 = vmatprep.subr.mxu0 %v1000
    %3705 = vmatpush1.msra.mxu0 %v999
    %3706 = vmatprep.subr.mxu0 %v1004
    %3707 = vmatpush1.msra.mxu0 %v1003
    %3708 = vmatprep.subr.mxu0 %v1008
    %3709 = vmatpush1.msra.mxu0 %v1007
    %3710 = vmatprep.subr.mxu0 %v1012
    %3711 = vmatpush1.msra.mxu0 %v1011
    %3712 = vmatprep.subr.mxu0 %v1016
    %3713 = vmatpush1.msra.mxu0 %v1015
    %3714 = vmatprep.subr.mxu0 %v1020
    %3715 = vmatpush1.msra.mxu0 %v1019
    %3716 = vmatprep.subr.mxu0 %v1024
    %3717 = vmatpush1.msra.mxu0 %v1023
    %3718 = vmatprep.subr.mxu0 %v1028
    %3719 = vmatpush1.msra.mxu0 %v1027
    %3720 = vmatprep.subr.mxu0 %v1032
    %3721 = vmatpush1.msra.mxu0 %v1031
    %3722 = vmatprep.subr.mxu0 %v1036
    %3723 = vmatpush1.msra.mxu0 %v1035
    %3724 = vmatprep.subr.mxu0 %v1040
    %3725 = vmatpush1.msra.mxu0 %v1039
    %3726 = vmatprep.subr.mxu0 %v1044
    %3727 = vmatpush1.msra.mxu0 %v1043
    %3728 = vmatprep.subr.mxu0 %v1048
    %3729 = vmatpush1.msra.mxu0 %v1047
    %3730 = vmatprep.subr.mxu0 %v1052
    %3731 = vmatpush1.msra.mxu0 %v1051
    %3732 = vmatprep.subr.mxu0 0.0
    %3733 = vmatpush1.msra.mxu0 0.0
    %3734 = vmatprep.subr.mxu0 0.0
    %3735 = vmatpush1.msra.mxu0 0.0
    %3736 = vmatprep.subr.mxu0 0.0
    %3737 = vmatpush1.msra.mxu0 0.0
    %3738 = vmatprep.subr.mxu0 0.0
    %3739 = vmatpush1.msra.mxu0 0.0
    %3740 = vmatprep.subr.mxu0 0.0
    %3741 = vmatpush1.msra.mxu0 0.0
    %3742 = vmatprep.subr.mxu0 0.0
    %3743 = vmatpush1.msra.mxu0 0.0
    %3744 = vmatprep.subr.mxu0 0.0
    %3745 = vmatpush1.msra.mxu0 0.0
    %3746 = vmatprep.subr.mxu0 0.0
    %3747 = vmatpush1.msra.mxu0 0.0
    %3748 = vmatprep.subr.mxu0 0.0
    %3749 = vmatpush1.msra.mxu0 0.0
    %3750 = vmatprep.subr.mxu0 0.0
    %3751 = vmatpush1.msra.mxu0 0.0
    %3752 = vmatprep.subr.mxu0 0.0
    %3753 = vmatpush1.msra.mxu0 0.0
    %3754 = vmatprep.subr.mxu0 0.0
    %3755 = vmatpush1.msra.mxu0 0.0
    %3756 = vmatprep.subr.mxu0 0.0
    %3757 = vmatpush1.msra.mxu0 0.0
    %3758 = vmatprep.subr.mxu0 0.0
    %3759 = vmatpush1.msra.mxu0 0.0
    %3760 = vmatprep.subr.mxu0 0.0
    %3761 = vmatpush1.msra.mxu0 0.0
    %3762 = vmatprep.subr.mxu0 0.0
    %3763 = vmatpush1.msra.mxu0 0.0
    %3764 = vmatprep.mubr.f32.mxu0 0.0
    %3765 = vmatmul.mubr.f32.gmra.mrb[0].mxu0 %v3621
    %v3766 = vpop.f32.mrb[0].mxu0
    %v3767 = vadd.f32 0.0, %v3766
    %v3768 = vpop.f32.mrb[0].mxu0
    %v3769 = vadd.f32 0.0, %v3768
    %3770 = vdwg.mxu0
    %v3771 = vadd.f32 %v3625, %v3696
    %v3772 = vadd.f32 %v3626, %v3698
    %v3773 = vadd.f32 %v3627, %v3767
    %v3774 = vadd.f32 %v3628, %v3769
    %v3775 = vld [vmem:[#allocation2 + $0x20] sm:$0xff]
    %v3776 = vld [vmem:[#allocation2 + $0x28] sm:$0xff]
    %v3777 = vld [vmem:[#allocation2 + $0x30] sm:$0xff]
    %v3778 = vld [vmem:[#allocation2 + $0x38] sm:$0xff]
    %3779 = vmatprep.subr.mxu0 %v1204
    %3780 = vmatpush1.msra.mxu0 %v1203
    %3781 = vmatprep.subr.mxu0 %v1208
    %3782 = vmatpush1.msra.mxu0 %v1207
    %3783 = vmatprep.subr.mxu0 %v1212
    %3784 = vmatpush1.msra.mxu0 %v1211
    %3785 = vmatprep.subr.mxu0 %v1216
    %3786 = vmatpush1.msra.mxu0 %v1215
    %3787 = vmatprep.subr.mxu0 %v1220
    %3788 = vmatpush1.msra.mxu0 %v1219
    %3789 = vmatprep.subr.mxu0 %v1224
    %3790 = vmatpush1.msra.mxu0 %v1223
    %3791 = vmatprep.subr.mxu0 %v1228
    %3792 = vmatpush1.msra.mxu0 %v1227
    %3793 = vmatprep.subr.mxu0 %v1232
    %3794 = vmatpush1.msra.mxu0 %v1231
    %3795 = vmatprep.subr.mxu0 %v1236
    %3796 = vmatpush1.msra.mxu0 %v1235
    %3797 = vmatprep.subr.mxu0 %v1240
    %3798 = vmatpush1.msra.mxu0 %v1239
    %3799 = vmatprep.subr.mxu0 %v1244
    %3800 = vmatpush1.msra.mxu0 %v1243
    %3801 = vmatprep.subr.mxu0 %v1248
    %3802 = vmatpush1.msra.mxu0 %v1247
    %3803 = vmatprep.subr.mxu0 %v1252
    %3804 = vmatpush1.msra.mxu0 %v1251
    %3805 = vmatprep.subr.mxu0 %v1256
    %3806 = vmatpush1.msra.mxu0 %v1255
    %3807 = vmatprep.subr.mxu0 %v1260
    %3808 = vmatpush1.msra.mxu0 %v1259
    %3809 = vmatprep.subr.mxu0 %v1264
    %3810 = vmatpush1.msra.mxu0 %v1263
    %3811 = vmatprep.subr.mxu0 0.0
    %3812 = vmatpush1.msra.mxu0 0.0
    %3813 = vmatprep.subr.mxu0 0.0
    %3814 = vmatpush1.msra.mxu0 0.0
    %3815 = vmatprep.subr.mxu0 0.0
    %3816 = vmatpush1.msra.mxu0 0.0
    %3817 = vmatprep.subr.mxu0 0.0
    %3818 = vmatpush1.msra.mxu0 0.0
    %3819 = vmatprep.subr.mxu0 0.0
    %3820 = vmatpush1.msra.mxu0 0.0
    %3821 = vmatprep.subr.mxu0 0.0
    %3822 = vmatpush1.msra.mxu0 0.0
    %3823 = vmatprep.subr.mxu0 0.0
    %3824 = vmatpush1.msra.mxu0 0.0
    %3825 = vmatprep.subr.mxu0 0.0
    %3826 = vmatpush1.msra.mxu0 0.0
    %3827 = vmatprep.subr.mxu0 0.0
    %3828 = vmatpush1.msra.mxu0 0.0
    %3829 = vmatprep.subr.mxu0 0.0
    %3830 = vmatpush1.msra.mxu0 0.0
    %3831 = vmatprep.subr.mxu0 0.0
    %3832 = vmatpush1.msra.mxu0 0.0
    %3833 = vmatprep.subr.mxu0 0.0
    %3834 = vmatpush1.msra.mxu0 0.0
    %3835 = vmatprep.subr.mxu0 0.0
    %3836 = vmatpush1.msra.mxu0 0.0
    %3837 = vmatprep.subr.mxu0 0.0
    %3838 = vmatpush1.msra.mxu0 0.0
    %3839 = vmatprep.subr.mxu0 0.0
    %3840 = vmatpush1.msra.mxu0 0.0
    %3841 = vmatprep.subr.mxu0 0.0
    %3842 = vmatpush1.msra.mxu0 0.0
    %3843 = vmatprep.mubr.f32.mxu0 0.0
    %3844 = vmatmul.mubr.f32.gmra.mrb[0].mxu0 %v3623
    %v3845 = vpop.f32.mrb[0].mxu0
    %v3846 = vadd.f32 0.0, %v3845
    %v3847 = vpop.f32.mrb[0].mxu0
    %v3848 = vadd.f32 0.0, %v3847
    %3849 = vdwg.mxu0
    %3850 = vmatprep.subr.mxu0 %v1206
    %3851 = vmatpush1.msra.mxu0 %v1205
    %3852 = vmatprep.subr.mxu0 %v1210
    %3853 = vmatpush1.msra.mxu0 %v1209
    %3854 = vmatprep.subr.mxu0 %v1214
    %3855 = vmatpush1.msra.mxu0 %v1213
    %3856 = vmatprep.subr.mxu0 %v1218
    %3857 = vmatpush1.msra.mxu0 %v1217
    %3858 = vmatprep.subr.mxu0 %v1222
    %3859 = vmatpush1.msra.mxu0 %v1221
    %3860 = vmatprep.subr.mxu0 %v1226
    %3861 = vmatpush1.msra.mxu0 %v1225
    %3862 = vmatprep.subr.mxu0 %v1230
    %3863 = vmatpush1.msra.mxu0 %v1229
    %3864 = vmatprep.subr.mxu0 %v1234
    %3865 = vmatpush1.msra.mxu0 %v1233
    %3866 = vmatprep.subr.mxu0 %v1238
    %3867 = vmatpush1.msra.mxu0 %v1237
    %3868 = vmatprep.subr.mxu0 %v1242
    %3869 = vmatpush1.msra.mxu0 %v1241
    %3870 = vmatprep.subr.mxu0 %v1246
    %3871 = vmatpush1.msra.mxu0 %v1245
    %3872 = vmatprep.subr.mxu0 %v1250
    %3873 = vmatpush1.msra.mxu0 %v1249
    %3874 = vmatprep.subr.mxu0 %v1254
    %3875 = vmatpush1.msra.mxu0 %v1253
    %3876 = vmatprep.subr.mxu0 %v1258
    %3877 = vmatpush1.msra.mxu0 %v1257
    %3878 = vmatprep.subr.mxu0 %v1262
    %3879 = vmatpush1.msra.mxu0 %v1261
    %3880 = vmatprep.subr.mxu0 %v1266
    %3881 = vmatpush1.msra.mxu0 %v1265
    %3882 = vmatprep.subr.mxu0 0.0
    %3883 = vmatpush1.msra.mxu0 0.0
    %3884 = vmatprep.subr.mxu0 0.0
    %3885 = vmatpush1.msra.mxu0 0.0
    %3886 = vmatprep.subr.mxu0 0.0
    %3887 = vmatpush1.msra.mxu0 0.0
    %3888 = vmatprep.subr.mxu0 0.0
    %3889 = vmatpush1.msra.mxu0 0.0
    %3890 = vmatprep.subr.mxu0 0.0
    %3891 = vmatpush1.msra.mxu0 0.0
    %3892 = vmatprep.subr.mxu0 0.0
    %3893 = vmatpush1.msra.mxu0 0.0
    %3894 = vmatprep.subr.mxu0 0.0
    %3895 = vmatpush1.msra.mxu0 0.0
    %3896 = vmatprep.subr.mxu0 0.0
    %3897 = vmatpush1.msra.mxu0 0.0
    %3898 = vmatprep.subr.mxu0 0.0
    %3899 = vmatpush1.msra.mxu0 0.0
    %3900 = vmatprep.subr.mxu0 0.0
    %3901 = vmatpush1.msra.mxu0 0.0
    %3902 = vmatprep.subr.mxu0 0.0
    %3903 = vmatpush1.msra.mxu0 0.0
    %3904 = vmatprep.subr.mxu0 0.0
    %3905 = vmatpush1.msra.mxu0 0.0
    %3906 = vmatprep.subr.mxu0 0.0
    %3907 = vmatpush1.msra.mxu0 0.0
    %3908 = vmatprep.subr.mxu0 0.0
    %3909 = vmatpush1.msra.mxu0 0.0
    %3910 = vmatprep.subr.mxu0 0.0
    %3911 = vmatpush1.msra.mxu0 0.0
    %3912 = vmatprep.subr.mxu0 0.0
    %3913 = vmatpush1.msra.mxu0 0.0
    %3914 = vmatprep.mubr.f32.mxu0 0.0
    %3915 = vmatmul.mubr.f32.gmra.mrb[0].mxu0 %v3623
    %v3916 = vpop.f32.mrb[0].mxu0
    %v3917 = vadd.f32 0.0, %v3916
    %v3918 = vpop.f32.mrb[0].mxu0
    %v3919 = vadd.f32 0.0, %v3918
    %3920 = vdwg.mxu0
    %v3921 = vadd.f32 %v3775, %v3846
    %v3922 = vadd.f32 %v3776, %v3848
    %v3923 = vadd.f32 %v3777, %v3917
    %v3924 = vadd.f32 %v3778, %v3919
    %v3925 = vxor.u32 %v3771, 2147483648
    %v3926 = vmul.f32 %v3925, 1.442695
    %v3927 = vpow.pop %v3926
    %v3928 = vadd.f32 %v3927, 1.0
    %v3929 = vrcp.pop %v3928
    %v3930 = vmul.f32 1.0, %v3929
    %v3931 = vxor.u32 %v3772, 2147483648
    %v3932 = vmul.f32 %v3931, 1.442695
    %v3933 = vpow.pop %v3932
    %v3934 = vadd.f32 %v3933, 1.0
    %v3935 = vrcp.pop %v3934
    %v3936 = vmul.f32 1.0, %v3935
    %v3937 = vtanh.pop %v3773
    %v3938 = vxor.u32 %v3774, 2147483648
    %v3939 = vmul.f32 %v3938, 1.442695
    %v3940 = vpow.pop %v3939
    %v3941 = vadd.f32 %v3940, 1.0
    %v3942 = vrcp.pop %v3941
    %v3943 = vmul.f32 1.0, %v3942
    %v3944 = vmul.f32 %v3936, %v3622
    %v3945 = vmul.f32 %v3930, %v3937
    %v3946 = vadd.f32 %v3944, %v3945
    %v3947 = vtanh.pop %v3946
    %v3948 = vmul.f32 %v3943, %v3947
    %v3949 = vxor.u32 %v3921, 2147483648
    %v3950 = vmul.f32 %v3949, 1.442695
    %v3951 = vpow.pop %v3950
    %v3952 = vadd.f32 %v3951, 1.0
    %v3953 = vrcp.pop %v3952
    %v3954 = vmul.f32 1.0, %v3953
    %v3955 = vxor.u32 %v3922, 2147483648
    %v3956 = vmul.f32 %v3955, 1.442695
    %v3957 = vpow.pop %v3956
    %v3958 = vadd.f32 %v3957, 1.0
    %v3959 = vrcp.pop %v3958
    %v3960 = vmul.f32 1.0, %v3959
    %v3961 = vtanh.pop %v3923
    %v3962 = vxor.u32 %v3924, 2147483648
    %v3963 = vmul.f32 %v3962, 1.442695
    %v3964 = vpow.pop %v3963
    %v3965 = vadd.f32 %v3964, 1.0
    %v3966 = vrcp.pop %v3965
    %v3967 = vmul.f32 1.0, %v3966
    %v3968 = vmul.f32 %v3960, %v3624
    %v3969 = vmul.f32 %v3954, %v3961
    %v3970 = vadd.f32 %v3968, %v3969
    %v3971 = vtanh.pop %v3970
    %v3972 = vmul.f32 %v3967, %v3971
    %v3973 = vsel %vm1474, %v3948, %v3621
    %v3974 = vsel %vm1467, %v3972, %v3623
    %v3975 = vadd.f32 %v3973, %v3974
    %v3976 = vmul.f32 %v3975, 0.5
    %v3977 = vld [vmem:[#allocation12] sm:$0xff]
    %v3978 = vld [vmem:[#allocation12 + $0x8] sm:$0xff]
    %v3979 = vld [vmem:[#allocation12 + $0x10] sm:$0xff]
    %v3980 = vld [vmem:[#allocation12 + $0x18] sm:$0xff]
    %v3981 = vld [vmem:[#allocation12 + $0x20] sm:$0xff]
    %v3982 = vld [vmem:[#allocation12 + $0x28] sm:$0xff]
    %v3983 = vld [vmem:[#allocation12 + $0x30] sm:$0xff]
    %v3984 = vld [vmem:[#allocation12 + $0x38] sm:$0xff]
    %v3985 = vld [vmem:[#allocation12 + $0x40] sm:$0xff]
    %v3986 = vld [vmem:[#allocation12 + $0x48] sm:$0xff]
    %v3987 = vld [vmem:[#allocation12 + $0x50] sm:$0xff]
    %v3988 = vld [vmem:[#allocation12 + $0x58] sm:$0xff]
    %v3989 = vld [vmem:[#allocation12 + $0x60] sm:$0xff]
    %v3990 = vld [vmem:[#allocation12 + $0x68] sm:$0xff]
    %v3991 = vld [vmem:[#allocation12 + $0x70] sm:$0xff]
    %v3992 = vld [vmem:[#allocation12 + $0x78] sm:$0xff]
    %v3993 = vld [vmem:[%s8] sm:$0x1]
    %v3995 = vlaneseq
    %v3996 = vshrl.u32 %v3995, 7
    %v3997 = vsub.s32 0, %v3996
    %v3998 = vrot.slane %v3993, %v3997
    %4000 = vmatprep.subr.mxu0 0.0
    %4001 = vmatpush1.msra.mxu0 %v3977
    %4002 = vmatprep.subr.mxu0 0.0
    %4003 = vmatpush1.msra.mxu0 %v3978
    %4004 = vmatprep.subr.mxu0 0.0
    %4005 = vmatpush1.msra.mxu0 %v3979
    %4006 = vmatprep.subr.mxu0 0.0
    %4007 = vmatpush1.msra.mxu0 %v3980
    %4008 = vmatprep.subr.mxu0 0.0
    %4009 = vmatpush1.msra.mxu0 %v3981
    %4010 = vmatprep.subr.mxu0 0.0
    %4011 = vmatpush1.msra.mxu0 %v3982
    %4012 = vmatprep.subr.mxu0 0.0
    %4013 = vmatpush1.msra.mxu0 %v3983
    %4014 = vmatprep.subr.mxu0 0.0
    %4015 = vmatpush1.msra.mxu0 %v3984
    %4016 = vmatprep.subr.mxu0 0.0
    %4017 = vmatpush1.msra.mxu0 %v3985
    %4018 = vmatprep.subr.mxu0 0.0
    %4019 = vmatpush1.msra.mxu0 %v3986
    %4020 = vmatprep.subr.mxu0 0.0
    %4021 = vmatpush1.msra.mxu0 %v3987
    %4022 = vmatprep.subr.mxu0 0.0
    %4023 = vmatpush1.msra.mxu0 %v3988
    %4024 = vmatprep.subr.mxu0 0.0
    %4025 = vmatpush1.msra.mxu0 %v3989
    %4026 = vmatprep.subr.mxu0 0.0
    %4027 = vmatpush1.msra.mxu0 %v3990
    %4028 = vmatprep.subr.mxu0 0.0
    %4029 = vmatpush1.msra.mxu0 %v3991
    %4030 = vmatprep.subr.mxu0 0.0
    %4031 = vmatpush1.msra.mxu0 %v3992
    %4032 = vmatprep.subr.mxu0 0.0
    %4033 = vmatpush1.msra.mxu0 0.0
    %4034 = vmatprep.subr.mxu0 0.0
    %4035 = vmatpush1.msra.mxu0 0.0
    %4036 = vmatprep.subr.mxu0 0.0
    %4037 = vmatpush1.msra.mxu0 0.0
    %4038 = vmatprep.subr.mxu0 0.0
    %4039 = vmatpush1.msra.mxu0 0.0
    %4040 = vmatprep.subr.mxu0 0.0
    %4041 = vmatpush1.msra.mxu0 0.0
    %4042 = vmatprep.subr.mxu0 0.0
    %4043 = vmatpush1.msra.mxu0 0.0
    %4044 = vmatprep.subr.mxu0 0.0
    %4045 = vmatpush1.msra.mxu0 0.0
    %4046 = vmatprep.subr.mxu0 0.0
    %4047 = vmatpush1.msra.mxu0 0.0
    %4048 = vmatprep.subr.mxu0 0.0
    %4049 = vmatpush1.msra.mxu0 0.0
    %4050 = vmatprep.subr.mxu0 0.0
    %4051 = vmatpush1.msra.mxu0 0.0
    %4052 = vmatprep.subr.mxu0 0.0
    %4053 = vmatpush1.msra.mxu0 0.0
    %4054 = vmatprep.subr.mxu0 0.0
    %4055 = vmatpush1.msra.mxu0 0.0
    %4056 = vmatprep.subr.mxu0 0.0
    %4057 = vmatpush1.msra.mxu0 0.0
    %4058 = vmatprep.subr.mxu0 0.0
    %4059 = vmatpush1.msra.mxu0 0.0
    %4060 = vmatprep.subr.mxu0 0.0
    %4061 = vmatpush1.msra.mxu0 0.0
    %4062 = vmatprep.subr.mxu0 0.0
    %4063 = vmatpush1.msra.mxu0 0.0
    %4064 = vmatprep.mubr.f32.mxu0 0.0
    %4065 = vmatmul.mubr.f32.gmra.mrb[0].mxu0 %v3976
    %v4066 = vpop.f32.mrb[0].mxu0
    %v4067 = vadd.f32 %v3998, %v4066
    %v4068 = vpop.f32.mrb[0].mxu0
    %4069 = vdwg.mxu0
    %vm4070 = vcmp.gt.f32.partialorder %v4067, 0.0
    %v4071 = vmul.f32 %v4067, 0.01
    %v4072 = vsel %vm4070, %v4067, %v4071
    %v4073 = vld [vmem:[%s9] sm:$0xff]
    %v4074 = vld [vmem:[%s9 + $0x8] sm:$0xff]
    %v4075 = vld [vmem:[%s9 + $0x10] sm:$0xff]
    %v4076 = vld [vmem:[%s9 + $0x18] sm:$0xff]
    %v4077 = vld [vmem:[%s9 + $0x20] sm:$0xff]
    %v4078 = vld [vmem:[%s9 + $0x28] sm:$0xff]
    %v4079 = vld [vmem:[%s9 + $0x30] sm:$0xff]
    %v4080 = vld [vmem:[%s9 + $0x38] sm:$0xff]
    %v4081 = vld [vmem:[%s9 + $0x40] sm:$0xff]
    %v4082 = vld [vmem:[%s9 + $0x48] sm:$0xff]
    %v4083 = vld [vmem:[%s9 + $0x50] sm:$0xff]
    %v4084 = vld [vmem:[%s9 + $0x58] sm:$0xff]
    %v4085 = vld [vmem:[%s9 + $0x60] sm:$0xff]
    %v4086 = vld [vmem:[%s9 + $0x68] sm:$0xff]
    %v4087 = vld [vmem:[%s9 + $0x70] sm:$0xff]
    %v4088 = vld [vmem:[%s9 + $0x78] sm:$0xff]
    %v4089 = vld [vmem:[%s10] sm:$0x1]
    %v4091 = vlaneseq
    %v4092 = vshrl.u32 %v4091, 7
    %v4093 = vsub.s32 0, %v4092
    %v4094 = vrot.slane %v4089, %v4093
    %4096 = vmatprep.subr.mxu0 0.0
    %4097 = vmatpush1.msra.mxu0 %v4073
    %4098 = vmatprep.subr.mxu0 0.0
    %4099 = vmatpush1.msra.mxu0 %v4074
    %4100 = vmatprep.subr.mxu0 0.0
    %4101 = vmatpush1.msra.mxu0 %v4075
    %4102 = vmatprep.subr.mxu0 0.0
    %4103 = vmatpush1.msra.mxu0 %v4076
    %4104 = vmatprep.subr.mxu0 0.0
    %4105 = vmatpush1.msra.mxu0 %v4077
    %4106 = vmatprep.subr.mxu0 0.0
    %4107 = vmatpush1.msra.mxu0 %v4078
    %4108 = vmatprep.subr.mxu0 0.0
    %4109 = vmatpush1.msra.mxu0 %v4079
    %4110 = vmatprep.subr.mxu0 0.0
    %4111 = vmatpush1.msra.mxu0 %v4080
    %4112 = vmatprep.subr.mxu0 0.0
    %4113 = vmatpush1.msra.mxu0 %v4081
    %4114 = vmatprep.subr.mxu0 0.0
    %4115 = vmatpush1.msra.mxu0 %v4082
    %4116 = vmatprep.subr.mxu0 0.0
    %4117 = vmatpush1.msra.mxu0 %v4083
    %4118 = vmatprep.subr.mxu0 0.0
    %4119 = vmatpush1.msra.mxu0 %v4084
    %4120 = vmatprep.subr.mxu0 0.0
    %4121 = vmatpush1.msra.mxu0 %v4085
    %4122 = vmatprep.subr.mxu0 0.0
    %4123 = vmatpush1.msra.mxu0 %v4086
    %4124 = vmatprep.subr.mxu0 0.0
    %4125 = vmatpush1.msra.mxu0 %v4087
    %4126 = vmatprep.subr.mxu0 0.0
    %4127 = vmatpush1.msra.mxu0 %v4088
    %4128 = vmatprep.subr.mxu0 0.0
    %4129 = vmatpush1.msra.mxu0 0.0
    %4130 = vmatprep.subr.mxu0 0.0
    %4131 = vmatpush1.msra.mxu0 0.0
    %4132 = vmatprep.subr.mxu0 0.0
    %4133 = vmatpush1.msra.mxu0 0.0
    %4134 = vmatprep.subr.mxu0 0.0
    %4135 = vmatpush1.msra.mxu0 0.0
    %4136 = vmatprep.subr.mxu0 0.0
    %4137 = vmatpush1.msra.mxu0 0.0
    %4138 = vmatprep.subr.mxu0 0.0
    %4139 = vmatpush1.msra.mxu0 0.0
    %4140 = vmatprep.subr.mxu0 0.0
    %4141 = vmatpush1.msra.mxu0 0.0
    %4142 = vmatprep.subr.mxu0 0.0
    %4143 = vmatpush1.msra.mxu0 0.0
    %4144 = vmatprep.subr.mxu0 0.0
    %4145 = vmatpush1.msra.mxu0 0.0
    %4146 = vmatprep.subr.mxu0 0.0
    %4147 = vmatpush1.msra.mxu0 0.0
    %4148 = vmatprep.subr.mxu0 0.0
    %4149 = vmatpush1.msra.mxu0 0.0
    %4150 = vmatprep.subr.mxu0 0.0
    %4151 = vmatpush1.msra.mxu0 0.0
    %4152 = vmatprep.subr.mxu0 0.0
    %4153 = vmatpush1.msra.mxu0 0.0
    %4154 = vmatprep.subr.mxu0 0.0
    %4155 = vmatpush1.msra.mxu0 0.0
    %4156 = vmatprep.subr.mxu0 0.0
    %4157 = vmatpush1.msra.mxu0 0.0
    %4158 = vmatprep.subr.mxu0 0.0
    %4159 = vmatpush1.msra.mxu0 0.0
    %4160 = vmatprep.mubr.f32.mxu0 0.0
    %4161 = vmatmul.mubr.f32.gmra.mrb[0].mxu0 %v4072
    %v4162 = vpop.f32.mrb[0].mxu0
    %v4163 = vadd.f32 %v4094, %v4162
    %v4164 = vpop.f32.mrb[0].mxu0
    %4165 = vdwg.mxu0
    %4166 = vst [vmem:[#allocation14] sm:$0xff] %v4163
    // Predicated region
    $region70: #{lstm_classifier_forward.1} parent=1 // pred_check
      _
    $region71: #{lstm_classifier_forward.1} parent=1 // pred_check_branch
      %4168 = sbr.rel (0) target = $region73
    $region72: #{lstm_classifier_forward.1} parent=1 // pred_region
      %s4170 = ssub.s32 128, 128
      %4171 = vsyncadd [#allocation5], %s4170
      %s4173 = sshll.u32 [#allocation14], 4
      %s4174 = int_to_ptr.vmem [resolvable:$true] %s4173
      %4176 = dma.vmem_to_hbm [thread:$0]  %s4174, 128, %s11, [#allocation5]
    $region73: #{lstm_classifier_forward.1} parent=1 // pred_fallthru
      _
    // Predicated region
    $region74: #{lstm_classifier_forward.1} parent=1 // pred_check
      _
    $region75: #{lstm_classifier_forward.1} parent=1 // pred_check_branch
      %4178 = sbr.rel (0) target = $region77
    $region76: #{lstm_classifier_forward.1} parent=1 // pred_region
      %4179 = dma.done [#allocation5], 128
    $region77: #{lstm_classifier_forward.1} parent=1 // pred_fallthru
      _
    %4180 = vsyncpa [#allocation4], 1
    %4181 = vsyncpa [#allocation7], 1
    %4182 = vsyncpa [#allocation10], 1
    %4183 = vsyncpa [#allocation13], 1
    %4184 = vsyncpa [#allocation5], 1

</llo_original>
